<compile_context>
chip_gen: v6e
topology: v6e:2x2x1
jax: 0.10.0
libtpu: 0.0.40
codegen_flags: <defaults>
</compile_context>

<pallas_src>
import functools

import jax
import jax.numpy as jnp
from jax.experimental import pallas as pl
from jax.experimental.pallas import tpu as pltpu

MINF = -1e20                      # matches SelfAttention.minf
EPS = 1e-5                        # nn.LayerNorm default eps
VMEM_LIMIT = 48 * 1024 * 1024     # fits v5e/v6e/v7x with headroom


def _tile(dim, cap):
    """Full dim if small, else `cap` (must divide dim)."""
    if dim <= cap:
        return dim
    assert dim % cap == 0, f"dim {dim} not divisible by tile cap {cap}"
    return cap


# --------------------------- Kernel 1: tiled bias-free matmul ----------------

def _matmul_kernel(x_ref, w_ref, o_ref, acc_ref):
    @pl.when(pl.program_id(2) == 0)
    def _():
        acc_ref[...] = jnp.zeros_like(acc_ref)

    acc_ref[...] += jnp.dot(x_ref[...].astype(jnp.bfloat16), w_ref[...],
                            preferred_element_type=jnp.float32)

    @pl.when(pl.program_id(2) == pl.num_programs(2) - 1)
    def _():
        o_ref[...] = acc_ref[...].astype(o_ref.dtype)


def matmul_bf16(x, w, *, tm=512, tn=1024, tk=512, out_dtype=jnp.bfloat16):
    """x: (M, K) f32/bf16, w: (K, N) bf16 -> (M, N) bf16.  f32 accumulation."""
    m, k = x.shape
    k2, n = w.shape
    assert k == k2
    tm, tn, tk = _tile(m, tm), _tile(n, tn), _tile(k, tk)
    return pl.pallas_call(
        _matmul_kernel,
        grid=(m // tm, n // tn, k // tk),
        in_specs=[pl.BlockSpec((tm, tk), lambda i, j, l: (i, l)),
                  pl.BlockSpec((tk, tn), lambda i, j, l: (l, j))],
        out_specs=pl.BlockSpec((tm, tn), lambda i, j, l: (i, j)),
        out_shape=jax.ShapeDtypeStruct((m, n), out_dtype),
        scratch_shapes=[pltpu.VMEM((tm, tn), jnp.float32)],
        compiler_params=pltpu.CompilerParams(
            dimension_semantics=("parallel", "parallel", "arbitrary"),
            vmem_limit_bytes=VMEM_LIMIT),
    )(x, w)


# --------------------------- Kernel 2: flash attention -----------------------

def _flash_attn_kernel(q_ref, k_ref, v_ref, mask_ref, o_ref,
                       m_sc, l_sc, acc_sc, *, scale):
    ki = pl.program_id(3)

    @pl.when(ki == 0)
    def _():
        m_sc[...] = jnp.full_like(m_sc, -jnp.inf)
        l_sc[...] = jnp.zeros_like(l_sc)
        acc_sc[...] = jnp.zeros_like(acc_sc)

    # Fold 1/sqrt(size) into q (O(tq*D) instead of O(tq*tk)).
    q = (q_ref[0].astype(jnp.float32) * scale).astype(jnp.bfloat16)   # (tq, D)
    k = k_ref[0]                                                      # (tk, D)
    v = v_ref[0]                                                      # (tk, D)

    s = jax.lax.dot_general(q, k, (((1,), (1,)), ((), ())),
                            preferred_element_type=jnp.float32)       # (tq, tk)
    s = jnp.where(mask_ref[0] == 0, MINF, s)                          # masked_fill

    m_prev = m_sc[...]
    m_new = jnp.maximum(m_prev, jnp.max(s, axis=-1, keepdims=True))
    alpha = jnp.exp(m_prev - m_new)
    p = jnp.exp(s - m_new)
    l_sc[...] = alpha * l_sc[...] + jnp.sum(p, axis=-1, keepdims=True)
    acc_sc[...] = alpha * acc_sc[...] + jnp.dot(
        p.astype(jnp.bfloat16), v, preferred_element_type=jnp.float32)
    m_sc[...] = m_new

    @pl.when(ki == pl.num_programs(3) - 1)
    def _():
        o_ref[0] = (acc_sc[...] *
                    pl.reciprocal(l_sc[...], approx=True)).astype(o_ref.dtype)


def flash_attention(q_slab, k_slab, v_slab, mask, *, n_head, d_head,
                    q_off, k_off, v_off, scale, tq=512, tk=512):
    """q/k/v_slab: (B, S, n_blocks*d_head) bf16 slabs; head h of q/k/v lives at
    last-dim block (q_off|k_off|v_off)+h (block size d_head), so a single fused
    (B, S, 3E) QKV slab can be passed three times — no transpose anywhere.
    mask: (B, Sq, Sk) bf16 (0 = masked).  Out: (B, Sq, n_head*d_head) bf16 in
    merged head-concatenated layout."""
    B, Sq, _ = q_slab.shape
    Sk = k_slab.shape[1]
    E = n_head * d_head
    # TODO(synk): head dims < 128 would need lane padding for these BlockSpecs.
    assert d_head % 128 == 0, "head dim must be a multiple of 128"
    tq, tk = _tile(Sq, tq), _tile(Sk, tk)
    kernel = functools.partial(_flash_attn_kernel, scale=scale)
    return pl.pallas_call(
        kernel,
        grid=(B, n_head, Sq // tq, Sk // tk),
        in_specs=[
            pl.BlockSpec((1, tq, d_head), lambda b, h, qi, ki: (b, qi, q_off + h)),
            pl.BlockSpec((1, tk, d_head), lambda b, h, qi, ki: (b, ki, k_off + h)),
            pl.BlockSpec((1, tk, d_head), lambda b, h, qi, ki: (b, ki, v_off + h)),
            pl.BlockSpec((1, tq, tk), lambda b, h, qi, ki: (b, qi, ki)),
        ],
        out_specs=pl.BlockSpec((1, tq, d_head), lambda b, h, qi, ki: (b, qi, h)),
        out_shape=jax.ShapeDtypeStruct((B, Sq, E), jnp.bfloat16),
        scratch_shapes=[pltpu.VMEM((tq, 1), jnp.float32),
                        pltpu.VMEM((tq, 1), jnp.float32),
                        pltpu.VMEM((tq, d_head), jnp.float32)],
        compiler_params=pltpu.CompilerParams(
            dimension_semantics=("parallel", "parallel", "parallel", "arbitrary"),
            vmem_limit_bytes=VMEM_LIMIT),
    )(q_slab, k_slab, v_slab, mask)


# ----- Kernel 3: fused [output projection + residual + LayerNorm] ------------

def _proj_res_ln_kernel(ctx_ref, w_ref, b_ref, res_ref, g_ref, beta_ref,
                        o_ref, acc_ref):
    kk = pl.program_id(1)

    @pl.when(kk == 0)
    def _():
        acc_ref[...] = jnp.zeros_like(acc_ref)

    acc_ref[...] += jnp.dot(ctx_ref[...], w_ref[...],
                            preferred_element_type=jnp.float32)

    @pl.when(kk == pl.num_programs(1) - 1)
    def _():
        y = acc_ref[...] + b_ref[...] + res_ref[...]
        mu = jnp.mean(y, axis=-1, keepdims=True)
        var = jnp.mean((y - mu) ** 2, axis=-1, keepdims=True)
        o_ref[...] = ((y - mu) * jax.lax.rsqrt(var + EPS) * g_ref[...]
                      + beta_ref[...]).astype(o_ref.dtype)


def proj_residual_layernorm(ctx2d, w_fc, b_fc, res2d, gamma, beta,
                            *, tm=512, tk=512):
    """LayerNorm(ctx2d @ w_fc + b_fc + res2d).
    ctx2d: (M, E) bf16 (merged heads), res2d: (M, E) f32 -> (M, E) bf16."""
    M, E = ctx2d.shape
    tm, tk = _tile(M, tm), _tile(E, tk)
    return pl.pallas_call(
        _proj_res_ln_kernel,
        grid=(M // tm, E // tk),
        in_specs=[
            pl.BlockSpec((tm, tk), lambda i, k: (i, k)),
            pl.BlockSpec((tk, E), lambda i, k: (k, 0)),
            pl.BlockSpec((1, E), lambda i, k: (0, 0)),
            pl.BlockSpec((tm, E), lambda i, k: (i, 0)),
            pl.BlockSpec((1, E), lambda i, k: (0, 0)),
            pl.BlockSpec((1, E), lambda i, k: (0, 0)),
        ],
        out_specs=pl.BlockSpec((tm, E), lambda i, k: (i, 0)),
        out_shape=jax.ShapeDtypeStruct((M, E), jnp.bfloat16),
        scratch_shapes=[pltpu.VMEM((tm, E), jnp.float32)],
        compiler_params=pltpu.CompilerParams(
            dimension_semantics=("parallel", "arbitrary"),
            vmem_limit_bytes=VMEM_LIMIT),
    )(ctx2d, w_fc, b_fc, res2d, gamma, beta)


# ----- Kernel 4: fused [Linear -> ReLU -> Linear + residual + LayerNorm] -----

def _ffn_res_ln_kernel(x_ref, w1_ref, b1_ref, w2_ref, b2_ref, g_ref, beta_ref,
                       o_ref, acc_ref):
    j = pl.program_id(1)

    @pl.when(j == 0)
    def _():
        acc_ref[...] = jnp.zeros_like(acc_ref)

    h = jnp.dot(x_ref[...], w1_ref[...],
                preferred_element_type=jnp.float32) + b1_ref[...]
    h = jnp.maximum(h, 0.0).astype(jnp.bfloat16)                     # ReLU
    acc_ref[...] += jnp.dot(h, w2_ref[...], preferred_element_type=jnp.float32)

    @pl.when(j == pl.num_programs(1) - 1)
    def _():
        y = acc_ref[...] + b2_ref[...] + x_ref[...].astype(jnp.float32)
        mu = jnp.mean(y, axis=-1, keepdims=True)
        var = jnp.mean((y - mu) ** 2, axis=-1, keepdims=True)
        o_ref[...] = ((y - mu) * jax.lax.rsqrt(var + EPS) * g_ref[...]
                      + beta_ref[...]).astype(o_ref.dtype)


def ffn_residual_layernorm(x2d, w1, b1, w2, b2, gamma, beta, *, tm=512, th=512):
    """LayerNorm(x + relu(x @ w1 + b1) @ w2 + b2).  x2d: (M, E) bf16 -> f32."""
    M, E = x2d.shape
    HID = w1.shape[1]
    tm, th = _tile(M, tm), _tile(HID, th)
    return pl.pallas_call(
        _ffn_res_ln_kernel,
        grid=(M // tm, HID // th),
        in_specs=[
            pl.BlockSpec((tm, E), lambda i, j: (i, 0)),
            pl.BlockSpec((E, th), lambda i, j: (0, j)),
            pl.BlockSpec((1, th), lambda i, j: (0, j)),
            pl.BlockSpec((th, E), lambda i, j: (j, 0)),
            pl.BlockSpec((1, E), lambda i, j: (0, 0)),
            pl.BlockSpec((1, E), lambda i, j: (0, 0)),
            pl.BlockSpec((1, E), lambda i, j: (0, 0)),
        ],
        out_specs=pl.BlockSpec((tm, E), lambda i, j: (i, 0)),
        out_shape=jax.ShapeDtypeStruct((M, E), jnp.float32),
        scratch_shapes=[pltpu.VMEM((tm, E), jnp.float32)],
        compiler_params=pltpu.CompilerParams(
            dimension_semantics=("parallel", "arbitrary"),
            vmem_limit_bytes=VMEM_LIMIT),
    )(x2d, w1, b1, w2, b2, gamma, beta)


# --------------------------- Model forward (glue) ----------------------------

def _attention_context(ap, vals, keys, qs, mask, n_head):
    """SelfAttention up to (not including) the fc projection.
    Returns merged-head context (B, Sq, E) bf16 — no transposes anywhere."""
    B, Sq, E = qs.shape
    Sk = keys.shape[1]
    D = E // n_head
    scale = 1.0 / (E ** 0.5)          # PyTorch divides by sqrt(self.size)

    if (qs is keys) and (keys is vals):
        # Fused QKV: one matmul with the pre-concatenated (E, 3E) weight;
        # reshape is free, head slices are read directly by the attention
        # BlockSpecs (no transpose / extra HBM round trip).
        qkv = matmul_bf16(qs.reshape(B * Sq, E), ap["w_qkv"])        # (B*Sq, 3E)
        slab = qkv.reshape(B, Sq, 3 * E)
        q_slab = k_slab = v_slab = slab
        q_off, k_off, v_off = 0, n_head, 2 * n_head
    else:
        # Generic cross-attention path.
        q_slab = matmul_bf16(qs.reshape(B * Sq, E), ap["wq"]).reshape(B, Sq, E)
        k_slab = matmul_bf16(keys.reshape(B * Sk, E), ap["wk"]).reshape(B, Sk, E)
        v_slab = matmul_bf16(vals.reshape(B * Sk, E), ap["wv"]).reshape(B, Sk, E)
        q_off = k_off = v_off = 0

    if mask is None:
        mask3 = jnp.ones((B, Sq, Sk), jnp.bfloat16)
    else:
        # Un-broadcast over heads (bf16: half the HBM traffic of f32).
        # TODO(synk): per-head masks (B, H, Sq, Sk) would need the head axis kept.
        mask3 = jnp.broadcast_to(mask, (B, 1, Sq, Sk))[:, 0].astype(jnp.bfloat16)

    return flash_attention(q_slab, k_slab, v_slab, mask3, n_head=n_head,
                           d_head=D, q_off=q_off, k_off=k_off, v_off=v_off,
                           scale=scale)


def transformer_block_fwd(p, vals, keys, qs, mask, n_head):
    """TransformerBlock.forward (dropout p=0 -> identity)."""
    B, Sq, E = qs.shape
    ctx = _attention_context(p["attn"], vals, keys, qs, mask, n_head)  # (B,Sq,E) bf16
    # norm(attn(...) + qs) — fc projection fused with residual + LN, bf16 out.
    x1 = proj_residual_layernorm(ctx.reshape(B * Sq, E),
                                 p["attn"]["w_fc"], p["attn"]["b_fc"],
                                 qs.reshape(B * Sq, E),
                                 p["ln_g"], p["ln_b"])                 # (M,E) bf16
    # norm(x + fc(x)) — FFN fused with residual + LN (same norm params, exactly
    # as the PyTorch module reuses self.norm twice).
    x2 = ffn_residual_layernorm(x1, p["w1"], p["b1"], p["w2"], p["b2"],
                                p["ln_g"], p["ln_b"])
    return x2.reshape(B, Sq, E)


# --------------------------- Parameters --------------------------------------

def init_params(key, size, n_head, exp):
    def nrm(k, shape, scale=0.05):
        return scale * jax.random.normal(k, shape, jnp.float32)

    ks = jax.random.split(key, 6)
    return {
        "attn": {
            "wq": nrm(ks[0], (size, size)),       # bias=False, stored (in, out)
            "wk": nrm(ks[1], (size, size)),
            "wv": nrm(ks[2], (size, size)),
            "w_fc": nrm(ks[3], (size, size)),
            "b_fc": jnp.zeros((size,), jnp.float32),
        },
        "ln_g": jnp.ones((size,), jnp.float32),
        "ln_b": jnp.zeros((size,), jnp.float32),
        "w1": nrm(ks[4], (size, size * exp)),
        "b1": jnp.zeros((size * exp,), jnp.float32),
        "w2": nrm(ks[5], (size * exp, size)),
        "b2": jnp.zeros((size,), jnp.float32),
    }


def prepare_params(p):
    """One-time weight prep: fuse QKV weight, cast weights to bf16, reshape
    biases / LN params to (1, N).  Done once, NOT on the forward critical path."""
    ap = p["attn"]
    size = ap["w_fc"].shape[0]
    hid = p["w1"].shape[1]
    return {
        "attn": {
            "wq": ap["wq"].astype(jnp.bfloat16),
            "wk": ap["wk"].astype(jnp.bfloat16),
            "wv": ap["wv"].astype(jnp.bfloat16),
            "w_qkv": jnp.concatenate([ap["wq"], ap["wk"], ap["wv"]],
                                     axis=1).astype(jnp.bfloat16),     # (E, 3E)
            "w_fc": ap["w_fc"].astype(jnp.bfloat16),
            "b_fc": ap["b_fc"].reshape(1, size),
        },
        "ln_g": p["ln_g"].reshape(1, size),
        "ln_b": p["ln_b"].reshape(1, size),
        "w1": p["w1"].astype(jnp.bfloat16),
        "b1": p["b1"].reshape(1, hid),
        "w2": p["w2"].astype(jnp.bfloat16),
        "b2": p["b2"].reshape(1, size),
    }


# --------------------------- Main ---------------------------------------------

if __name__ == "__main__":
    # Lane-dense test shapes (D = 128, S multiple of 128) so stores are
    # unmasked and the MXU is actually exercised — still small/fast.
    size, n_head, exp = 256, 2, 4
    B, S = 2, 128

    key = jax.random.PRNGKey(0)
    k_p, k_x = jax.random.split(key)

    params = prepare_params(init_params(k_p, size, n_head, exp))
    x = jax.random.normal(k_x, (B, S, size), jnp.float32)

    # causal mask, broadcastable to (B, n_head, S, S) like the PyTorch usage
    mask = jnp.broadcast_to(
        jnp.tril(jnp.ones((S, S), jnp.float32))[None, None, :, :], (B, 1, S, S))

    out = transformer_block_fwd(params, x, x, x, mask, n_head)
    out = jax.block_until_ready(out)
    assert out.shape == (B, S, size)
    assert bool(jnp.all(jnp.isfinite(out)))
    print("KERNEL_OK")
</pallas_src>

<mosaic_0001>
module attributes {stable_mosaic.version = 11 : i64} {
  func.func @_matmul_kernel(%arg0: i32, %arg1: i32, %arg2: i32, %arg3: memref<256x256xf32, #tpu.memory_space<vmem>>, %arg4: memref<256x768xbf16, #tpu.memory_space<vmem>>, %arg5: memref<256x768xbf16, #tpu.memory_space<vmem>>, %arg6: memref<256x768xf32, #tpu.memory_space<vmem>>) attributes {dimension_semantics = [#tpu.dimension_semantics<parallel>, #tpu.dimension_semantics<parallel>, #tpu.dimension_semantics<arbitrary>], iteration_bounds = array<i64: 1, 1, 1>, scalar_prefetch = 0 : i64, scratch_operands = 1 : i64, tpu.core_type = #tpu.core_type<tc>, window_params = [{transform_indices = @transform_0, window_bounds = array<i64: 256, 256>}, {transform_indices = @transform_1, window_bounds = array<i64: 256, 768>}, {transform_indices = @transform_2, window_bounds = array<i64: 256, 768>}]} {
    %c0_i32 = arith.constant 0 : i32
    %0 = arith.cmpi eq, %arg2, %c0_i32 : i32
    %1 = arith.extui %0 : i1 to i32
    %c0_i32_0 = arith.constant 0 : i32
    %2 = arith.cmpi ne, %1, %c0_i32_0 : i32
    scf.if %2 {
      %cst_10 = arith.constant 0.000000e+00 : f32
      %13 = vector.broadcast %cst_10 : f32 to vector<256x768xf32>
      %c0_11 = arith.constant 0 : index
      %c0_12 = arith.constant 0 : index
      %14 = vector.load %arg6[%c0_11, %c0_12] : memref<256x768xf32, #tpu.memory_space<vmem>>, vector<256x768xf32>
      tpu.vector_store %arg6[%c0_11, %c0_12], %13 {strides = array<i32>} : memref<256x768xf32, #tpu.memory_space<vmem>>, vector<256x768xf32>,
    } else {
    }
    %c0 = arith.constant 0 : index
    %c0_1 = arith.constant 0 : index
    %3 = vector.load %arg6[%c0, %c0_1] : memref<256x768xf32, #tpu.memory_space<vmem>>, vector<256x768xf32>
    %c0_2 = arith.constant 0 : index
    %c0_3 = arith.constant 0 : index
    %4 = vector.load %arg3[%c0_2, %c0_3] : memref<256x256xf32, #tpu.memory_space<vmem>>, vector<256x256xf32>
    %5 = arith.truncf %4 : vector<256x256xf32> to vector<256x256xbf16>
    %c0_4 = arith.constant 0 : index
    %c0_5 = arith.constant 0 : index
    %6 = vector.load %arg4[%c0_4, %c0_5] : memref<256x768xbf16, #tpu.memory_space<vmem>>, vector<256x768xbf16>
    %cst = arith.constant dense<0.000000e+00> : vector<256x768xf32>
    %7 = tpu.matmul %5, %6, %cst {dimension_numbers = #tpu.dot_dimension_numbers<[1], [0], [0], [1], [0, 0, 1, 1], [], []>} : vector<256x256xbf16>, vector<256x768xbf16>, vector<256x768xf32> -> vector<256x768xf32>
    %8 = arith.addf %3, %7 : vector<256x768xf32>
    %c0_6 = arith.constant 0 : index
    %c0_7 = arith.constant 0 : index
    %9 = vector.load %arg6[%c0_6, %c0_7] : memref<256x768xf32, #tpu.memory_space<vmem>>, vector<256x768xf32>
    tpu.vector_store %arg6[%c0_6, %c0_7], %8 {strides = array<i32>} : memref<256x768xf32, #tpu.memory_space<vmem>>, vector<256x768xf32>,
    %c0_i32_8 = arith.constant 0 : i32
    %10 = arith.cmpi eq, %arg2, %c0_i32_8 : i32
    %11 = arith.extui %10 : i1 to i32
    %c0_i32_9 = arith.constant 0 : i32
    %12 = arith.cmpi ne, %11, %c0_i32_9 : i32
    scf.if %12 {
      %c0_10 = arith.constant 0 : index
      %c0_11 = arith.constant 0 : index
      %13 = vector.load %arg6[%c0_10, %c0_11] : memref<256x768xf32, #tpu.memory_space<vmem>>, vector<256x768xf32>
      %14 = arith.truncf %13 : vector<256x768xf32> to vector<256x768xbf16>
      %c0_12 = arith.constant 0 : index
      %c0_13 = arith.constant 0 : index
      %15 = vector.load %arg5[%c0_12, %c0_13] : memref<256x768xbf16, #tpu.memory_space<vmem>>, vector<256x768xbf16>
      tpu.vector_store %arg5[%c0_12, %c0_13], %14 {strides = array<i32>} : memref<256x768xbf16, #tpu.memory_space<vmem>>, vector<256x768xbf16>,
    } else {
    }
    return
  }
  func.func @transform_0(%arg0: i32, %arg1: i32, %arg2: i32) -> (i32, i32) {
    %c0_i32 = arith.constant 0 : i32
    return %arg0, %arg2 : i32, i32
  }
  func.func @transform_1(%arg0: i32, %arg1: i32, %arg2: i32) -> (i32, i32) {
    %c0_i32 = arith.constant 0 : i32
    return %arg2, %arg1 : i32, i32
  }
  func.func @transform_2(%arg0: i32, %arg1: i32, %arg2: i32) -> (i32, i32) {
    %c0_i32 = arith.constant 0 : i32
    return %arg0, %arg1 : i32, i32
  }
}

</mosaic_0001>

<llo_original>
// kernel: tpu_custom_call.1
$region0: #{tpu_custom_call.1}
  #allocation0 [shape = 'u32[]', space=smem, size = 0x4, offset = 0x4, fixed_abs, tag = 'smem constant byte address 0x4 - core index']
  #allocation1 [shape = 'u32[144,128]{1,0:T(1,128)}', space=vmem, size = 0x12000, scoped, tag = 'internal scratch']
  #allocation2 [shape = 'f32[256,768]{1,0:T(8,128)}', space=vmem, size = 0xc0000, scoped, tag = 'scratch operand']
  %s0 = inlined_call_operand.hbm [shape: f32[256,256], index: 0, kind: input, shape index: {}]
  %s1 = inlined_call_operand.hbm [shape: bf16[256,768], index: 1, kind: input, shape index: {}]
  %s2 = inlined_call_operand.hbm [shape: bf16[256,768], index: 2, kind: output, shape index: {}]
  %s3 = sld [smem:[#allocation0]]
  $region34: #{tpu_custom_call.1} parent=0
    _
  %s5 = ssub.s32 1, %s3
  %s6 = scalar_select 0, %s5, %s3
  $region1: #{tpu_custom_call.1} parent=0
    #allocation3 [shape = 'u8[262144]{0}', space=vmem, size = 0x40000, scoped, tag = 'input window, operand 0, single buffered']
    #allocation4 [shape = 's32[1]{0}', space=sflag, size = 0x4, scoped, tag = 'scoped memory for tpu_custom_call.1']
    #allocation5 [shape = 's32[1]{0}', space=sflag, size = 0x4, scoped, tag = 'scoped memory for tpu_custom_call.1']
    #allocation6 [shape = 'u8[393216]{0}', space=vmem, size = 0x60000, scoped, tag = 'input window, operand 1, single buffered']
    #allocation7 [shape = 's32[1]{0}', space=sflag, size = 0x4, scoped, tag = 'scoped memory for tpu_custom_call.1']
    #allocation8 [shape = 'u8[393216]{0}', space=vmem, size = 0x60000, scoped, tag = 'output window, operand 0, single buffered']
    %7 = vsyncpa [#allocation4], 0
    %8 = vsyncpa [#allocation7], 0
    %9 = vsyncpa [#allocation5], 0
    // Predicated region
    $region2: #{tpu_custom_call.1} parent=1 // pred_check
      _
    $region3: #{tpu_custom_call.1} parent=1 // pred_check_branch
      %11 = sbr.rel (0) target = $region5
    $region4: #{tpu_custom_call.1} parent=1 // pred_region
      %s13 = ssub.s32 8192, 8192
      %14 = vsyncadd [#allocation4], %s13
      %s15 = sshll.u32 [#allocation3], 4
      %s16 = int_to_ptr.vmem [resolvable:$true] %s15
      %21 = dma.hbm_to_vmem [thread:$0]  %s0, 8192, %s16, [#allocation4], 256, 256, 16
    $region5: #{tpu_custom_call.1} parent=1 // pred_fallthru
      _
    // Predicated region
    $region6: #{tpu_custom_call.1} parent=1 // pred_check
      _
    $region7: #{tpu_custom_call.1} parent=1 // pred_check_branch
      %23 = sbr.rel (0) target = $region9
    $region8: #{tpu_custom_call.1} parent=1 // pred_region
      %s25 = ssub.s32 12288, 12288
      %26 = vsyncadd [#allocation7], %s25
      %s27 = sshll.u32 [#allocation6], 4
      %s28 = int_to_ptr.vmem [resolvable:$true] %s27
      %33 = dma.hbm_to_vmem [thread:$0]  %s1, 12288, %s28, [#allocation7], 384, 384, 24
    $region9: #{tpu_custom_call.1} parent=1 // pred_fallthru
      _
    // Predicated region
    $region10: #{tpu_custom_call.1} parent=1 // pred_check
      _
    $region11: #{tpu_custom_call.1} parent=1 // pred_check_branch
      %35 = sbr.rel (0) target = $region13
    $region12: #{tpu_custom_call.1} parent=1 // pred_region
      %36 = dma.done [#allocation4], 8192
    $region13: #{tpu_custom_call.1} parent=1 // pred_fallthru
      _
    // Predicated region
    $region14: #{tpu_custom_call.1} parent=1 // pred_check
      _
    $region15: #{tpu_custom_call.1} parent=1 // pred_check_branch
      %38 = sbr.rel (0) target = $region17
    $region16: #{tpu_custom_call.1} parent=1 // pred_region
      %39 = dma.done [#allocation7], 12288
    $region17: #{tpu_custom_call.1} parent=1 // pred_fallthru
      _
    %p40 = scmp.eq.s32.totalorder 0, 0
    // Predicated region
    $region18: #{tpu_custom_call.1} parent=1 // pred_check
      %p41 = pneg %p40
    $region19: #{tpu_custom_call.1} parent=1 // pred_check_branch
      %43 = sbr.rel (%p41) target = $region21
    $region20: #{tpu_custom_call.1} parent=1 // pred_region
      %44 = vst [vmem:[#allocation2] sm:$0xff] 0.0
      %45 = vst [vmem:[#allocation2 + $0x8] sm:$0xff] 0.0
      %46 = vst [vmem:[#allocation2 + $0x10] sm:$0xff] 0.0
      %47 = vst [vmem:[#allocation2 + $0x18] sm:$0xff] 0.0
      %48 = vst [vmem:[#allocation2 + $0x20] sm:$0xff] 0.0
      %49 = vst [vmem:[#allocation2 + $0x28] sm:$0xff] 0.0
      %50 = vst [vmem:[#allocation2 + $0x30] sm:$0xff] 0.0
      %51 = vst [vmem:[#allocation2 + $0x38] sm:$0xff] 0.0
      %52 = vst [vmem:[#allocation2 + $0x40] sm:$0xff] 0.0
      %53 = vst [vmem:[#allocation2 + $0x48] sm:$0xff] 0.0
      %54 = vst [vmem:[#allocation2 + $0x50] sm:$0xff] 0.0
      %55 = vst [vmem:[#allocation2 + $0x58] sm:$0xff] 0.0
      %56 = vst [vmem:[#allocation2 + $0x60] sm:$0xff] 0.0
      %57 = vst [vmem:[#allocation2 + $0x68] sm:$0xff] 0.0
      %58 = vst [vmem:[#allocation2 + $0x70] sm:$0xff] 0.0
      %59 = vst [vmem:[#allocation2 + $0x78] sm:$0xff] 0.0
      %60 = vst [vmem:[#allocation2 + $0x80] sm:$0xff] 0.0
      %61 = vst [vmem:[#allocation2 + $0x88] sm:$0xff] 0.0
      %62 = vst [vmem:[#allocation2 + $0x90] sm:$0xff] 0.0
      %63 = vst [vmem:[#allocation2 + $0x98] sm:$0xff] 0.0
      %64 = vst [vmem:[#allocation2 + $0xa0] sm:$0xff] 0.0
      %65 = vst [vmem:[#allocation2 + $0xa8] sm:$0xff] 0.0
      %66 = vst [vmem:[#allocation2 + $0xb0] sm:$0xff] 0.0
      %67 = vst [vmem:[#allocation2 + $0xb8] sm:$0xff] 0.0
      %68 = vst [vmem:[#allocation2 + $0xc0] sm:$0xff] 0.0
      %69 = vst [vmem:[#allocation2 + $0xc8] sm:$0xff] 0.0
      %70 = vst [vmem:[#allocation2 + $0xd0] sm:$0xff] 0.0
      %71 = vst [vmem:[#allocation2 + $0xd8] sm:$0xff] 0.0
      %72 = vst [vmem:[#allocation2 + $0xe0] sm:$0xff] 0.0
      %73 = vst [vmem:[#allocation2 + $0xe8] sm:$0xff] 0.0
      %74 = vst [vmem:[#allocation2 + $0xf0] sm:$0xff] 0.0
      %75 = vst [vmem:[#allocation2 + $0xf8] sm:$0xff] 0.0
      %76 = vst [vmem:[#allocation2 + $0x100] sm:$0xff] 0.0
      %77 = vst [vmem:[#allocation2 + $0x108] sm:$0xff] 0.0
      %78 = vst [vmem:[#allocation2 + $0x110] sm:$0xff] 0.0
      %79 = vst [vmem:[#allocation2 + $0x118] sm:$0xff] 0.0
      %80 = vst [vmem:[#allocation2 + $0x120] sm:$0xff] 0.0
      %81 = vst [vmem:[#allocation2 + $0x128] sm:$0xff] 0.0
      %82 = vst [vmem:[#allocation2 + $0x130] sm:$0xff] 0.0
      %83 = vst [vmem:[#allocation2 + $0x138] sm:$0xff] 0.0
      %84 = vst [vmem:[#allocation2 + $0x140] sm:$0xff] 0.0
      %85 = vst [vmem:[#allocation2 + $0x148] sm:$0xff] 0.0
      %86 = vst [vmem:[#allocation2 + $0x150] sm:$0xff] 0.0
      %87 = vst [vmem:[#allocation2 + $0x158] sm:$0xff] 0.0
      %88 = vst [vmem:[#allocation2 + $0x160] sm:$0xff] 0.0
      %89 = vst [vmem:[#allocation2 + $0x168] sm:$0xff] 0.0
      %90 = vst [vmem:[#allocation2 + $0x170] sm:$0xff] 0.0
      %91 = vst [vmem:[#allocation2 + $0x178] sm:$0xff] 0.0
      %92 = vst [vmem:[#allocation2 + $0x180] sm:$0xff] 0.0
      %93 = vst [vmem:[#allocation2 + $0x188] sm:$0xff] 0.0
      %94 = vst [vmem:[#allocation2 + $0x190] sm:$0xff] 0.0
      %95 = vst [vmem:[#allocation2 + $0x198] sm:$0xff] 0.0
      %96 = vst [vmem:[#allocation2 + $0x1a0] sm:$0xff] 0.0
      %97 = vst [vmem:[#allocation2 + $0x1a8] sm:$0xff] 0.0
      %98 = vst [vmem:[#allocation2 + $0x1b0] sm:$0xff] 0.0
      %99 = vst [vmem:[#allocation2 + $0x1b8] sm:$0xff] 0.0
      %100 = vst [vmem:[#allocation2 + $0x1c0] sm:$0xff] 0.0
      %101 = vst [vmem:[#allocation2 + $0x1c8] sm:$0xff] 0.0
      %102 = vst [vmem:[#allocation2 + $0x1d0] sm:$0xff] 0.0
      %103 = vst [vmem:[#allocation2 + $0x1d8] sm:$0xff] 0.0
      %104 = vst [vmem:[#allocation2 + $0x1e0] sm:$0xff] 0.0
      %105 = vst [vmem:[#allocation2 + $0x1e8] sm:$0xff] 0.0
      %106 = vst [vmem:[#allocation2 + $0x1f0] sm:$0xff] 0.0
      %107 = vst [vmem:[#allocation2 + $0x1f8] sm:$0xff] 0.0
      %108 = vst [vmem:[#allocation2 + $0x200] sm:$0xff] 0.0
      %109 = vst [vmem:[#allocation2 + $0x208] sm:$0xff] 0.0
      %110 = vst [vmem:[#allocation2 + $0x210] sm:$0xff] 0.0
      %111 = vst [vmem:[#allocation2 + $0x218] sm:$0xff] 0.0
      %112 = vst [vmem:[#allocation2 + $0x220] sm:$0xff] 0.0
      %113 = vst [vmem:[#allocation2 + $0x228] sm:$0xff] 0.0
      %114 = vst [vmem:[#allocation2 + $0x230] sm:$0xff] 0.0
      %115 = vst [vmem:[#allocation2 + $0x238] sm:$0xff] 0.0
      %116 = vst [vmem:[#allocation2 + $0x240] sm:$0xff] 0.0
      %117 = vst [vmem:[#allocation2 + $0x248] sm:$0xff] 0.0
      %118 = vst [vmem:[#allocation2 + $0x250] sm:$0xff] 0.0
      %119 = vst [vmem:[#allocation2 + $0x258] sm:$0xff] 0.0
      %120 = vst [vmem:[#allocation2 + $0x260] sm:$0xff] 0.0
      %121 = vst [vmem:[#allocation2 + $0x268] sm:$0xff] 0.0
      %122 = vst [vmem:[#allocation2 + $0x270] sm:$0xff] 0.0
      %123 = vst [vmem:[#allocation2 + $0x278] sm:$0xff] 0.0
      %124 = vst [vmem:[#allocation2 + $0x280] sm:$0xff] 0.0
      %125 = vst [vmem:[#allocation2 + $0x288] sm:$0xff] 0.0
      %126 = vst [vmem:[#allocation2 + $0x290] sm:$0xff] 0.0
      %127 = vst [vmem:[#allocation2 + $0x298] sm:$0xff] 0.0
      %128 = vst [vmem:[#allocation2 + $0x2a0] sm:$0xff] 0.0
      %129 = vst [vmem:[#allocation2 + $0x2a8] sm:$0xff] 0.0
      %130 = vst [vmem:[#allocation2 + $0x2b0] sm:$0xff] 0.0
      %131 = vst [vmem:[#allocation2 + $0x2b8] sm:$0xff] 0.0
      %132 = vst [vmem:[#allocation2 + $0x2c0] sm:$0xff] 0.0
      %133 = vst [vmem:[#allocation2 + $0x2c8] sm:$0xff] 0.0
      %134 = vst [vmem:[#allocation2 + $0x2d0] sm:$0xff] 0.0
      %135 = vst [vmem:[#allocation2 + $0x2d8] sm:$0xff] 0.0
      %136 = vst [vmem:[#allocation2 + $0x2e0] sm:$0xff] 0.0
      %137 = vst [vmem:[#allocation2 + $0x2e8] sm:$0xff] 0.0
      %138 = vst [vmem:[#allocation2 + $0x2f0] sm:$0xff] 0.0
      %139 = vst [vmem:[#allocation2 + $0x2f8] sm:$0xff] 0.0
      %140 = vst [vmem:[#allocation2 + $0x300] sm:$0xff] 0.0
      %141 = vst [vmem:[#allocation2 + $0x308] sm:$0xff] 0.0
      %142 = vst [vmem:[#allocation2 + $0x310] sm:$0xff] 0.0
      %143 = vst [vmem:[#allocation2 + $0x318] sm:$0xff] 0.0
      %144 = vst [vmem:[#allocation2 + $0x320] sm:$0xff] 0.0
      %145 = vst [vmem:[#allocation2 + $0x328] sm:$0xff] 0.0
      %146 = vst [vmem:[#allocation2 + $0x330] sm:$0xff] 0.0
      %147 = vst [vmem:[#allocation2 + $0x338] sm:$0xff] 0.0
      %148 = vst [vmem:[#allocation2 + $0x340] sm:$0xff] 0.0
      %149 = vst [vmem:[#allocation2 + $0x348] sm:$0xff] 0.0
      %150 = vst [vmem:[#allocation2 + $0x350] sm:$0xff] 0.0
      %151 = vst [vmem:[#allocation2 + $0x358] sm:$0xff] 0.0
      %152 = vst [vmem:[#allocation2 + $0x360] sm:$0xff] 0.0
      %153 = vst [vmem:[#allocation2 + $0x368] sm:$0xff] 0.0
      %154 = vst [vmem:[#allocation2 + $0x370] sm:$0xff] 0.0
      %155 = vst [vmem:[#allocation2 + $0x378] sm:$0xff] 0.0
      %156 = vst [vmem:[#allocation2 + $0x380] sm:$0xff] 0.0
      %157 = vst [vmem:[#allocation2 + $0x388] sm:$0xff] 0.0
      %158 = vst [vmem:[#allocation2 + $0x390] sm:$0xff] 0.0
      %159 = vst [vmem:[#allocation2 + $0x398] sm:$0xff] 0.0
      %160 = vst [vmem:[#allocation2 + $0x3a0] sm:$0xff] 0.0
      %161 = vst [vmem:[#allocation2 + $0x3a8] sm:$0xff] 0.0
      %162 = vst [vmem:[#allocation2 + $0x3b0] sm:$0xff] 0.0
      %163 = vst [vmem:[#allocation2 + $0x3b8] sm:$0xff] 0.0
      %164 = vst [vmem:[#allocation2 + $0x3c0] sm:$0xff] 0.0
      %165 = vst [vmem:[#allocation2 + $0x3c8] sm:$0xff] 0.0
      %166 = vst [vmem:[#allocation2 + $0x3d0] sm:$0xff] 0.0
      %167 = vst [vmem:[#allocation2 + $0x3d8] sm:$0xff] 0.0
      %168 = vst [vmem:[#allocation2 + $0x3e0] sm:$0xff] 0.0
      %169 = vst [vmem:[#allocation2 + $0x3e8] sm:$0xff] 0.0
      %170 = vst [vmem:[#allocation2 + $0x3f0] sm:$0xff] 0.0
      %171 = vst [vmem:[#allocation2 + $0x3f8] sm:$0xff] 0.0
      %172 = vst [vmem:[#allocation2 + $0x400] sm:$0xff] 0.0
      %173 = vst [vmem:[#allocation2 + $0x408] sm:$0xff] 0.0
      %174 = vst [vmem:[#allocation2 + $0x410] sm:$0xff] 0.0
      %175 = vst [vmem:[#allocation2 + $0x418] sm:$0xff] 0.0
      %176 = vst [vmem:[#allocation2 + $0x420] sm:$0xff] 0.0
      %177 = vst [vmem:[#allocation2 + $0x428] sm:$0xff] 0.0
      %178 = vst [vmem:[#allocation2 + $0x430] sm:$0xff] 0.0
      %179 = vst [vmem:[#allocation2 + $0x438] sm:$0xff] 0.0
      %180 = vst [vmem:[#allocation2 + $0x440] sm:$0xff] 0.0
      %181 = vst [vmem:[#allocation2 + $0x448] sm:$0xff] 0.0
      %182 = vst [vmem:[#allocation2 + $0x450] sm:$0xff] 0.0
      %183 = vst [vmem:[#allocation2 + $0x458] sm:$0xff] 0.0
      %184 = vst [vmem:[#allocation2 + $0x460] sm:$0xff] 0.0
      %185 = vst [vmem:[#allocation2 + $0x468] sm:$0xff] 0.0
      %186 = vst [vmem:[#allocation2 + $0x470] sm:$0xff] 0.0
      %187 = vst [vmem:[#allocation2 + $0x478] sm:$0xff] 0.0
      %188 = vst [vmem:[#allocation2 + $0x480] sm:$0xff] 0.0
      %189 = vst [vmem:[#allocation2 + $0x488] sm:$0xff] 0.0
      %190 = vst [vmem:[#allocation2 + $0x490] sm:$0xff] 0.0
      %191 = vst [vmem:[#allocation2 + $0x498] sm:$0xff] 0.0
      %192 = vst [vmem:[#allocation2 + $0x4a0] sm:$0xff] 0.0
      %193 = vst [vmem:[#allocation2 + $0x4a8] sm:$0xff] 0.0
      %194 = vst [vmem:[#allocation2 + $0x4b0] sm:$0xff] 0.0
      %195 = vst [vmem:[#allocation2 + $0x4b8] sm:$0xff] 0.0
      %196 = vst [vmem:[#allocation2 + $0x4c0] sm:$0xff] 0.0
      %197 = vst [vmem:[#allocation2 + $0x4c8] sm:$0xff] 0.0
      %198 = vst [vmem:[#allocation2 + $0x4d0] sm:$0xff] 0.0
      %199 = vst [vmem:[#allocation2 + $0x4d8] sm:$0xff] 0.0
      %200 = vst [vmem:[#allocation2 + $0x4e0] sm:$0xff] 0.0
      %201 = vst [vmem:[#allocation2 + $0x4e8] sm:$0xff] 0.0
      %202 = vst [vmem:[#allocation2 + $0x4f0] sm:$0xff] 0.0
      %203 = vst [vmem:[#allocation2 + $0x4f8] sm:$0xff] 0.0
      %204 = vst [vmem:[#allocation2 + $0x500] sm:$0xff] 0.0
      %205 = vst [vmem:[#allocation2 + $0x508] sm:$0xff] 0.0
      %206 = vst [vmem:[#allocation2 + $0x510] sm:$0xff] 0.0
      %207 = vst [vmem:[#allocation2 + $0x518] sm:$0xff] 0.0
      %208 = vst [vmem:[#allocation2 + $0x520] sm:$0xff] 0.0
      %209 = vst [vmem:[#allocation2 + $0x528] sm:$0xff] 0.0
      %210 = vst [vmem:[#allocation2 + $0x530] sm:$0xff] 0.0
      %211 = vst [vmem:[#allocation2 + $0x538] sm:$0xff] 0.0
      %212 = vst [vmem:[#allocation2 + $0x540] sm:$0xff] 0.0
      %213 = vst [vmem:[#allocation2 + $0x548] sm:$0xff] 0.0
      %214 = vst [vmem:[#allocation2 + $0x550] sm:$0xff] 0.0
      %215 = vst [vmem:[#allocation2 + $0x558] sm:$0xff] 0.0
      %216 = vst [vmem:[#allocation2 + $0x560] sm:$0xff] 0.0
      %217 = vst [vmem:[#allocation2 + $0x568] sm:$0xff] 0.0
      %218 = vst [vmem:[#allocation2 + $0x570] sm:$0xff] 0.0
      %219 = vst [vmem:[#allocation2 + $0x578] sm:$0xff] 0.0
      %220 = vst [vmem:[#allocation2 + $0x580] sm:$0xff] 0.0
      %221 = vst [vmem:[#allocation2 + $0x588] sm:$0xff] 0.0
      %222 = vst [vmem:[#allocation2 + $0x590] sm:$0xff] 0.0
      %223 = vst [vmem:[#allocation2 + $0x598] sm:$0xff] 0.0
      %224 = vst [vmem:[#allocation2 + $0x5a0] sm:$0xff] 0.0
      %225 = vst [vmem:[#allocation2 + $0x5a8] sm:$0xff] 0.0
      %226 = vst [vmem:[#allocation2 + $0x5b0] sm:$0xff] 0.0
      %227 = vst [vmem:[#allocation2 + $0x5b8] sm:$0xff] 0.0
      %228 = vst [vmem:[#allocation2 + $0x5c0] sm:$0xff] 0.0
      %229 = vst [vmem:[#allocation2 + $0x5c8] sm:$0xff] 0.0
      %230 = vst [vmem:[#allocation2 + $0x5d0] sm:$0xff] 0.0
      %231 = vst [vmem:[#allocation2 + $0x5d8] sm:$0xff] 0.0
      %232 = vst [vmem:[#allocation2 + $0x5e0] sm:$0xff] 0.0
      %233 = vst [vmem:[#allocation2 + $0x5e8] sm:$0xff] 0.0
      %234 = vst [vmem:[#allocation2 + $0x5f0] sm:$0xff] 0.0
      %235 = vst [vmem:[#allocation2 + $0x5f8] sm:$0xff] 0.0
    $region21: #{tpu_custom_call.1} parent=1 // pred_fallthru
      _
    %v236 = vld [vmem:[#allocation2] sm:$0xff]
    %v237 = vld [vmem:[#allocation2 + $0x8] sm:$0xff]
    %v238 = vld [vmem:[#allocation2 + $0x10] sm:$0xff]
    %v239 = vld [vmem:[#allocation2 + $0x18] sm:$0xff]
    %v240 = vld [vmem:[#allocation2 + $0x20] sm:$0xff]
    %v241 = vld [vmem:[#allocation2 + $0x28] sm:$0xff]
    %v242 = vld [vmem:[#allocation2 + $0x30] sm:$0xff]
    %v243 = vld [vmem:[#allocation2 + $0x38] sm:$0xff]
    %v244 = vld [vmem:[#allocation2 + $0x40] sm:$0xff]
    %v245 = vld [vmem:[#allocation2 + $0x48] sm:$0xff]
    %v246 = vld [vmem:[#allocation2 + $0x50] sm:$0xff]
    %v247 = vld [vmem:[#allocation2 + $0x58] sm:$0xff]
    %v248 = vld [vmem:[#allocation2 + $0x60] sm:$0xff]
    %v249 = vld [vmem:[#allocation2 + $0x68] sm:$0xff]
    %v250 = vld [vmem:[#allocation2 + $0x70] sm:$0xff]
    %v251 = vld [vmem:[#allocation2 + $0x78] sm:$0xff]
    %v252 = vld [vmem:[#allocation2 + $0x80] sm:$0xff]
    %v253 = vld [vmem:[#allocation2 + $0x88] sm:$0xff]
    %v254 = vld [vmem:[#allocation2 + $0x90] sm:$0xff]
    %v255 = vld [vmem:[#allocation2 + $0x98] sm:$0xff]
    %v256 = vld [vmem:[#allocation2 + $0xa0] sm:$0xff]
    %v257 = vld [vmem:[#allocation2 + $0xa8] sm:$0xff]
    %v258 = vld [vmem:[#allocation2 + $0xb0] sm:$0xff]
    %v259 = vld [vmem:[#allocation2 + $0xb8] sm:$0xff]
    %v260 = vld [vmem:[#allocation2 + $0xc0] sm:$0xff]
    %v261 = vld [vmem:[#allocation2 + $0xc8] sm:$0xff]
    %v262 = vld [vmem:[#allocation2 + $0xd0] sm:$0xff]
    %v263 = vld [vmem:[#allocation2 + $0xd8] sm:$0xff]
    %v264 = vld [vmem:[#allocation2 + $0xe0] sm:$0xff]
    %v265 = vld [vmem:[#allocation2 + $0xe8] sm:$0xff]
    %v266 = vld [vmem:[#allocation2 + $0xf0] sm:$0xff]
    %v267 = vld [vmem:[#allocation2 + $0xf8] sm:$0xff]
    %v268 = vld [vmem:[#allocation2 + $0x100] sm:$0xff]
    %v269 = vld [vmem:[#allocation2 + $0x108] sm:$0xff]
    %v270 = vld [vmem:[#allocation2 + $0x110] sm:$0xff]
    %v271 = vld [vmem:[#allocation2 + $0x118] sm:$0xff]
    %v272 = vld [vmem:[#allocation2 + $0x120] sm:$0xff]
    %v273 = vld [vmem:[#allocation2 + $0x128] sm:$0xff]
    %v274 = vld [vmem:[#allocation2 + $0x130] sm:$0xff]
    %v275 = vld [vmem:[#allocation2 + $0x138] sm:$0xff]
    %v276 = vld [vmem:[#allocation2 + $0x140] sm:$0xff]
    %v277 = vld [vmem:[#allocation2 + $0x148] sm:$0xff]
    %v278 = vld [vmem:[#allocation2 + $0x150] sm:$0xff]
    %v279 = vld [vmem:[#allocation2 + $0x158] sm:$0xff]
    %v280 = vld [vmem:[#allocation2 + $0x160] sm:$0xff]
    %v281 = vld [vmem:[#allocation2 + $0x168] sm:$0xff]
    %v282 = vld [vmem:[#allocation2 + $0x170] sm:$0xff]
    %v283 = vld [vmem:[#allocation2 + $0x178] sm:$0xff]
    %v284 = vld [vmem:[#allocation2 + $0x180] sm:$0xff]
    %v285 = vld [vmem:[#allocation2 + $0x188] sm:$0xff]
    %v286 = vld [vmem:[#allocation2 + $0x190] sm:$0xff]
    %v287 = vld [vmem:[#allocation2 + $0x198] sm:$0xff]
    %v288 = vld [vmem:[#allocation2 + $0x1a0] sm:$0xff]
    %v289 = vld [vmem:[#allocation2 + $0x1a8] sm:$0xff]
    %v290 = vld [vmem:[#allocation2 + $0x1b0] sm:$0xff]
    %v291 = vld [vmem:[#allocation2 + $0x1b8] sm:$0xff]
    %v292 = vld [vmem:[#allocation2 + $0x1c0] sm:$0xff]
    %v293 = vld [vmem:[#allocation2 + $0x1c8] sm:$0xff]
    %v294 = vld [vmem:[#allocation2 + $0x1d0] sm:$0xff]
    %v295 = vld [vmem:[#allocation2 + $0x1d8] sm:$0xff]
    %v296 = vld [vmem:[#allocation2 + $0x1e0] sm:$0xff]
    %v297 = vld [vmem:[#allocation2 + $0x1e8] sm:$0xff]
    %v298 = vld [vmem:[#allocation2 + $0x1f0] sm:$0xff]
    %v299 = vld [vmem:[#allocation2 + $0x1f8] sm:$0xff]
    %v300 = vld [vmem:[#allocation2 + $0x200] sm:$0xff]
    %v301 = vld [vmem:[#allocation2 + $0x208] sm:$0xff]
    %v302 = vld [vmem:[#allocation2 + $0x210] sm:$0xff]
    %v303 = vld [vmem:[#allocation2 + $0x218] sm:$0xff]
    %v304 = vld [vmem:[#allocation2 + $0x220] sm:$0xff]
    %v305 = vld [vmem:[#allocation2 + $0x228] sm:$0xff]
    %v306 = vld [vmem:[#allocation2 + $0x230] sm:$0xff]
    %v307 = vld [vmem:[#allocation2 + $0x238] sm:$0xff]
    %v308 = vld [vmem:[#allocation2 + $0x240] sm:$0xff]
    %v309 = vld [vmem:[#allocation2 + $0x248] sm:$0xff]
    %v310 = vld [vmem:[#allocation2 + $0x250] sm:$0xff]
    %v311 = vld [vmem:[#allocation2 + $0x258] sm:$0xff]
    %v312 = vld [vmem:[#allocation2 + $0x260] sm:$0xff]
    %v313 = vld [vmem:[#allocation2 + $0x268] sm:$0xff]
    %v314 = vld [vmem:[#allocation2 + $0x270] sm:$0xff]
    %v315 = vld [vmem:[#allocation2 + $0x278] sm:$0xff]
    %v316 = vld [vmem:[#allocation2 + $0x280] sm:$0xff]
    %v317 = vld [vmem:[#allocation2 + $0x288] sm:$0xff]
    %v318 = vld [vmem:[#allocation2 + $0x290] sm:$0xff]
    %v319 = vld [vmem:[#allocation2 + $0x298] sm:$0xff]
    %v320 = vld [vmem:[#allocation2 + $0x2a0] sm:$0xff]
    %v321 = vld [vmem:[#allocation2 + $0x2a8] sm:$0xff]
    %v322 = vld [vmem:[#allocation2 + $0x2b0] sm:$0xff]
    %v323 = vld [vmem:[#allocation2 + $0x2b8] sm:$0xff]
    %v324 = vld [vmem:[#allocation2 + $0x2c0] sm:$0xff]
    %v325 = vld [vmem:[#allocation2 + $0x2c8] sm:$0xff]
    %v326 = vld [vmem:[#allocation2 + $0x2d0] sm:$0xff]
    %v327 = vld [vmem:[#allocation2 + $0x2d8] sm:$0xff]
    %v328 = vld [vmem:[#allocation2 + $0x2e0] sm:$0xff]
    %v329 = vld [vmem:[#allocation2 + $0x2e8] sm:$0xff]
    %v330 = vld [vmem:[#allocation2 + $0x2f0] sm:$0xff]
    %v331 = vld [vmem:[#allocation2 + $0x2f8] sm:$0xff]
    %v332 = vld [vmem:[#allocation2 + $0x300] sm:$0xff]
    %v333 = vld [vmem:[#allocation2 + $0x308] sm:$0xff]
    %v334 = vld [vmem:[#allocation2 + $0x310] sm:$0xff]
    %v335 = vld [vmem:[#allocation2 + $0x318] sm:$0xff]
    %v336 = vld [vmem:[#allocation2 + $0x320] sm:$0xff]
    %v337 = vld [vmem:[#allocation2 + $0x328] sm:$0xff]
    %v338 = vld [vmem:[#allocation2 + $0x330] sm:$0xff]
    %v339 = vld [vmem:[#allocation2 + $0x338] sm:$0xff]
    %v340 = vld [vmem:[#allocation2 + $0x340] sm:$0xff]
    %v341 = vld [vmem:[#allocation2 + $0x348] sm:$0xff]
    %v342 = vld [vmem:[#allocation2 + $0x350] sm:$0xff]
    %v343 = vld [vmem:[#allocation2 + $0x358] sm:$0xff]
    %v344 = vld [vmem:[#allocation2 + $0x360] sm:$0xff]
    %v345 = vld [vmem:[#allocation2 + $0x368] sm:$0xff]
    %v346 = vld [vmem:[#allocation2 + $0x370] sm:$0xff]
    %v347 = vld [vmem:[#allocation2 + $0x378] sm:$0xff]
    %v348 = vld [vmem:[#allocation2 + $0x380] sm:$0xff]
    %v349 = vld [vmem:[#allocation2 + $0x388] sm:$0xff]
    %v350 = vld [vmem:[#allocation2 + $0x390] sm:$0xff]
    %v351 = vld [vmem:[#allocation2 + $0x398] sm:$0xff]
    %v352 = vld [vmem:[#allocation2 + $0x3a0] sm:$0xff]
    %v353 = vld [vmem:[#allocation2 + $0x3a8] sm:$0xff]
    %v354 = vld [vmem:[#allocation2 + $0x3b0] sm:$0xff]
    %v355 = vld [vmem:[#allocation2 + $0x3b8] sm:$0xff]
    %v356 = vld [vmem:[#allocation2 + $0x3c0] sm:$0xff]
    %v357 = vld [vmem:[#allocation2 + $0x3c8] sm:$0xff]
    %v358 = vld [vmem:[#allocation2 + $0x3d0] sm:$0xff]
    %v359 = vld [vmem:[#allocation2 + $0x3d8] sm:$0xff]
    %v360 = vld [vmem:[#allocation2 + $0x3e0] sm:$0xff]
    %v361 = vld [vmem:[#allocation2 + $0x3e8] sm:$0xff]
    %v362 = vld [vmem:[#allocation2 + $0x3f0] sm:$0xff]
    %v363 = vld [vmem:[#allocation2 + $0x3f8] sm:$0xff]
    %v364 = vld [vmem:[#allocation2 + $0x400] sm:$0xff]
    %v365 = vld [vmem:[#allocation2 + $0x408] sm:$0xff]
    %v366 = vld [vmem:[#allocation2 + $0x410] sm:$0xff]
    %v367 = vld [vmem:[#allocation2 + $0x418] sm:$0xff]
    %v368 = vld [vmem:[#allocation2 + $0x420] sm:$0xff]
    %v369 = vld [vmem:[#allocation2 + $0x428] sm:$0xff]
    %v370 = vld [vmem:[#allocation2 + $0x430] sm:$0xff]
    %v371 = vld [vmem:[#allocation2 + $0x438] sm:$0xff]
    %v372 = vld [vmem:[#allocation2 + $0x440] sm:$0xff]
    %v373 = vld [vmem:[#allocation2 + $0x448] sm:$0xff]
    %v374 = vld [vmem:[#allocation2 + $0x450] sm:$0xff]
    %v375 = vld [vmem:[#allocation2 + $0x458] sm:$0xff]
    %v376 = vld [vmem:[#allocation2 + $0x460] sm:$0xff]
    %v377 = vld [vmem:[#allocation2 + $0x468] sm:$0xff]
    %v378 = vld [vmem:[#allocation2 + $0x470] sm:$0xff]
    %v379 = vld [vmem:[#allocation2 + $0x478] sm:$0xff]
    %v380 = vld [vmem:[#allocation2 + $0x480] sm:$0xff]
    %v381 = vld [vmem:[#allocation2 + $0x488] sm:$0xff]
    %v382 = vld [vmem:[#allocation2 + $0x490] sm:$0xff]
    %v383 = vld [vmem:[#allocation2 + $0x498] sm:$0xff]
    %v384 = vld [vmem:[#allocation2 + $0x4a0] sm:$0xff]
    %v385 = vld [vmem:[#allocation2 + $0x4a8] sm:$0xff]
    %v386 = vld [vmem:[#allocation2 + $0x4b0] sm:$0xff]
    %v387 = vld [vmem:[#allocation2 + $0x4b8] sm:$0xff]
    %v388 = vld [vmem:[#allocation2 + $0x4c0] sm:$0xff]
    %v389 = vld [vmem:[#allocation2 + $0x4c8] sm:$0xff]
    %v390 = vld [vmem:[#allocation2 + $0x4d0] sm:$0xff]
    %v391 = vld [vmem:[#allocation2 + $0x4d8] sm:$0xff]
    %v392 = vld [vmem:[#allocation2 + $0x4e0] sm:$0xff]
    %v393 = vld [vmem:[#allocation2 + $0x4e8] sm:$0xff]
    %v394 = vld [vmem:[#allocation2 + $0x4f0] sm:$0xff]
    %v395 = vld [vmem:[#allocation2 + $0x4f8] sm:$0xff]
    %v396 = vld [vmem:[#allocation2 + $0x500] sm:$0xff]
    %v397 = vld [vmem:[#allocation2 + $0x508] sm:$0xff]
    %v398 = vld [vmem:[#allocation2 + $0x510] sm:$0xff]
    %v399 = vld [vmem:[#allocation2 + $0x518] sm:$0xff]
    %v400 = vld [vmem:[#allocation2 + $0x520] sm:$0xff]
    %v401 = vld [vmem:[#allocation2 + $0x528] sm:$0xff]
    %v402 = vld [vmem:[#allocation2 + $0x530] sm:$0xff]
    %v403 = vld [vmem:[#allocation2 + $0x538] sm:$0xff]
    %v404 = vld [vmem:[#allocation2 + $0x540] sm:$0xff]
    %v405 = vld [vmem:[#allocation2 + $0x548] sm:$0xff]
    %v406 = vld [vmem:[#allocation2 + $0x550] sm:$0xff]
    %v407 = vld [vmem:[#allocation2 + $0x558] sm:$0xff]
    %v408 = vld [vmem:[#allocation2 + $0x560] sm:$0xff]
    %v409 = vld [vmem:[#allocation2 + $0x568] sm:$0xff]
    %v410 = vld [vmem:[#allocation2 + $0x570] sm:$0xff]
    %v411 = vld [vmem:[#allocation2 + $0x578] sm:$0xff]
    %v412 = vld [vmem:[#allocation2 + $0x580] sm:$0xff]
    %v413 = vld [vmem:[#allocation2 + $0x588] sm:$0xff]
    %v414 = vld [vmem:[#allocation2 + $0x590] sm:$0xff]
    %v415 = vld [vmem:[#allocation2 + $0x598] sm:$0xff]
    %v416 = vld [vmem:[#allocation2 + $0x5a0] sm:$0xff]
    %v417 = vld [vmem:[#allocation2 + $0x5a8] sm:$0xff]
    %v418 = vld [vmem:[#allocation2 + $0x5b0] sm:$0xff]
    %v419 = vld [vmem:[#allocation2 + $0x5b8] sm:$0xff]
    %v420 = vld [vmem:[#allocation2 + $0x5c0] sm:$0xff]
    %v421 = vld [vmem:[#allocation2 + $0x5c8] sm:$0xff]
    %v422 = vld [vmem:[#allocation2 + $0x5d0] sm:$0xff]
    %v423 = vld [vmem:[#allocation2 + $0x5d8] sm:$0xff]
    %v424 = vld [vmem:[#allocation2 + $0x5e0] sm:$0xff]
    %v425 = vld [vmem:[#allocation2 + $0x5e8] sm:$0xff]
    %v426 = vld [vmem:[#allocation2 + $0x5f0] sm:$0xff]
    %v427 = vld [vmem:[#allocation2 + $0x5f8] sm:$0xff]
    %v428 = vld [vmem:[#allocation3] sm:$0xff]
    %v429 = vld [vmem:[#allocation3 + $0x8] sm:$0xff]
    %v430 = vld [vmem:[#allocation3 + $0x10] sm:$0xff]
    %v431 = vld [vmem:[#allocation3 + $0x18] sm:$0xff]
    %v432 = vld [vmem:[#allocation3 + $0x20] sm:$0xff]
    %v433 = vld [vmem:[#allocation3 + $0x28] sm:$0xff]
    %v434 = vld [vmem:[#allocation3 + $0x30] sm:$0xff]
    %v435 = vld [vmem:[#allocation3 + $0x38] sm:$0xff]
    %v436 = vld [vmem:[#allocation3 + $0x40] sm:$0xff]
    %v437 = vld [vmem:[#allocation3 + $0x48] sm:$0xff]
    %v438 = vld [vmem:[#allocation3 + $0x50] sm:$0xff]
    %v439 = vld [vmem:[#allocation3 + $0x58] sm:$0xff]
    %v440 = vld [vmem:[#allocation3 + $0x60] sm:$0xff]
    %v441 = vld [vmem:[#allocation3 + $0x68] sm:$0xff]
    %v442 = vld [vmem:[#allocation3 + $0x70] sm:$0xff]
    %v443 = vld [vmem:[#allocation3 + $0x78] sm:$0xff]
    %v444 = vld [vmem:[#allocation3 + $0x80] sm:$0xff]
    %v445 = vld [vmem:[#allocation3 + $0x88] sm:$0xff]
    %v446 = vld [vmem:[#allocation3 + $0x90] sm:$0xff]
    %v447 = vld [vmem:[#allocation3 + $0x98] sm:$0xff]
    %v448 = vld [vmem:[#allocation3 + $0xa0] sm:$0xff]
    %v449 = vld [vmem:[#allocation3 + $0xa8] sm:$0xff]
    %v450 = vld [vmem:[#allocation3 + $0xb0] sm:$0xff]
    %v451 = vld [vmem:[#allocation3 + $0xb8] sm:$0xff]
    %v452 = vld [vmem:[#allocation3 + $0xc0] sm:$0xff]
    %v453 = vld [vmem:[#allocation3 + $0xc8] sm:$0xff]
    %v454 = vld [vmem:[#allocation3 + $0xd0] sm:$0xff]
    %v455 = vld [vmem:[#allocation3 + $0xd8] sm:$0xff]
    %v456 = vld [vmem:[#allocation3 + $0xe0] sm:$0xff]
    %v457 = vld [vmem:[#allocation3 + $0xe8] sm:$0xff]
    %v458 = vld [vmem:[#allocation3 + $0xf0] sm:$0xff]
    %v459 = vld [vmem:[#allocation3 + $0xf8] sm:$0xff]
    %v460 = vld [vmem:[#allocation3 + $0x100] sm:$0xff]
    %v461 = vld [vmem:[#allocation3 + $0x108] sm:$0xff]
    %v462 = vld [vmem:[#allocation3 + $0x110] sm:$0xff]
    %v463 = vld [vmem:[#allocation3 + $0x118] sm:$0xff]
    %v464 = vld [vmem:[#allocation3 + $0x120] sm:$0xff]
    %v465 = vld [vmem:[#allocation3 + $0x128] sm:$0xff]
    %v466 = vld [vmem:[#allocation3 + $0x130] sm:$0xff]
    %v467 = vld [vmem:[#allocation3 + $0x138] sm:$0xff]
    %v468 = vld [vmem:[#allocation3 + $0x140] sm:$0xff]
    %v469 = vld [vmem:[#allocation3 + $0x148] sm:$0xff]
    %v470 = vld [vmem:[#allocation3 + $0x150] sm:$0xff]
    %v471 = vld [vmem:[#allocation3 + $0x158] sm:$0xff]
    %v472 = vld [vmem:[#allocation3 + $0x160] sm:$0xff]
    %v473 = vld [vmem:[#allocation3 + $0x168] sm:$0xff]
    %v474 = vld [vmem:[#allocation3 + $0x170] sm:$0xff]
    %v475 = vld [vmem:[#allocation3 + $0x178] sm:$0xff]
    %v476 = vld [vmem:[#allocation3 + $0x180] sm:$0xff]
    %v477 = vld [vmem:[#allocation3 + $0x188] sm:$0xff]
    %v478 = vld [vmem:[#allocation3 + $0x190] sm:$0xff]
    %v479 = vld [vmem:[#allocation3 + $0x198] sm:$0xff]
    %v480 = vld [vmem:[#allocation3 + $0x1a0] sm:$0xff]
    %v481 = vld [vmem:[#allocation3 + $0x1a8] sm:$0xff]
    %v482 = vld [vmem:[#allocation3 + $0x1b0] sm:$0xff]
    %v483 = vld [vmem:[#allocation3 + $0x1b8] sm:$0xff]
    %v484 = vld [vmem:[#allocation3 + $0x1c0] sm:$0xff]
    %v485 = vld [vmem:[#allocation3 + $0x1c8] sm:$0xff]
    %v486 = vld [vmem:[#allocation3 + $0x1d0] sm:$0xff]
    %v487 = vld [vmem:[#allocation3 + $0x1d8] sm:$0xff]
    %v488 = vld [vmem:[#allocation3 + $0x1e0] sm:$0xff]
    %v489 = vld [vmem:[#allocation3 + $0x1e8] sm:$0xff]
    %v490 = vld [vmem:[#allocation3 + $0x1f0] sm:$0xff]
    %v491 = vld [vmem:[#allocation3 + $0x1f8] sm:$0xff]
    %v492 = vpack.c.bf16 %v430, %v428
    %v493 = vpack.c.bf16 %v431, %v429
    %v494 = vpack.c.bf16 %v434, %v432
    %v495 = vpack.c.bf16 %v435, %v433
    %v496 = vpack.c.bf16 %v438, %v436
    %v497 = vpack.c.bf16 %v439, %v437
    %v498 = vpack.c.bf16 %v442, %v440
    %v499 = vpack.c.bf16 %v443, %v441
    %v500 = vpack.c.bf16 %v446, %v444
    %v501 = vpack.c.bf16 %v447, %v445
    %v502 = vpack.c.bf16 %v450, %v448
    %v503 = vpack.c.bf16 %v451, %v449
    %v504 = vpack.c.bf16 %v454, %v452
    %v505 = vpack.c.bf16 %v455, %v453
    %v506 = vpack.c.bf16 %v458, %v456
    %v507 = vpack.c.bf16 %v459, %v457
    %v508 = vpack.c.bf16 %v462, %v460
    %v509 = vpack.c.bf16 %v463, %v461
    %v510 = vpack.c.bf16 %v466, %v464
    %v511 = vpack.c.bf16 %v467, %v465
    %v512 = vpack.c.bf16 %v470, %v468
    %v513 = vpack.c.bf16 %v471, %v469
    %v514 = vpack.c.bf16 %v474, %v472
    %v515 = vpack.c.bf16 %v475, %v473
    %v516 = vpack.c.bf16 %v478, %v476
    %v517 = vpack.c.bf16 %v479, %v477
    %v518 = vpack.c.bf16 %v482, %v480
    %v519 = vpack.c.bf16 %v483, %v481
    %v520 = vpack.c.bf16 %v486, %v484
    %v521 = vpack.c.bf16 %v487, %v485
    %v522 = vpack.c.bf16 %v490, %v488
    %v523 = vpack.c.bf16 %v491, %v489
    %v524 = vld [vmem:[#allocation6] sm:$0xff]
    %v525 = vld [vmem:[#allocation6 + $0x8] sm:$0xff]
    %v526 = vld [vmem:[#allocation6 + $0x10] sm:$0xff]
    %v527 = vld [vmem:[#allocation6 + $0x18] sm:$0xff]
    %v528 = vld [vmem:[#allocation6 + $0x20] sm:$0xff]
    %v529 = vld [vmem:[#allocation6 + $0x28] sm:$0xff]
    %v530 = vld [vmem:[#allocation6 + $0x30] sm:$0xff]
    %v531 = vld [vmem:[#allocation6 + $0x38] sm:$0xff]
    %v532 = vld [vmem:[#allocation6 + $0x40] sm:$0xff]
    %v533 = vld [vmem:[#allocation6 + $0x48] sm:$0xff]
    %v534 = vld [vmem:[#allocation6 + $0x50] sm:$0xff]
    %v535 = vld [vmem:[#allocation6 + $0x58] sm:$0xff]
    %v536 = vld [vmem:[#allocation6 + $0x60] sm:$0xff]
    %v537 = vld [vmem:[#allocation6 + $0x68] sm:$0xff]
    %v538 = vld [vmem:[#allocation6 + $0x70] sm:$0xff]
    %v539 = vld [vmem:[#allocation6 + $0x78] sm:$0xff]
    %v540 = vld [vmem:[#allocation6 + $0x80] sm:$0xff]
    %v541 = vld [vmem:[#allocation6 + $0x88] sm:$0xff]
    %v542 = vld [vmem:[#allocation6 + $0x90] sm:$0xff]
    %v543 = vld [vmem:[#allocation6 + $0x98] sm:$0xff]
    %v544 = vld [vmem:[#allocation6 + $0xa0] sm:$0xff]
    %v545 = vld [vmem:[#allocation6 + $0xa8] sm:$0xff]
    %v546 = vld [vmem:[#allocation6 + $0xb0] sm:$0xff]
    %v547 = vld [vmem:[#allocation6 + $0xb8] sm:$0xff]
    %v548 = vld [vmem:[#allocation6 + $0xc0] sm:$0xff]
    %v549 = vld [vmem:[#allocation6 + $0xc8] sm:$0xff]
    %v550 = vld [vmem:[#allocation6 + $0xd0] sm:$0xff]
    %v551 = vld [vmem:[#allocation6 + $0xd8] sm:$0xff]
    %v552 = vld [vmem:[#allocation6 + $0xe0] sm:$0xff]
    %v553 = vld [vmem:[#allocation6 + $0xe8] sm:$0xff]
    %v554 = vld [vmem:[#allocation6 + $0xf0] sm:$0xff]
    %v555 = vld [vmem:[#allocation6 + $0xf8] sm:$0xff]
    %v556 = vld [vmem:[#allocation6 + $0x100] sm:$0xff]
    %v557 = vld [vmem:[#allocation6 + $0x108] sm:$0xff]
    %v558 = vld [vmem:[#allocation6 + $0x110] sm:$0xff]
    %v559 = vld [vmem:[#allocation6 + $0x118] sm:$0xff]
    %v560 = vld [vmem:[#allocation6 + $0x120] sm:$0xff]
    %v561 = vld [vmem:[#allocation6 + $0x128] sm:$0xff]
    %v562 = vld [vmem:[#allocation6 + $0x130] sm:$0xff]
    %v563 = vld [vmem:[#allocation6 + $0x138] sm:$0xff]
    %v564 = vld [vmem:[#allocation6 + $0x140] sm:$0xff]
    %v565 = vld [vmem:[#allocation6 + $0x148] sm:$0xff]
    %v566 = vld [vmem:[#allocation6 + $0x150] sm:$0xff]
    %v567 = vld [vmem:[#allocation6 + $0x158] sm:$0xff]
    %v568 = vld [vmem:[#allocation6 + $0x160] sm:$0xff]
    %v569 = vld [vmem:[#allocation6 + $0x168] sm:$0xff]
    %v570 = vld [vmem:[#allocation6 + $0x170] sm:$0xff]
    %v571 = vld [vmem:[#allocation6 + $0x178] sm:$0xff]
    %v572 = vld [vmem:[#allocation6 + $0x180] sm:$0xff]
    %v573 = vld [vmem:[#allocation6 + $0x188] sm:$0xff]
    %v574 = vld [vmem:[#allocation6 + $0x190] sm:$0xff]
    %v575 = vld [vmem:[#allocation6 + $0x198] sm:$0xff]
    %v576 = vld [vmem:[#allocation6 + $0x1a0] sm:$0xff]
    %v577 = vld [vmem:[#allocation6 + $0x1a8] sm:$0xff]
    %v578 = vld [vmem:[#allocation6 + $0x1b0] sm:$0xff]
    %v579 = vld [vmem:[#allocation6 + $0x1b8] sm:$0xff]
    %v580 = vld [vmem:[#allocation6 + $0x1c0] sm:$0xff]
    %v581 = vld [vmem:[#allocation6 + $0x1c8] sm:$0xff]
    %v582 = vld [vmem:[#allocation6 + $0x1d0] sm:$0xff]
    %v583 = vld [vmem:[#allocation6 + $0x1d8] sm:$0xff]
    %v584 = vld [vmem:[#allocation6 + $0x1e0] sm:$0xff]
    %v585 = vld [vmem:[#allocation6 + $0x1e8] sm:$0xff]
    %v586 = vld [vmem:[#allocation6 + $0x1f0] sm:$0xff]
    %v587 = vld [vmem:[#allocation6 + $0x1f8] sm:$0xff]
    %v588 = vld [vmem:[#allocation6 + $0x200] sm:$0xff]
    %v589 = vld [vmem:[#allocation6 + $0x208] sm:$0xff]
    %v590 = vld [vmem:[#allocation6 + $0x210] sm:$0xff]
    %v591 = vld [vmem:[#allocation6 + $0x218] sm:$0xff]
    %v592 = vld [vmem:[#allocation6 + $0x220] sm:$0xff]
    %v593 = vld [vmem:[#allocation6 + $0x228] sm:$0xff]
    %v594 = vld [vmem:[#allocation6 + $0x230] sm:$0xff]
    %v595 = vld [vmem:[#allocation6 + $0x238] sm:$0xff]
    %v596 = vld [vmem:[#allocation6 + $0x240] sm:$0xff]
    %v597 = vld [vmem:[#allocation6 + $0x248] sm:$0xff]
    %v598 = vld [vmem:[#allocation6 + $0x250] sm:$0xff]
    %v599 = vld [vmem:[#allocation6 + $0x258] sm:$0xff]
    %v600 = vld [vmem:[#allocation6 + $0x260] sm:$0xff]
    %v601 = vld [vmem:[#allocation6 + $0x268] sm:$0xff]
    %v602 = vld [vmem:[#allocation6 + $0x270] sm:$0xff]
    %v603 = vld [vmem:[#allocation6 + $0x278] sm:$0xff]
    %v604 = vld [vmem:[#allocation6 + $0x280] sm:$0xff]
    %v605 = vld [vmem:[#allocation6 + $0x288] sm:$0xff]
    %v606 = vld [vmem:[#allocation6 + $0x290] sm:$0xff]
    %v607 = vld [vmem:[#allocation6 + $0x298] sm:$0xff]
    %v608 = vld [vmem:[#allocation6 + $0x2a0] sm:$0xff]
    %v609 = vld [vmem:[#allocation6 + $0x2a8] sm:$0xff]
    %v610 = vld [vmem:[#allocation6 + $0x2b0] sm:$0xff]
    %v611 = vld [vmem:[#allocation6 + $0x2b8] sm:$0xff]
    %v612 = vld [vmem:[#allocation6 + $0x2c0] sm:$0xff]
    %v613 = vld [vmem:[#allocation6 + $0x2c8] sm:$0xff]
    %v614 = vld [vmem:[#allocation6 + $0x2d0] sm:$0xff]
    %v615 = vld [vmem:[#allocation6 + $0x2d8] sm:$0xff]
    %v616 = vld [vmem:[#allocation6 + $0x2e0] sm:$0xff]
    %v617 = vld [vmem:[#allocation6 + $0x2e8] sm:$0xff]
    %v618 = vld [vmem:[#allocation6 + $0x2f0] sm:$0xff]
    %v619 = vld [vmem:[#allocation6 + $0x2f8] sm:$0xff]
    %v716 = vunpack.c.l.b16 %v524
    %v717 = vunpack.c.h.b16 %v524
    %v718 = vunpack.c.l.b16 %v525
    %v719 = vunpack.c.h.b16 %v525
    %v720 = vunpack.c.l.b16 %v526
    %v721 = vunpack.c.h.b16 %v526
    %v722 = vunpack.c.l.b16 %v527
    %v723 = vunpack.c.h.b16 %v527
    %v724 = vunpack.c.l.b16 %v528
    %v725 = vunpack.c.h.b16 %v528
    %v726 = vunpack.c.l.b16 %v529
    %v727 = vunpack.c.h.b16 %v529
    %v728 = vunpack.c.l.b16 %v530
    %v729 = vunpack.c.h.b16 %v530
    %v730 = vunpack.c.l.b16 %v531
    %v731 = vunpack.c.h.b16 %v531
    %v732 = vunpack.c.l.b16 %v532
    %v733 = vunpack.c.h.b16 %v532
    %v734 = vunpack.c.l.b16 %v533
    %v735 = vunpack.c.h.b16 %v533
    %v736 = vunpack.c.l.b16 %v534
    %v737 = vunpack.c.h.b16 %v534
    %v738 = vunpack.c.l.b16 %v535
    %v739 = vunpack.c.h.b16 %v535
    %v740 = vunpack.c.l.b16 %v536
    %v741 = vunpack.c.h.b16 %v536
    %v742 = vunpack.c.l.b16 %v537
    %v743 = vunpack.c.h.b16 %v537
    %v744 = vunpack.c.l.b16 %v538
    %v745 = vunpack.c.h.b16 %v538
    %v746 = vunpack.c.l.b16 %v539
    %v747 = vunpack.c.h.b16 %v539
    %v748 = vunpack.c.l.b16 %v540
    %v749 = vunpack.c.h.b16 %v540
    %v750 = vunpack.c.l.b16 %v541
    %v751 = vunpack.c.h.b16 %v541
    %v752 = vunpack.c.l.b16 %v542
    %v753 = vunpack.c.h.b16 %v542
    %v754 = vunpack.c.l.b16 %v543
    %v755 = vunpack.c.h.b16 %v543
    %v756 = vunpack.c.l.b16 %v544
    %v757 = vunpack.c.h.b16 %v544
    %v758 = vunpack.c.l.b16 %v545
    %v759 = vunpack.c.h.b16 %v545
    %v760 = vunpack.c.l.b16 %v546
    %v761 = vunpack.c.h.b16 %v546
    %v762 = vunpack.c.l.b16 %v547
    %v763 = vunpack.c.h.b16 %v547
    %v764 = vunpack.c.l.b16 %v548
    %v765 = vunpack.c.h.b16 %v548
    %v766 = vunpack.c.l.b16 %v549
    %v767 = vunpack.c.h.b16 %v549
    %v768 = vunpack.c.l.b16 %v550
    %v769 = vunpack.c.h.b16 %v550
    %v770 = vunpack.c.l.b16 %v551
    %v771 = vunpack.c.h.b16 %v551
    %v772 = vunpack.c.l.b16 %v552
    %v773 = vunpack.c.h.b16 %v552
    %v774 = vunpack.c.l.b16 %v553
    %v775 = vunpack.c.h.b16 %v553
    %v776 = vunpack.c.l.b16 %v554
    %v777 = vunpack.c.h.b16 %v554
    %v778 = vunpack.c.l.b16 %v555
    %v779 = vunpack.c.h.b16 %v555
    %v780 = vunpack.c.l.b16 %v556
    %v781 = vunpack.c.h.b16 %v556
    %v782 = vunpack.c.l.b16 %v557
    %v783 = vunpack.c.h.b16 %v557
    %v784 = vunpack.c.l.b16 %v558
    %v785 = vunpack.c.h.b16 %v558
    %v786 = vunpack.c.l.b16 %v559
    %v787 = vunpack.c.h.b16 %v559
    %v788 = vunpack.c.l.b16 %v560
    %v789 = vunpack.c.h.b16 %v560
    %v790 = vunpack.c.l.b16 %v561
    %v791 = vunpack.c.h.b16 %v561
    %v792 = vunpack.c.l.b16 %v562
    %v793 = vunpack.c.h.b16 %v562
    %v794 = vunpack.c.l.b16 %v563
    %v795 = vunpack.c.h.b16 %v563
    %v796 = vunpack.c.l.b16 %v564
    %v797 = vunpack.c.h.b16 %v564
    %v798 = vunpack.c.l.b16 %v565
    %v799 = vunpack.c.h.b16 %v565
    %v800 = vunpack.c.l.b16 %v566
    %v801 = vunpack.c.h.b16 %v566
    %v802 = vunpack.c.l.b16 %v567
    %v803 = vunpack.c.h.b16 %v567
    %v804 = vunpack.c.l.b16 %v568
    %v805 = vunpack.c.h.b16 %v568
    %v806 = vunpack.c.l.b16 %v569
    %v807 = vunpack.c.h.b16 %v569
    %v808 = vunpack.c.l.b16 %v570
    %v809 = vunpack.c.h.b16 %v570
    %v810 = vunpack.c.l.b16 %v571
    %v811 = vunpack.c.h.b16 %v571
    %v812 = vunpack.c.l.b16 %v572
    %v813 = vunpack.c.h.b16 %v572
    %v814 = vunpack.c.l.b16 %v573
    %v815 = vunpack.c.h.b16 %v573
    %v816 = vunpack.c.l.b16 %v574
    %v817 = vunpack.c.h.b16 %v574
    %v818 = vunpack.c.l.b16 %v575
    %v819 = vunpack.c.h.b16 %v575
    %v820 = vunpack.c.l.b16 %v576
    %v821 = vunpack.c.h.b16 %v576
    %v822 = vunpack.c.l.b16 %v577
    %v823 = vunpack.c.h.b16 %v577
    %v824 = vunpack.c.l.b16 %v578
    %v825 = vunpack.c.h.b16 %v578
    %v826 = vunpack.c.l.b16 %v579
    %v827 = vunpack.c.h.b16 %v579
    %v828 = vunpack.c.l.b16 %v580
    %v829 = vunpack.c.h.b16 %v580
    %v830 = vunpack.c.l.b16 %v581
    %v831 = vunpack.c.h.b16 %v581
    %v832 = vunpack.c.l.b16 %v582
    %v833 = vunpack.c.h.b16 %v582
    %v834 = vunpack.c.l.b16 %v583
    %v835 = vunpack.c.h.b16 %v583
    %v836 = vunpack.c.l.b16 %v584
    %v837 = vunpack.c.h.b16 %v584
    %v838 = vunpack.c.l.b16 %v585
    %v839 = vunpack.c.h.b16 %v585
    %v840 = vunpack.c.l.b16 %v586
    %v841 = vunpack.c.h.b16 %v586
    %v842 = vunpack.c.l.b16 %v587
    %v843 = vunpack.c.h.b16 %v587
    %v844 = vunpack.c.l.b16 %v588
    %v845 = vunpack.c.h.b16 %v588
    %v846 = vunpack.c.l.b16 %v589
    %v847 = vunpack.c.h.b16 %v589
    %v848 = vunpack.c.l.b16 %v590
    %v849 = vunpack.c.h.b16 %v590
    %v850 = vunpack.c.l.b16 %v591
    %v851 = vunpack.c.h.b16 %v591
    %v852 = vunpack.c.l.b16 %v592
    %v853 = vunpack.c.h.b16 %v592
    %v854 = vunpack.c.l.b16 %v593
    %v855 = vunpack.c.h.b16 %v593
    %v856 = vunpack.c.l.b16 %v594
    %v857 = vunpack.c.h.b16 %v594
    %v858 = vunpack.c.l.b16 %v595
    %v859 = vunpack.c.h.b16 %v595
    %v860 = vunpack.c.l.b16 %v596
    %v861 = vunpack.c.h.b16 %v596
    %v862 = vunpack.c.l.b16 %v597
    %v863 = vunpack.c.h.b16 %v597
    %v864 = vunpack.c.l.b16 %v598
    %v865 = vunpack.c.h.b16 %v598
    %v866 = vunpack.c.l.b16 %v599
    %v867 = vunpack.c.h.b16 %v599
    %v868 = vunpack.c.l.b16 %v600
    %v869 = vunpack.c.h.b16 %v600
    %v870 = vunpack.c.l.b16 %v601
    %v871 = vunpack.c.h.b16 %v601
    %v872 = vunpack.c.l.b16 %v602
    %v873 = vunpack.c.h.b16 %v602
    %v874 = vunpack.c.l.b16 %v603
    %v875 = vunpack.c.h.b16 %v603
    %v876 = vunpack.c.l.b16 %v604
    %v877 = vunpack.c.h.b16 %v604
    %v878 = vunpack.c.l.b16 %v605
    %v879 = vunpack.c.h.b16 %v605
    %v880 = vunpack.c.l.b16 %v606
    %v881 = vunpack.c.h.b16 %v606
    %v882 = vunpack.c.l.b16 %v607
    %v883 = vunpack.c.h.b16 %v607
    %v884 = vunpack.c.l.b16 %v608
    %v885 = vunpack.c.h.b16 %v608
    %v886 = vunpack.c.l.b16 %v609
    %v887 = vunpack.c.h.b16 %v609
    %v888 = vunpack.c.l.b16 %v610
    %v889 = vunpack.c.h.b16 %v610
    %v890 = vunpack.c.l.b16 %v611
    %v891 = vunpack.c.h.b16 %v611
    %v892 = vunpack.c.l.b16 %v612
    %v893 = vunpack.c.h.b16 %v612
    %v894 = vunpack.c.l.b16 %v613
    %v895 = vunpack.c.h.b16 %v613
    %v896 = vunpack.c.l.b16 %v614
    %v897 = vunpack.c.h.b16 %v614
    %v898 = vunpack.c.l.b16 %v615
    %v899 = vunpack.c.h.b16 %v615
    %v900 = vunpack.c.l.b16 %v616
    %v901 = vunpack.c.h.b16 %v616
    %v902 = vunpack.c.l.b16 %v617
    %v903 = vunpack.c.h.b16 %v617
    %v904 = vunpack.c.l.b16 %v618
    %v905 = vunpack.c.h.b16 %v618
    %v906 = vunpack.c.l.b16 %v619
    %v907 = vunpack.c.h.b16 %v619
    %v908 = vpack.c.b16 %v722, %v716
    %v909 = vpack.c.b16 %v723, %v717
    %v910 = vpack.c.b16 %v724, %v718
    %v911 = vpack.c.b16 %v725, %v719
    %v912 = vpack.c.b16 %v726, %v720
    %v913 = vpack.c.b16 %v727, %v721
    %v914 = vpack.c.b16 %v734, %v728
    %v915 = vpack.c.b16 %v735, %v729
    %v916 = vpack.c.b16 %v736, %v730
    %v917 = vpack.c.b16 %v737, %v731
    %v918 = vpack.c.b16 %v738, %v732
    %v919 = vpack.c.b16 %v739, %v733
    %v920 = vpack.c.b16 %v746, %v740
    %v921 = vpack.c.b16 %v747, %v741
    %v922 = vpack.c.b16 %v748, %v742
    %v923 = vpack.c.b16 %v749, %v743
    %v924 = vpack.c.b16 %v750, %v744
    %v925 = vpack.c.b16 %v751, %v745
    %v926 = vpack.c.b16 %v758, %v752
    %v927 = vpack.c.b16 %v759, %v753
    %v928 = vpack.c.b16 %v760, %v754
    %v929 = vpack.c.b16 %v761, %v755
    %v930 = vpack.c.b16 %v762, %v756
    %v931 = vpack.c.b16 %v763, %v757
    %v932 = vpack.c.b16 %v770, %v764
    %v933 = vpack.c.b16 %v771, %v765
    %v934 = vpack.c.b16 %v772, %v766
    %v935 = vpack.c.b16 %v773, %v767
    %v936 = vpack.c.b16 %v774, %v768
    %v937 = vpack.c.b16 %v775, %v769
    %v938 = vpack.c.b16 %v782, %v776
    %v939 = vpack.c.b16 %v783, %v777
    %v940 = vpack.c.b16 %v784, %v778
    %v941 = vpack.c.b16 %v785, %v779
    %v942 = vpack.c.b16 %v786, %v780
    %v943 = vpack.c.b16 %v787, %v781
    %v944 = vpack.c.b16 %v794, %v788
    %v945 = vpack.c.b16 %v795, %v789
    %v946 = vpack.c.b16 %v796, %v790
    %v947 = vpack.c.b16 %v797, %v791
    %v948 = vpack.c.b16 %v798, %v792
    %v949 = vpack.c.b16 %v799, %v793
    %v950 = vpack.c.b16 %v806, %v800
    %v951 = vpack.c.b16 %v807, %v801
    %v952 = vpack.c.b16 %v808, %v802
    %v953 = vpack.c.b16 %v809, %v803
    %v954 = vpack.c.b16 %v810, %v804
    %v955 = vpack.c.b16 %v811, %v805
    %v956 = vpack.c.b16 %v818, %v812
    %v957 = vpack.c.b16 %v819, %v813
    %v958 = vpack.c.b16 %v820, %v814
    %v959 = vpack.c.b16 %v821, %v815
    %v960 = vpack.c.b16 %v822, %v816
    %v961 = vpack.c.b16 %v823, %v817
    %v962 = vpack.c.b16 %v830, %v824
    %v963 = vpack.c.b16 %v831, %v825
    %v964 = vpack.c.b16 %v832, %v826
    %v965 = vpack.c.b16 %v833, %v827
    %v966 = vpack.c.b16 %v834, %v828
    %v967 = vpack.c.b16 %v835, %v829
    %v968 = vpack.c.b16 %v842, %v836
    %v969 = vpack.c.b16 %v843, %v837
    %v970 = vpack.c.b16 %v844, %v838
    %v971 = vpack.c.b16 %v845, %v839
    %v972 = vpack.c.b16 %v846, %v840
    %v973 = vpack.c.b16 %v847, %v841
    %v974 = vpack.c.b16 %v854, %v848
    %v975 = vpack.c.b16 %v855, %v849
    %v976 = vpack.c.b16 %v856, %v850
    %v977 = vpack.c.b16 %v857, %v851
    %v978 = vpack.c.b16 %v858, %v852
    %v979 = vpack.c.b16 %v859, %v853
    %v980 = vpack.c.b16 %v866, %v860
    %v981 = vpack.c.b16 %v867, %v861
    %v982 = vpack.c.b16 %v868, %v862
    %v983 = vpack.c.b16 %v869, %v863
    %v984 = vpack.c.b16 %v870, %v864
    %v985 = vpack.c.b16 %v871, %v865
    %v986 = vpack.c.b16 %v878, %v872
    %v987 = vpack.c.b16 %v879, %v873
    %v988 = vpack.c.b16 %v880, %v874
    %v989 = vpack.c.b16 %v881, %v875
    %v990 = vpack.c.b16 %v882, %v876
    %v991 = vpack.c.b16 %v883, %v877
    %v992 = vpack.c.b16 %v890, %v884
    %v993 = vpack.c.b16 %v891, %v885
    %v994 = vpack.c.b16 %v892, %v886
    %v995 = vpack.c.b16 %v893, %v887
    %v996 = vpack.c.b16 %v894, %v888
    %v997 = vpack.c.b16 %v895, %v889
    %v998 = vpack.c.b16 %v902, %v896
    %v999 = vpack.c.b16 %v903, %v897
    %v1000 = vpack.c.b16 %v904, %v898
    %v1001 = vpack.c.b16 %v905, %v899
    %v1002 = vpack.c.b16 %v906, %v900
    %v1003 = vpack.c.b16 %v907, %v901
    %1100 = vmatprep.subr.bf16.mxu0 %v951
    %1101 = vmatpush1.bf16.msra.mxu0 %v950
    %1102 = vmatprep.subr.bf16.mxu0 %v945
    %1103 = vmatpush1.bf16.msra.mxu0 %v944
    %1104 = vmatprep.subr.bf16.mxu0 %v939
    %1105 = vmatpush1.bf16.msra.mxu0 %v938
    %1106 = vmatprep.subr.bf16.mxu0 %v933
    %1107 = vmatpush1.bf16.msra.mxu0 %v932
    %1108 = vmatprep.subr.bf16.mxu0 %v927
    %1109 = vmatpush1.bf16.msra.mxu0 %v926
    %1110 = vmatprep.subr.bf16.mxu0 %v921
    %1111 = vmatpush1.bf16.msra.mxu0 %v920
    %1112 = vmatprep.subr.bf16.mxu0 %v915
    %1113 = vmatpush1.bf16.msra.mxu0 %v914
    %1114 = vmatprep.subr.bf16.mxu0 %v909
    %1115 = vmatpush1.bf16.msra.mxu0 %v908
    %1116 = vmatprep.subr.bf16.mxu0 %v999
    %1117 = vmatpush2.bf16.msra.mxu0 %v998
    %1118 = vmatprep.subr.bf16.mxu0 %v993
    %1119 = vmatpush2.bf16.msra.mxu0 %v992
    %1120 = vmatprep.subr.bf16.mxu0 %v987
    %1121 = vmatpush2.bf16.msra.mxu0 %v986
    %1122 = vmatprep.subr.bf16.mxu0 %v981
    %1123 = vmatpush2.bf16.msra.mxu0 %v980
    %1124 = vmatprep.subr.bf16.mxu0 %v975
    %1125 = vmatpush2.bf16.msra.mxu0 %v974
    %1126 = vmatprep.subr.bf16.mxu0 %v969
    %1127 = vmatpush2.bf16.msra.mxu0 %v968
    %1128 = vmatprep.subr.bf16.mxu0 %v963
    %1129 = vmatpush2.bf16.msra.mxu0 %v962
    %1130 = vmatprep.subr.bf16.mxu0 %v957
    %1131 = vmatpush2.bf16.msra.mxu0 %v956
    %1132 = vmatprep.mubr.bf16.mxu0 %v493
    %1133 = vmatmul.mubr.bf16.gmra.mxu0 %v492
    %v1134 = vpop.f32.mrf.mxu0
    %v1135 = vadd.f32 0.0, %v1134
    %v1136 = vpop.f32.mrf.mxu0
    %v1137 = vadd.f32 0.0, %v1136
    %v1138 = vpop.f32.mrf.mxu0
    %v1139 = vadd.f32 0.0, %v1138
    %v1140 = vpop.f32.mrf.mxu0
    %v1141 = vadd.f32 0.0, %v1140
    %1142 = vmatprep.mubr.bf16.mxu0 %v495
    %1143 = vmatmul.mubr.bf16.gmra.mxu0 %v494
    %v1144 = vpop.f32.mrf.mxu0
    %v1145 = vadd.f32 0.0, %v1144
    %v1146 = vpop.f32.mrf.mxu0
    %v1147 = vadd.f32 0.0, %v1146
    %v1148 = vpop.f32.mrf.mxu0
    %v1149 = vadd.f32 0.0, %v1148
    %v1150 = vpop.f32.mrf.mxu0
    %v1151 = vadd.f32 0.0, %v1150
    %1152 = vmatprep.mubr.bf16.mxu0 %v497
    %1153 = vmatmul.mubr.bf16.gmra.mxu0 %v496
    %v1154 = vpop.f32.mrf.mxu0
    %v1155 = vadd.f32 0.0, %v1154
    %v1156 = vpop.f32.mrf.mxu0
    %v1157 = vadd.f32 0.0, %v1156
    %v1158 = vpop.f32.mrf.mxu0
    %v1159 = vadd.f32 0.0, %v1158
    %v1160 = vpop.f32.mrf.mxu0
    %v1161 = vadd.f32 0.0, %v1160
    %1162 = vmatprep.mubr.bf16.mxu0 %v499
    %1163 = vmatmul.mubr.bf16.gmra.mxu0 %v498
    %v1164 = vpop.f32.mrf.mxu0
    %v1165 = vadd.f32 0.0, %v1164
    %v1166 = vpop.f32.mrf.mxu0
    %v1167 = vadd.f32 0.0, %v1166
    %v1168 = vpop.f32.mrf.mxu0
    %v1169 = vadd.f32 0.0, %v1168
    %v1170 = vpop.f32.mrf.mxu0
    %v1171 = vadd.f32 0.0, %v1170
    %1172 = vmatprep.mubr.bf16.mxu0 %v501
    %1173 = vmatmul.mubr.bf16.gmra.mxu0 %v500
    %v1174 = vpop.f32.mrf.mxu0
    %v1175 = vadd.f32 0.0, %v1174
    %v1176 = vpop.f32.mrf.mxu0
    %v1177 = vadd.f32 0.0, %v1176
    %v1178 = vpop.f32.mrf.mxu0
    %v1179 = vadd.f32 0.0, %v1178
    %v1180 = vpop.f32.mrf.mxu0
    %v1181 = vadd.f32 0.0, %v1180
    %1182 = vmatprep.mubr.bf16.mxu0 %v503
    %1183 = vmatmul.mubr.bf16.gmra.mxu0 %v502
    %v1184 = vpop.f32.mrf.mxu0
    %v1185 = vadd.f32 0.0, %v1184
    %v1186 = vpop.f32.mrf.mxu0
    %v1187 = vadd.f32 0.0, %v1186
    %v1188 = vpop.f32.mrf.mxu0
    %v1189 = vadd.f32 0.0, %v1188
    %v1190 = vpop.f32.mrf.mxu0
    %v1191 = vadd.f32 0.0, %v1190
    %1192 = vmatprep.mubr.bf16.mxu0 %v505
    %1193 = vmatmul.mubr.bf16.gmra.mxu0 %v504
    %v1194 = vpop.f32.mrf.mxu0
    %v1195 = vadd.f32 0.0, %v1194
    %v1196 = vpop.f32.mrf.mxu0
    %v1197 = vadd.f32 0.0, %v1196
    %v1198 = vpop.f32.mrf.mxu0
    %v1199 = vadd.f32 0.0, %v1198
    %v1200 = vpop.f32.mrf.mxu0
    %v1201 = vadd.f32 0.0, %v1200
    %1202 = vmatprep.mubr.bf16.mxu0 %v507
    %1203 = vmatmul.mubr.bf16.gmra.mxu0 %v506
    %v1204 = vpop.f32.mrf.mxu0
    %v1205 = vadd.f32 0.0, %v1204
    %v1206 = vpop.f32.mrf.mxu0
    %v1207 = vadd.f32 0.0, %v1206
    %v1208 = vpop.f32.mrf.mxu0
    %v1209 = vadd.f32 0.0, %v1208
    %v1210 = vpop.f32.mrf.mxu0
    %v1211 = vadd.f32 0.0, %v1210
    %1212 = vmatprep.mubr.bf16.mxu0 %v509
    %1213 = vmatmul.mubr.bf16.gmra.mxu0 %v508
    %v1214 = vpop.f32.mrf.mxu0
    %v1215 = vadd.f32 0.0, %v1214
    %v1216 = vpop.f32.mrf.mxu0
    %v1217 = vadd.f32 0.0, %v1216
    %v1218 = vpop.f32.mrf.mxu0
    %v1219 = vadd.f32 0.0, %v1218
    %v1220 = vpop.f32.mrf.mxu0
    %v1221 = vadd.f32 0.0, %v1220
    %1222 = vmatprep.mubr.bf16.mxu0 %v511
    %1223 = vmatmul.mubr.bf16.gmra.mxu0 %v510
    %v1224 = vpop.f32.mrf.mxu0
    %v1225 = vadd.f32 0.0, %v1224
    %v1226 = vpop.f32.mrf.mxu0
    %v1227 = vadd.f32 0.0, %v1226
    %v1228 = vpop.f32.mrf.mxu0
    %v1229 = vadd.f32 0.0, %v1228
    %v1230 = vpop.f32.mrf.mxu0
    %v1231 = vadd.f32 0.0, %v1230
    %1232 = vmatprep.mubr.bf16.mxu0 %v513
    %1233 = vmatmul.mubr.bf16.gmra.mxu0 %v512
    %v1234 = vpop.f32.mrf.mxu0
    %v1235 = vadd.f32 0.0, %v1234
    %v1236 = vpop.f32.mrf.mxu0
    %v1237 = vadd.f32 0.0, %v1236
    %v1238 = vpop.f32.mrf.mxu0
    %v1239 = vadd.f32 0.0, %v1238
    %v1240 = vpop.f32.mrf.mxu0
    %v1241 = vadd.f32 0.0, %v1240
    %1242 = vmatprep.mubr.bf16.mxu0 %v515
    %1243 = vmatmul.mubr.bf16.gmra.mxu0 %v514
    %v1244 = vpop.f32.mrf.mxu0
    %v1245 = vadd.f32 0.0, %v1244
    %v1246 = vpop.f32.mrf.mxu0
    %v1247 = vadd.f32 0.0, %v1246
    %v1248 = vpop.f32.mrf.mxu0
    %v1249 = vadd.f32 0.0, %v1248
    %v1250 = vpop.f32.mrf.mxu0
    %v1251 = vadd.f32 0.0, %v1250
    %1252 = vmatprep.mubr.bf16.mxu0 %v517
    %1253 = vmatmul.mubr.bf16.gmra.mxu0 %v516
    %v1254 = vpop.f32.mrf.mxu0
    %v1255 = vadd.f32 0.0, %v1254
    %v1256 = vpop.f32.mrf.mxu0
    %v1257 = vadd.f32 0.0, %v1256
    %v1258 = vpop.f32.mrf.mxu0
    %v1259 = vadd.f32 0.0, %v1258
    %v1260 = vpop.f32.mrf.mxu0
    %v1261 = vadd.f32 0.0, %v1260
    %1262 = vmatprep.mubr.bf16.mxu0 %v519
    %1263 = vmatmul.mubr.bf16.gmra.mxu0 %v518
    %v1264 = vpop.f32.mrf.mxu0
    %v1265 = vadd.f32 0.0, %v1264
    %v1266 = vpop.f32.mrf.mxu0
    %v1267 = vadd.f32 0.0, %v1266
    %v1268 = vpop.f32.mrf.mxu0
    %v1269 = vadd.f32 0.0, %v1268
    %v1270 = vpop.f32.mrf.mxu0
    %v1271 = vadd.f32 0.0, %v1270
    %1272 = vmatprep.mubr.bf16.mxu0 %v521
    %1273 = vmatmul.mubr.bf16.gmra.mxu0 %v520
    %v1274 = vpop.f32.mrf.mxu0
    %v1275 = vadd.f32 0.0, %v1274
    %v1276 = vpop.f32.mrf.mxu0
    %v1277 = vadd.f32 0.0, %v1276
    %v1278 = vpop.f32.mrf.mxu0
    %v1279 = vadd.f32 0.0, %v1278
    %v1280 = vpop.f32.mrf.mxu0
    %v1281 = vadd.f32 0.0, %v1280
    %1282 = vmatprep.mubr.bf16.mxu0 %v523
    %1283 = vmatmul.mubr.bf16.gmra.mxu0 %v522
    %v1284 = vpop.f32.mrf.mxu0
    %v1285 = vadd.f32 0.0, %v1284
    %v1286 = vpop.f32.mrf.mxu0
    %v1287 = vadd.f32 0.0, %v1286
    %v1288 = vpop.f32.mrf.mxu0
    %v1289 = vadd.f32 0.0, %v1288
    %v1290 = vpop.f32.mrf.mxu0
    %v1291 = vadd.f32 0.0, %v1290
    %1292 = vdwg.mxu0
    %1293 = vmatprep.subr.bf16.mxu0 %v953
    %1294 = vmatpush1.bf16.msra.mxu0 %v952
    %1295 = vmatprep.subr.bf16.mxu0 %v947
    %1296 = vmatpush1.bf16.msra.mxu0 %v946
    %1297 = vmatprep.subr.bf16.mxu0 %v941
    %1298 = vmatpush1.bf16.msra.mxu0 %v940
    %1299 = vmatprep.subr.bf16.mxu0 %v935
    %1300 = vmatpush1.bf16.msra.mxu0 %v934
    %1301 = vmatprep.subr.bf16.mxu0 %v929
    %1302 = vmatpush1.bf16.msra.mxu0 %v928
    %1303 = vmatprep.subr.bf16.mxu0 %v923
    %1304 = vmatpush1.bf16.msra.mxu0 %v922
    %1305 = vmatprep.subr.bf16.mxu0 %v917
    %1306 = vmatpush1.bf16.msra.mxu0 %v916
    %1307 = vmatprep.subr.bf16.mxu0 %v911
    %1308 = vmatpush1.bf16.msra.mxu0 %v910
    %1309 = vmatprep.subr.bf16.mxu0 %v1001
    %1310 = vmatpush2.bf16.msra.mxu0 %v1000
    %1311 = vmatprep.subr.bf16.mxu0 %v995
    %1312 = vmatpush2.bf16.msra.mxu0 %v994
    %1313 = vmatprep.subr.bf16.mxu0 %v989
    %1314 = vmatpush2.bf16.msra.mxu0 %v988
    %1315 = vmatprep.subr.bf16.mxu0 %v983
    %1316 = vmatpush2.bf16.msra.mxu0 %v982
    %1317 = vmatprep.subr.bf16.mxu0 %v977
    %1318 = vmatpush2.bf16.msra.mxu0 %v976
    %1319 = vmatprep.subr.bf16.mxu0 %v971
    %1320 = vmatpush2.bf16.msra.mxu0 %v970
    %1321 = vmatprep.subr.bf16.mxu0 %v965
    %1322 = vmatpush2.bf16.msra.mxu0 %v964
    %1323 = vmatprep.subr.bf16.mxu0 %v959
    %1324 = vmatpush2.bf16.msra.mxu0 %v958
    %1325 = vmatprep.mubr.bf16.mxu0 %v493
    %1326 = vmatmul.mubr.bf16.gmra.mxu0 %v492
    %v1327 = vpop.f32.mrf.mxu0
    %v1328 = vadd.f32 0.0, %v1327
    %v1329 = vpop.f32.mrf.mxu0
    %v1330 = vadd.f32 0.0, %v1329
    %v1331 = vpop.f32.mrf.mxu0
    %v1332 = vadd.f32 0.0, %v1331
    %v1333 = vpop.f32.mrf.mxu0
    %v1334 = vadd.f32 0.0, %v1333
    %1335 = vmatprep.mubr.bf16.mxu0 %v495
    %1336 = vmatmul.mubr.bf16.gmra.mxu0 %v494
    %v1337 = vpop.f32.mrf.mxu0
    %v1338 = vadd.f32 0.0, %v1337
    %v1339 = vpop.f32.mrf.mxu0
    %v1340 = vadd.f32 0.0, %v1339
    %v1341 = vpop.f32.mrf.mxu0
    %v1342 = vadd.f32 0.0, %v1341
    %v1343 = vpop.f32.mrf.mxu0
    %v1344 = vadd.f32 0.0, %v1343
    %1345 = vmatprep.mubr.bf16.mxu0 %v497
    %1346 = vmatmul.mubr.bf16.gmra.mxu0 %v496
    %v1347 = vpop.f32.mrf.mxu0
    %v1348 = vadd.f32 0.0, %v1347
    %v1349 = vpop.f32.mrf.mxu0
    %v1350 = vadd.f32 0.0, %v1349
    %v1351 = vpop.f32.mrf.mxu0
    %v1352 = vadd.f32 0.0, %v1351
    %v1353 = vpop.f32.mrf.mxu0
    %v1354 = vadd.f32 0.0, %v1353
    %1355 = vmatprep.mubr.bf16.mxu0 %v499
    %1356 = vmatmul.mubr.bf16.gmra.mxu0 %v498
    %v1357 = vpop.f32.mrf.mxu0
    %v1358 = vadd.f32 0.0, %v1357
    %v1359 = vpop.f32.mrf.mxu0
    %v1360 = vadd.f32 0.0, %v1359
    %v1361 = vpop.f32.mrf.mxu0
    %v1362 = vadd.f32 0.0, %v1361
    %v1363 = vpop.f32.mrf.mxu0
    %v1364 = vadd.f32 0.0, %v1363
    %1365 = vmatprep.mubr.bf16.mxu0 %v501
    %1366 = vmatmul.mubr.bf16.gmra.mxu0 %v500
    %v1367 = vpop.f32.mrf.mxu0
    %v1368 = vadd.f32 0.0, %v1367
    %v1369 = vpop.f32.mrf.mxu0
    %v1370 = vadd.f32 0.0, %v1369
    %v1371 = vpop.f32.mrf.mxu0
    %v1372 = vadd.f32 0.0, %v1371
    %v1373 = vpop.f32.mrf.mxu0
    %v1374 = vadd.f32 0.0, %v1373
    %1375 = vmatprep.mubr.bf16.mxu0 %v503
    %1376 = vmatmul.mubr.bf16.gmra.mxu0 %v502
    %v1377 = vpop.f32.mrf.mxu0
    %v1378 = vadd.f32 0.0, %v1377
    %v1379 = vpop.f32.mrf.mxu0
    %v1380 = vadd.f32 0.0, %v1379
    %v1381 = vpop.f32.mrf.mxu0
    %v1382 = vadd.f32 0.0, %v1381
    %v1383 = vpop.f32.mrf.mxu0
    %v1384 = vadd.f32 0.0, %v1383
    %1385 = vmatprep.mubr.bf16.mxu0 %v505
    %1386 = vmatmul.mubr.bf16.gmra.mxu0 %v504
    %v1387 = vpop.f32.mrf.mxu0
    %v1388 = vadd.f32 0.0, %v1387
    %v1389 = vpop.f32.mrf.mxu0
    %v1390 = vadd.f32 0.0, %v1389
    %v1391 = vpop.f32.mrf.mxu0
    %v1392 = vadd.f32 0.0, %v1391
    %v1393 = vpop.f32.mrf.mxu0
    %v1394 = vadd.f32 0.0, %v1393
    %1395 = vmatprep.mubr.bf16.mxu0 %v507
    %1396 = vmatmul.mubr.bf16.gmra.mxu0 %v506
    %v1397 = vpop.f32.mrf.mxu0
    %v1398 = vadd.f32 0.0, %v1397
    %v1399 = vpop.f32.mrf.mxu0
    %v1400 = vadd.f32 0.0, %v1399
    %v1401 = vpop.f32.mrf.mxu0
    %v1402 = vadd.f32 0.0, %v1401
    %v1403 = vpop.f32.mrf.mxu0
    %v1404 = vadd.f32 0.0, %v1403
    %1405 = vmatprep.mubr.bf16.mxu0 %v509
    %1406 = vmatmul.mubr.bf16.gmra.mxu0 %v508
    %v1407 = vpop.f32.mrf.mxu0
    %v1408 = vadd.f32 0.0, %v1407
    %v1409 = vpop.f32.mrf.mxu0
    %v1410 = vadd.f32 0.0, %v1409
    %v1411 = vpop.f32.mrf.mxu0
    %v1412 = vadd.f32 0.0, %v1411
    %v1413 = vpop.f32.mrf.mxu0
    %v1414 = vadd.f32 0.0, %v1413
    %1415 = vmatprep.mubr.bf16.mxu0 %v511
    %1416 = vmatmul.mubr.bf16.gmra.mxu0 %v510
    %v1417 = vpop.f32.mrf.mxu0
    %v1418 = vadd.f32 0.0, %v1417
    %v1419 = vpop.f32.mrf.mxu0
    %v1420 = vadd.f32 0.0, %v1419
    %v1421 = vpop.f32.mrf.mxu0
    %v1422 = vadd.f32 0.0, %v1421
    %v1423 = vpop.f32.mrf.mxu0
    %v1424 = vadd.f32 0.0, %v1423
    %1425 = vmatprep.mubr.bf16.mxu0 %v513
    %1426 = vmatmul.mubr.bf16.gmra.mxu0 %v512
    %v1427 = vpop.f32.mrf.mxu0
    %v1428 = vadd.f32 0.0, %v1427
    %v1429 = vpop.f32.mrf.mxu0
    %v1430 = vadd.f32 0.0, %v1429
    %v1431 = vpop.f32.mrf.mxu0
    %v1432 = vadd.f32 0.0, %v1431
    %v1433 = vpop.f32.mrf.mxu0
    %v1434 = vadd.f32 0.0, %v1433
    %1435 = vmatprep.mubr.bf16.mxu0 %v515
    %1436 = vmatmul.mubr.bf16.gmra.mxu0 %v514
    %v1437 = vpop.f32.mrf.mxu0
    %v1438 = vadd.f32 0.0, %v1437
    %v1439 = vpop.f32.mrf.mxu0
    %v1440 = vadd.f32 0.0, %v1439
    %v1441 = vpop.f32.mrf.mxu0
    %v1442 = vadd.f32 0.0, %v1441
    %v1443 = vpop.f32.mrf.mxu0
    %v1444 = vadd.f32 0.0, %v1443
    %1445 = vmatprep.mubr.bf16.mxu0 %v517
    %1446 = vmatmul.mubr.bf16.gmra.mxu0 %v516
    %v1447 = vpop.f32.mrf.mxu0
    %v1448 = vadd.f32 0.0, %v1447
    %v1449 = vpop.f32.mrf.mxu0
    %v1450 = vadd.f32 0.0, %v1449
    %v1451 = vpop.f32.mrf.mxu0
    %v1452 = vadd.f32 0.0, %v1451
    %v1453 = vpop.f32.mrf.mxu0
    %v1454 = vadd.f32 0.0, %v1453
    %1455 = vmatprep.mubr.bf16.mxu0 %v519
    %1456 = vmatmul.mubr.bf16.gmra.mxu0 %v518
    %v1457 = vpop.f32.mrf.mxu0
    %v1458 = vadd.f32 0.0, %v1457
    %v1459 = vpop.f32.mrf.mxu0
    %v1460 = vadd.f32 0.0, %v1459
    %v1461 = vpop.f32.mrf.mxu0
    %v1462 = vadd.f32 0.0, %v1461
    %v1463 = vpop.f32.mrf.mxu0
    %v1464 = vadd.f32 0.0, %v1463
    %1465 = vmatprep.mubr.bf16.mxu0 %v521
    %1466 = vmatmul.mubr.bf16.gmra.mxu0 %v520
    %v1467 = vpop.f32.mrf.mxu0
    %v1468 = vadd.f32 0.0, %v1467
    %v1469 = vpop.f32.mrf.mxu0
    %v1470 = vadd.f32 0.0, %v1469
    %v1471 = vpop.f32.mrf.mxu0
    %v1472 = vadd.f32 0.0, %v1471
    %v1473 = vpop.f32.mrf.mxu0
    %v1474 = vadd.f32 0.0, %v1473
    %1475 = vmatprep.mubr.bf16.mxu0 %v523
    %1476 = vmatmul.mubr.bf16.gmra.mxu0 %v522
    %v1477 = vpop.f32.mrf.mxu0
    %v1478 = vadd.f32 0.0, %v1477
    %v1479 = vpop.f32.mrf.mxu0
    %v1480 = vadd.f32 0.0, %v1479
    %v1481 = vpop.f32.mrf.mxu0
    %v1482 = vadd.f32 0.0, %v1481
    %v1483 = vpop.f32.mrf.mxu0
    %v1484 = vadd.f32 0.0, %v1483
    %1485 = vdwg.mxu0
    %1486 = vmatprep.subr.bf16.mxu0 %v955
    %1487 = vmatpush1.bf16.msra.mxu0 %v954
    %1488 = vmatprep.subr.bf16.mxu0 %v949
    %1489 = vmatpush1.bf16.msra.mxu0 %v948
    %1490 = vmatprep.subr.bf16.mxu0 %v943
    %1491 = vmatpush1.bf16.msra.mxu0 %v942
    %1492 = vmatprep.subr.bf16.mxu0 %v937
    %1493 = vmatpush1.bf16.msra.mxu0 %v936
    %1494 = vmatprep.subr.bf16.mxu0 %v931
    %1495 = vmatpush1.bf16.msra.mxu0 %v930
    %1496 = vmatprep.subr.bf16.mxu0 %v925
    %1497 = vmatpush1.bf16.msra.mxu0 %v924
    %1498 = vmatprep.subr.bf16.mxu0 %v919
    %1499 = vmatpush1.bf16.msra.mxu0 %v918
    %1500 = vmatprep.subr.bf16.mxu0 %v913
    %1501 = vmatpush1.bf16.msra.mxu0 %v912
    %1502 = vmatprep.subr.bf16.mxu0 %v1003
    %1503 = vmatpush2.bf16.msra.mxu0 %v1002
    %1504 = vmatprep.subr.bf16.mxu0 %v997
    %1505 = vmatpush2.bf16.msra.mxu0 %v996
    %1506 = vmatprep.subr.bf16.mxu0 %v991
    %1507 = vmatpush2.bf16.msra.mxu0 %v990
    %1508 = vmatprep.subr.bf16.mxu0 %v985
    %1509 = vmatpush2.bf16.msra.mxu0 %v984
    %1510 = vmatprep.subr.bf16.mxu0 %v979
    %1511 = vmatpush2.bf16.msra.mxu0 %v978
    %1512 = vmatprep.subr.bf16.mxu0 %v973
    %1513 = vmatpush2.bf16.msra.mxu0 %v972
    %1514 = vmatprep.subr.bf16.mxu0 %v967
    %1515 = vmatpush2.bf16.msra.mxu0 %v966
    %1516 = vmatprep.subr.bf16.mxu0 %v961
    %1517 = vmatpush2.bf16.msra.mxu0 %v960
    %1518 = vmatprep.mubr.bf16.mxu0 %v493
    %1519 = vmatmul.mubr.bf16.gmra.mxu0 %v492
    %v1520 = vpop.f32.mrf.mxu0
    %v1521 = vadd.f32 0.0, %v1520
    %v1522 = vpop.f32.mrf.mxu0
    %v1523 = vadd.f32 0.0, %v1522
    %v1524 = vpop.f32.mrf.mxu0
    %v1525 = vadd.f32 0.0, %v1524
    %v1526 = vpop.f32.mrf.mxu0
    %v1527 = vadd.f32 0.0, %v1526
    %1528 = vmatprep.mubr.bf16.mxu0 %v495
    %1529 = vmatmul.mubr.bf16.gmra.mxu0 %v494
    %v1530 = vpop.f32.mrf.mxu0
    %v1531 = vadd.f32 0.0, %v1530
    %v1532 = vpop.f32.mrf.mxu0
    %v1533 = vadd.f32 0.0, %v1532
    %v1534 = vpop.f32.mrf.mxu0
    %v1535 = vadd.f32 0.0, %v1534
    %v1536 = vpop.f32.mrf.mxu0
    %v1537 = vadd.f32 0.0, %v1536
    %1538 = vmatprep.mubr.bf16.mxu0 %v497
    %1539 = vmatmul.mubr.bf16.gmra.mxu0 %v496
    %v1540 = vpop.f32.mrf.mxu0
    %v1541 = vadd.f32 0.0, %v1540
    %v1542 = vpop.f32.mrf.mxu0
    %v1543 = vadd.f32 0.0, %v1542
    %v1544 = vpop.f32.mrf.mxu0
    %v1545 = vadd.f32 0.0, %v1544
    %v1546 = vpop.f32.mrf.mxu0
    %v1547 = vadd.f32 0.0, %v1546
    %1548 = vmatprep.mubr.bf16.mxu0 %v499
    %1549 = vmatmul.mubr.bf16.gmra.mxu0 %v498
    %v1550 = vpop.f32.mrf.mxu0
    %v1551 = vadd.f32 0.0, %v1550
    %v1552 = vpop.f32.mrf.mxu0
    %v1553 = vadd.f32 0.0, %v1552
    %v1554 = vpop.f32.mrf.mxu0
    %v1555 = vadd.f32 0.0, %v1554
    %v1556 = vpop.f32.mrf.mxu0
    %v1557 = vadd.f32 0.0, %v1556
    %1558 = vmatprep.mubr.bf16.mxu0 %v501
    %1559 = vmatmul.mubr.bf16.gmra.mxu0 %v500
    %v1560 = vpop.f32.mrf.mxu0
    %v1561 = vadd.f32 0.0, %v1560
    %v1562 = vpop.f32.mrf.mxu0
    %v1563 = vadd.f32 0.0, %v1562
    %v1564 = vpop.f32.mrf.mxu0
    %v1565 = vadd.f32 0.0, %v1564
    %v1566 = vpop.f32.mrf.mxu0
    %v1567 = vadd.f32 0.0, %v1566
    %1568 = vmatprep.mubr.bf16.mxu0 %v503
    %1569 = vmatmul.mubr.bf16.gmra.mxu0 %v502
    %v1570 = vpop.f32.mrf.mxu0
    %v1571 = vadd.f32 0.0, %v1570
    %v1572 = vpop.f32.mrf.mxu0
    %v1573 = vadd.f32 0.0, %v1572
    %v1574 = vpop.f32.mrf.mxu0
    %v1575 = vadd.f32 0.0, %v1574
    %v1576 = vpop.f32.mrf.mxu0
    %v1577 = vadd.f32 0.0, %v1576
    %1578 = vmatprep.mubr.bf16.mxu0 %v505
    %1579 = vmatmul.mubr.bf16.gmra.mxu0 %v504
    %v1580 = vpop.f32.mrf.mxu0
    %v1581 = vadd.f32 0.0, %v1580
    %v1582 = vpop.f32.mrf.mxu0
    %v1583 = vadd.f32 0.0, %v1582
    %v1584 = vpop.f32.mrf.mxu0
    %v1585 = vadd.f32 0.0, %v1584
    %v1586 = vpop.f32.mrf.mxu0
    %v1587 = vadd.f32 0.0, %v1586
    %1588 = vmatprep.mubr.bf16.mxu0 %v507
    %1589 = vmatmul.mubr.bf16.gmra.mxu0 %v506
    %v1590 = vpop.f32.mrf.mxu0
    %v1591 = vadd.f32 0.0, %v1590
    %v1592 = vpop.f32.mrf.mxu0
    %v1593 = vadd.f32 0.0, %v1592
    %v1594 = vpop.f32.mrf.mxu0
    %v1595 = vadd.f32 0.0, %v1594
    %v1596 = vpop.f32.mrf.mxu0
    %v1597 = vadd.f32 0.0, %v1596
    %1598 = vmatprep.mubr.bf16.mxu0 %v509
    %1599 = vmatmul.mubr.bf16.gmra.mxu0 %v508
    %v1600 = vpop.f32.mrf.mxu0
    %v1601 = vadd.f32 0.0, %v1600
    %v1602 = vpop.f32.mrf.mxu0
    %v1603 = vadd.f32 0.0, %v1602
    %v1604 = vpop.f32.mrf.mxu0
    %v1605 = vadd.f32 0.0, %v1604
    %v1606 = vpop.f32.mrf.mxu0
    %v1607 = vadd.f32 0.0, %v1606
    %1608 = vmatprep.mubr.bf16.mxu0 %v511
    %1609 = vmatmul.mubr.bf16.gmra.mxu0 %v510
    %v1610 = vpop.f32.mrf.mxu0
    %v1611 = vadd.f32 0.0, %v1610
    %v1612 = vpop.f32.mrf.mxu0
    %v1613 = vadd.f32 0.0, %v1612
    %v1614 = vpop.f32.mrf.mxu0
    %v1615 = vadd.f32 0.0, %v1614
    %v1616 = vpop.f32.mrf.mxu0
    %v1617 = vadd.f32 0.0, %v1616
    %1618 = vmatprep.mubr.bf16.mxu0 %v513
    %1619 = vmatmul.mubr.bf16.gmra.mxu0 %v512
    %v1620 = vpop.f32.mrf.mxu0
    %v1621 = vadd.f32 0.0, %v1620
    %v1622 = vpop.f32.mrf.mxu0
    %v1623 = vadd.f32 0.0, %v1622
    %v1624 = vpop.f32.mrf.mxu0
    %v1625 = vadd.f32 0.0, %v1624
    %v1626 = vpop.f32.mrf.mxu0
    %v1627 = vadd.f32 0.0, %v1626
    %1628 = vmatprep.mubr.bf16.mxu0 %v515
    %1629 = vmatmul.mubr.bf16.gmra.mxu0 %v514
    %v1630 = vpop.f32.mrf.mxu0
    %v1631 = vadd.f32 0.0, %v1630
    %v1632 = vpop.f32.mrf.mxu0
    %v1633 = vadd.f32 0.0, %v1632
    %v1634 = vpop.f32.mrf.mxu0
    %v1635 = vadd.f32 0.0, %v1634
    %v1636 = vpop.f32.mrf.mxu0
    %v1637 = vadd.f32 0.0, %v1636
    %1638 = vmatprep.mubr.bf16.mxu0 %v517
    %1639 = vmatmul.mubr.bf16.gmra.mxu0 %v516
    %v1640 = vpop.f32.mrf.mxu0
    %v1641 = vadd.f32 0.0, %v1640
    %v1642 = vpop.f32.mrf.mxu0
    %v1643 = vadd.f32 0.0, %v1642
    %v1644 = vpop.f32.mrf.mxu0
    %v1645 = vadd.f32 0.0, %v1644
    %v1646 = vpop.f32.mrf.mxu0
    %v1647 = vadd.f32 0.0, %v1646
    %1648 = vmatprep.mubr.bf16.mxu0 %v519
    %1649 = vmatmul.mubr.bf16.gmra.mxu0 %v518
    %v1650 = vpop.f32.mrf.mxu0
    %v1651 = vadd.f32 0.0, %v1650
    %v1652 = vpop.f32.mrf.mxu0
    %v1653 = vadd.f32 0.0, %v1652
    %v1654 = vpop.f32.mrf.mxu0
    %v1655 = vadd.f32 0.0, %v1654
    %v1656 = vpop.f32.mrf.mxu0
    %v1657 = vadd.f32 0.0, %v1656
    %1658 = vmatprep.mubr.bf16.mxu0 %v521
    %1659 = vmatmul.mubr.bf16.gmra.mxu0 %v520
    %v1660 = vpop.f32.mrf.mxu0
    %v1661 = vadd.f32 0.0, %v1660
    %v1662 = vpop.f32.mrf.mxu0
    %v1663 = vadd.f32 0.0, %v1662
    %v1664 = vpop.f32.mrf.mxu0
    %v1665 = vadd.f32 0.0, %v1664
    %v1666 = vpop.f32.mrf.mxu0
    %v1667 = vadd.f32 0.0, %v1666
    %1668 = vmatprep.mubr.bf16.mxu0 %v523
    %1669 = vmatmul.mubr.bf16.gmra.mxu0 %v522
    %v1670 = vpop.f32.mrf.mxu0
    %v1671 = vadd.f32 0.0, %v1670
    %v1672 = vpop.f32.mrf.mxu0
    %v1673 = vadd.f32 0.0, %v1672
    %v1674 = vpop.f32.mrf.mxu0
    %v1675 = vadd.f32 0.0, %v1674
    %v1676 = vpop.f32.mrf.mxu0
    %v1677 = vadd.f32 0.0, %v1676
    %1678 = vdwg.mxu0
    %v1679 = vadd.f32 %v236, %v1135
    %v1680 = vadd.f32 %v237, %v1137
    %v1681 = vadd.f32 %v238, %v1328
    %v1682 = vadd.f32 %v239, %v1330
    %v1683 = vadd.f32 %v240, %v1521
    %v1684 = vadd.f32 %v241, %v1523
    %v1685 = vadd.f32 %v242, %v1139
    %v1686 = vadd.f32 %v243, %v1141
    %v1687 = vadd.f32 %v244, %v1332
    %v1688 = vadd.f32 %v245, %v1334
    %v1689 = vadd.f32 %v246, %v1525
    %v1690 = vadd.f32 %v247, %v1527
    %v1691 = vadd.f32 %v248, %v1145
    %v1692 = vadd.f32 %v249, %v1147
    %v1693 = vadd.f32 %v250, %v1338
    %v1694 = vadd.f32 %v251, %v1340
    %v1695 = vadd.f32 %v252, %v1531
    %v1696 = vadd.f32 %v253, %v1533
    %v1697 = vadd.f32 %v254, %v1149
    %v1698 = vadd.f32 %v255, %v1151
    %v1699 = vadd.f32 %v256, %v1342
    %v1700 = vadd.f32 %v257, %v1344
    %v1701 = vadd.f32 %v258, %v1535
    %v1702 = vadd.f32 %v259, %v1537
    %v1703 = vadd.f32 %v260, %v1155
    %v1704 = vadd.f32 %v261, %v1157
    %v1705 = vadd.f32 %v262, %v1348
    %v1706 = vadd.f32 %v263, %v1350
    %v1707 = vadd.f32 %v264, %v1541
    %v1708 = vadd.f32 %v265, %v1543
    %v1709 = vadd.f32 %v266, %v1159
    %v1710 = vadd.f32 %v267, %v1161
    %v1711 = vadd.f32 %v268, %v1352
    %v1712 = vadd.f32 %v269, %v1354
    %v1713 = vadd.f32 %v270, %v1545
    %v1714 = vadd.f32 %v271, %v1547
    %v1715 = vadd.f32 %v272, %v1165
    %v1716 = vadd.f32 %v273, %v1167
    %v1717 = vadd.f32 %v274, %v1358
    %v1718 = vadd.f32 %v275, %v1360
    %v1719 = vadd.f32 %v276, %v1551
    %v1720 = vadd.f32 %v277, %v1553
    %v1721 = vadd.f32 %v278, %v1169
    %v1722 = vadd.f32 %v279, %v1171
    %v1723 = vadd.f32 %v280, %v1362
    %v1724 = vadd.f32 %v281, %v1364
    %v1725 = vadd.f32 %v282, %v1555
    %v1726 = vadd.f32 %v283, %v1557
    %v1727 = vadd.f32 %v284, %v1175
    %v1728 = vadd.f32 %v285, %v1177
    %v1729 = vadd.f32 %v286, %v1368
    %v1730 = vadd.f32 %v287, %v1370
    %v1731 = vadd.f32 %v288, %v1561
    %v1732 = vadd.f32 %v289, %v1563
    %v1733 = vadd.f32 %v290, %v1179
    %v1734 = vadd.f32 %v291, %v1181
    %v1735 = vadd.f32 %v292, %v1372
    %v1736 = vadd.f32 %v293, %v1374
    %v1737 = vadd.f32 %v294, %v1565
    %v1738 = vadd.f32 %v295, %v1567
    %v1739 = vadd.f32 %v296, %v1185
    %v1740 = vadd.f32 %v297, %v1187
    %v1741 = vadd.f32 %v298, %v1378
    %v1742 = vadd.f32 %v299, %v1380
    %v1743 = vadd.f32 %v300, %v1571
    %v1744 = vadd.f32 %v301, %v1573
    %v1745 = vadd.f32 %v302, %v1189
    %v1746 = vadd.f32 %v303, %v1191
    %v1747 = vadd.f32 %v304, %v1382
    %v1748 = vadd.f32 %v305, %v1384
    %v1749 = vadd.f32 %v306, %v1575
    %v1750 = vadd.f32 %v307, %v1577
    %v1751 = vadd.f32 %v308, %v1195
    %v1752 = vadd.f32 %v309, %v1197
    %v1753 = vadd.f32 %v310, %v1388
    %v1754 = vadd.f32 %v311, %v1390
    %v1755 = vadd.f32 %v312, %v1581
    %v1756 = vadd.f32 %v313, %v1583
    %v1757 = vadd.f32 %v314, %v1199
    %v1758 = vadd.f32 %v315, %v1201
    %v1759 = vadd.f32 %v316, %v1392
    %v1760 = vadd.f32 %v317, %v1394
    %v1761 = vadd.f32 %v318, %v1585
    %v1762 = vadd.f32 %v319, %v1587
    %v1763 = vadd.f32 %v320, %v1205
    %v1764 = vadd.f32 %v321, %v1207
    %v1765 = vadd.f32 %v322, %v1398
    %v1766 = vadd.f32 %v323, %v1400
    %v1767 = vadd.f32 %v324, %v1591
    %v1768 = vadd.f32 %v325, %v1593
    %v1769 = vadd.f32 %v326, %v1209
    %v1770 = vadd.f32 %v327, %v1211
    %v1771 = vadd.f32 %v328, %v1402
    %v1772 = vadd.f32 %v329, %v1404
    %v1773 = vadd.f32 %v330, %v1595
    %v1774 = vadd.f32 %v331, %v1597
    %v1775 = vadd.f32 %v332, %v1215
    %v1776 = vadd.f32 %v333, %v1217
    %v1777 = vadd.f32 %v334, %v1408
    %v1778 = vadd.f32 %v335, %v1410
    %v1779 = vadd.f32 %v336, %v1601
    %v1780 = vadd.f32 %v337, %v1603
    %v1781 = vadd.f32 %v338, %v1219
    %v1782 = vadd.f32 %v339, %v1221
    %v1783 = vadd.f32 %v340, %v1412
    %v1784 = vadd.f32 %v341, %v1414
    %v1785 = vadd.f32 %v342, %v1605
    %v1786 = vadd.f32 %v343, %v1607
    %v1787 = vadd.f32 %v344, %v1225
    %v1788 = vadd.f32 %v345, %v1227
    %v1789 = vadd.f32 %v346, %v1418
    %v1790 = vadd.f32 %v347, %v1420
    %v1791 = vadd.f32 %v348, %v1611
    %v1792 = vadd.f32 %v349, %v1613
    %v1793 = vadd.f32 %v350, %v1229
    %v1794 = vadd.f32 %v351, %v1231
    %v1795 = vadd.f32 %v352, %v1422
    %v1796 = vadd.f32 %v353, %v1424
    %v1797 = vadd.f32 %v354, %v1615
    %v1798 = vadd.f32 %v355, %v1617
    %v1799 = vadd.f32 %v356, %v1235
    %v1800 = vadd.f32 %v357, %v1237
    %v1801 = vadd.f32 %v358, %v1428
    %v1802 = vadd.f32 %v359, %v1430
    %v1803 = vadd.f32 %v360, %v1621
    %v1804 = vadd.f32 %v361, %v1623
    %v1805 = vadd.f32 %v362, %v1239
    %v1806 = vadd.f32 %v363, %v1241
    %v1807 = vadd.f32 %v364, %v1432
    %v1808 = vadd.f32 %v365, %v1434
    %v1809 = vadd.f32 %v366, %v1625
    %v1810 = vadd.f32 %v367, %v1627
    %v1811 = vadd.f32 %v368, %v1245
    %v1812 = vadd.f32 %v369, %v1247
    %v1813 = vadd.f32 %v370, %v1438
    %v1814 = vadd.f32 %v371, %v1440
    %v1815 = vadd.f32 %v372, %v1631
    %v1816 = vadd.f32 %v373, %v1633
    %v1817 = vadd.f32 %v374, %v1249
    %v1818 = vadd.f32 %v375, %v1251
    %v1819 = vadd.f32 %v376, %v1442
    %v1820 = vadd.f32 %v377, %v1444
    %v1821 = vadd.f32 %v378, %v1635
    %v1822 = vadd.f32 %v379, %v1637
    %v1823 = vadd.f32 %v380, %v1255
    %v1824 = vadd.f32 %v381, %v1257
    %v1825 = vadd.f32 %v382, %v1448
    %v1826 = vadd.f32 %v383, %v1450
    %v1827 = vadd.f32 %v384, %v1641
    %v1828 = vadd.f32 %v385, %v1643
    %v1829 = vadd.f32 %v386, %v1259
    %v1830 = vadd.f32 %v387, %v1261
    %v1831 = vadd.f32 %v388, %v1452
    %v1832 = vadd.f32 %v389, %v1454
    %v1833 = vadd.f32 %v390, %v1645
    %v1834 = vadd.f32 %v391, %v1647
    %v1835 = vadd.f32 %v392, %v1265
    %v1836 = vadd.f32 %v393, %v1267
    %v1837 = vadd.f32 %v394, %v1458
    %v1838 = vadd.f32 %v395, %v1460
    %v1839 = vadd.f32 %v396, %v1651
    %v1840 = vadd.f32 %v397, %v1653
    %v1841 = vadd.f32 %v398, %v1269
    %v1842 = vadd.f32 %v399, %v1271
    %v1843 = vadd.f32 %v400, %v1462
    %v1844 = vadd.f32 %v401, %v1464
    %v1845 = vadd.f32 %v402, %v1655
    %v1846 = vadd.f32 %v403, %v1657
    %v1847 = vadd.f32 %v404, %v1275
    %v1848 = vadd.f32 %v405, %v1277
    %v1849 = vadd.f32 %v406, %v1468
    %v1850 = vadd.f32 %v407, %v1470
    %v1851 = vadd.f32 %v408, %v1661
    %v1852 = vadd.f32 %v409, %v1663
    %v1853 = vadd.f32 %v410, %v1279
    %v1854 = vadd.f32 %v411, %v1281
    %v1855 = vadd.f32 %v412, %v1472
    %v1856 = vadd.f32 %v413, %v1474
    %v1857 = vadd.f32 %v414, %v1665
    %v1858 = vadd.f32 %v415, %v1667
    %v1859 = vadd.f32 %v416, %v1285
    %v1860 = vadd.f32 %v417, %v1287
    %v1861 = vadd.f32 %v418, %v1478
    %v1862 = vadd.f32 %v419, %v1480
    %v1863 = vadd.f32 %v420, %v1671
    %v1864 = vadd.f32 %v421, %v1673
    %v1865 = vadd.f32 %v422, %v1289
    %v1866 = vadd.f32 %v423, %v1291
    %v1867 = vadd.f32 %v424, %v1482
    %v1868 = vadd.f32 %v425, %v1484
    %v1869 = vadd.f32 %v426, %v1675
    %v1870 = vadd.f32 %v427, %v1677
    %1871 = vst [vmem:[#allocation2] sm:$0xff] %v1679
    %1872 = vst [vmem:[#allocation2 + $0x8] sm:$0xff] %v1680
    %1873 = vst [vmem:[#allocation2 + $0x10] sm:$0xff] %v1681
    %1874 = vst [vmem:[#allocation2 + $0x18] sm:$0xff] %v1682
    %1875 = vst [vmem:[#allocation2 + $0x20] sm:$0xff] %v1683
    %1876 = vst [vmem:[#allocation2 + $0x28] sm:$0xff] %v1684
    %1877 = vst [vmem:[#allocation2 + $0x30] sm:$0xff] %v1685
    %1878 = vst [vmem:[#allocation2 + $0x38] sm:$0xff] %v1686
    %1879 = vst [vmem:[#allocation2 + $0x40] sm:$0xff] %v1687
    %1880 = vst [vmem:[#allocation2 + $0x48] sm:$0xff] %v1688
    %1881 = vst [vmem:[#allocation2 + $0x50] sm:$0xff] %v1689
    %1882 = vst [vmem:[#allocation2 + $0x58] sm:$0xff] %v1690
    %1883 = vst [vmem:[#allocation2 + $0x60] sm:$0xff] %v1691
    %1884 = vst [vmem:[#allocation2 + $0x68] sm:$0xff] %v1692
    %1885 = vst [vmem:[#allocation2 + $0x70] sm:$0xff] %v1693
    %1886 = vst [vmem:[#allocation2 + $0x78] sm:$0xff] %v1694
    %1887 = vst [vmem:[#allocation2 + $0x80] sm:$0xff] %v1695
    %1888 = vst [vmem:[#allocation2 + $0x88] sm:$0xff] %v1696
    %1889 = vst [vmem:[#allocation2 + $0x90] sm:$0xff] %v1697
    %1890 = vst [vmem:[#allocation2 + $0x98] sm:$0xff] %v1698
    %1891 = vst [vmem:[#allocation2 + $0xa0] sm:$0xff] %v1699
    %1892 = vst [vmem:[#allocation2 + $0xa8] sm:$0xff] %v1700
    %1893 = vst [vmem:[#allocation2 + $0xb0] sm:$0xff] %v1701
    %1894 = vst [vmem:[#allocation2 + $0xb8] sm:$0xff] %v1702
    %1895 = vst [vmem:[#allocation2 + $0xc0] sm:$0xff] %v1703
    %1896 = vst [vmem:[#allocation2 + $0xc8] sm:$0xff] %v1704
    %1897 = vst [vmem:[#allocation2 + $0xd0] sm:$0xff] %v1705
    %1898 = vst [vmem:[#allocation2 + $0xd8] sm:$0xff] %v1706
    %1899 = vst [vmem:[#allocation2 + $0xe0] sm:$0xff] %v1707
    %1900 = vst [vmem:[#allocation2 + $0xe8] sm:$0xff] %v1708
    %1901 = vst [vmem:[#allocation2 + $0xf0] sm:$0xff] %v1709
    %1902 = vst [vmem:[#allocation2 + $0xf8] sm:$0xff] %v1710
    %1903 = vst [vmem:[#allocation2 + $0x100] sm:$0xff] %v1711
    %1904 = vst [vmem:[#allocation2 + $0x108] sm:$0xff] %v1712
    %1905 = vst [vmem:[#allocation2 + $0x110] sm:$0xff] %v1713
    %1906 = vst [vmem:[#allocation2 + $0x118] sm:$0xff] %v1714
    %1907 = vst [vmem:[#allocation2 + $0x120] sm:$0xff] %v1715
    %1908 = vst [vmem:[#allocation2 + $0x128] sm:$0xff] %v1716
    %1909 = vst [vmem:[#allocation2 + $0x130] sm:$0xff] %v1717
    %1910 = vst [vmem:[#allocation2 + $0x138] sm:$0xff] %v1718
    %1911 = vst [vmem:[#allocation2 + $0x140] sm:$0xff] %v1719
    %1912 = vst [vmem:[#allocation2 + $0x148] sm:$0xff] %v1720
    %1913 = vst [vmem:[#allocation2 + $0x150] sm:$0xff] %v1721
    %1914 = vst [vmem:[#allocation2 + $0x158] sm:$0xff] %v1722
    %1915 = vst [vmem:[#allocation2 + $0x160] sm:$0xff] %v1723
    %1916 = vst [vmem:[#allocation2 + $0x168] sm:$0xff] %v1724
    %1917 = vst [vmem:[#allocation2 + $0x170] sm:$0xff] %v1725
    %1918 = vst [vmem:[#allocation2 + $0x178] sm:$0xff] %v1726
    %1919 = vst [vmem:[#allocation2 + $0x180] sm:$0xff] %v1727
    %1920 = vst [vmem:[#allocation2 + $0x188] sm:$0xff] %v1728
    %1921 = vst [vmem:[#allocation2 + $0x190] sm:$0xff] %v1729
    %1922 = vst [vmem:[#allocation2 + $0x198] sm:$0xff] %v1730
    %1923 = vst [vmem:[#allocation2 + $0x1a0] sm:$0xff] %v1731
    %1924 = vst [vmem:[#allocation2 + $0x1a8] sm:$0xff] %v1732
    %1925 = vst [vmem:[#allocation2 + $0x1b0] sm:$0xff] %v1733
    %1926 = vst [vmem:[#allocation2 + $0x1b8] sm:$0xff] %v1734
    %1927 = vst [vmem:[#allocation2 + $0x1c0] sm:$0xff] %v1735
    %1928 = vst [vmem:[#allocation2 + $0x1c8] sm:$0xff] %v1736
    %1929 = vst [vmem:[#allocation2 + $0x1d0] sm:$0xff] %v1737
    %1930 = vst [vmem:[#allocation2 + $0x1d8] sm:$0xff] %v1738
    %1931 = vst [vmem:[#allocation2 + $0x1e0] sm:$0xff] %v1739
    %1932 = vst [vmem:[#allocation2 + $0x1e8] sm:$0xff] %v1740
    %1933 = vst [vmem:[#allocation2 + $0x1f0] sm:$0xff] %v1741
    %1934 = vst [vmem:[#allocation2 + $0x1f8] sm:$0xff] %v1742
    %1935 = vst [vmem:[#allocation2 + $0x200] sm:$0xff] %v1743
    %1936 = vst [vmem:[#allocation2 + $0x208] sm:$0xff] %v1744
    %1937 = vst [vmem:[#allocation2 + $0x210] sm:$0xff] %v1745
    %1938 = vst [vmem:[#allocation2 + $0x218] sm:$0xff] %v1746
    %1939 = vst [vmem:[#allocation2 + $0x220] sm:$0xff] %v1747
    %1940 = vst [vmem:[#allocation2 + $0x228] sm:$0xff] %v1748
    %1941 = vst [vmem:[#allocation2 + $0x230] sm:$0xff] %v1749
    %1942 = vst [vmem:[#allocation2 + $0x238] sm:$0xff] %v1750
    %1943 = vst [vmem:[#allocation2 + $0x240] sm:$0xff] %v1751
    %1944 = vst [vmem:[#allocation2 + $0x248] sm:$0xff] %v1752
    %1945 = vst [vmem:[#allocation2 + $0x250] sm:$0xff] %v1753
    %1946 = vst [vmem:[#allocation2 + $0x258] sm:$0xff] %v1754
    %1947 = vst [vmem:[#allocation2 + $0x260] sm:$0xff] %v1755
    %1948 = vst [vmem:[#allocation2 + $0x268] sm:$0xff] %v1756
    %1949 = vst [vmem:[#allocation2 + $0x270] sm:$0xff] %v1757
    %1950 = vst [vmem:[#allocation2 + $0x278] sm:$0xff] %v1758
    %1951 = vst [vmem:[#allocation2 + $0x280] sm:$0xff] %v1759
    %1952 = vst [vmem:[#allocation2 + $0x288] sm:$0xff] %v1760
    %1953 = vst [vmem:[#allocation2 + $0x290] sm:$0xff] %v1761
    %1954 = vst [vmem:[#allocation2 + $0x298] sm:$0xff] %v1762
    %1955 = vst [vmem:[#allocation2 + $0x2a0] sm:$0xff] %v1763
    %1956 = vst [vmem:[#allocation2 + $0x2a8] sm:$0xff] %v1764
    %1957 = vst [vmem:[#allocation2 + $0x2b0] sm:$0xff] %v1765
    %1958 = vst [vmem:[#allocation2 + $0x2b8] sm:$0xff] %v1766
    %1959 = vst [vmem:[#allocation2 + $0x2c0] sm:$0xff] %v1767
    %1960 = vst [vmem:[#allocation2 + $0x2c8] sm:$0xff] %v1768
    %1961 = vst [vmem:[#allocation2 + $0x2d0] sm:$0xff] %v1769
    %1962 = vst [vmem:[#allocation2 + $0x2d8] sm:$0xff] %v1770
    %1963 = vst [vmem:[#allocation2 + $0x2e0] sm:$0xff] %v1771
    %1964 = vst [vmem:[#allocation2 + $0x2e8] sm:$0xff] %v1772
    %1965 = vst [vmem:[#allocation2 + $0x2f0] sm:$0xff] %v1773
    %1966 = vst [vmem:[#allocation2 + $0x2f8] sm:$0xff] %v1774
    %1967 = vst [vmem:[#allocation2 + $0x300] sm:$0xff] %v1775
    %1968 = vst [vmem:[#allocation2 + $0x308] sm:$0xff] %v1776
    %1969 = vst [vmem:[#allocation2 + $0x310] sm:$0xff] %v1777
    %1970 = vst [vmem:[#allocation2 + $0x318] sm:$0xff] %v1778
    %1971 = vst [vmem:[#allocation2 + $0x320] sm:$0xff] %v1779
    %1972 = vst [vmem:[#allocation2 + $0x328] sm:$0xff] %v1780
    %1973 = vst [vmem:[#allocation2 + $0x330] sm:$0xff] %v1781
    %1974 = vst [vmem:[#allocation2 + $0x338] sm:$0xff] %v1782
    %1975 = vst [vmem:[#allocation2 + $0x340] sm:$0xff] %v1783
    %1976 = vst [vmem:[#allocation2 + $0x348] sm:$0xff] %v1784
    %1977 = vst [vmem:[#allocation2 + $0x350] sm:$0xff] %v1785
    %1978 = vst [vmem:[#allocation2 + $0x358] sm:$0xff] %v1786
    %1979 = vst [vmem:[#allocation2 + $0x360] sm:$0xff] %v1787
    %1980 = vst [vmem:[#allocation2 + $0x368] sm:$0xff] %v1788
    %1981 = vst [vmem:[#allocation2 + $0x370] sm:$0xff] %v1789
    %1982 = vst [vmem:[#allocation2 + $0x378] sm:$0xff] %v1790
    %1983 = vst [vmem:[#allocation2 + $0x380] sm:$0xff] %v1791
    %1984 = vst [vmem:[#allocation2 + $0x388] sm:$0xff] %v1792
    %1985 = vst [vmem:[#allocation2 + $0x390] sm:$0xff] %v1793
    %1986 = vst [vmem:[#allocation2 + $0x398] sm:$0xff] %v1794
    %1987 = vst [vmem:[#allocation2 + $0x3a0] sm:$0xff] %v1795
    %1988 = vst [vmem:[#allocation2 + $0x3a8] sm:$0xff] %v1796
    %1989 = vst [vmem:[#allocation2 + $0x3b0] sm:$0xff] %v1797
    %1990 = vst [vmem:[#allocation2 + $0x3b8] sm:$0xff] %v1798
    %1991 = vst [vmem:[#allocation2 + $0x3c0] sm:$0xff] %v1799
    %1992 = vst [vmem:[#allocation2 + $0x3c8] sm:$0xff] %v1800
    %1993 = vst [vmem:[#allocation2 + $0x3d0] sm:$0xff] %v1801
    %1994 = vst [vmem:[#allocation2 + $0x3d8] sm:$0xff] %v1802
    %1995 = vst [vmem:[#allocation2 + $0x3e0] sm:$0xff] %v1803
    %1996 = vst [vmem:[#allocation2 + $0x3e8] sm:$0xff] %v1804
    %1997 = vst [vmem:[#allocation2 + $0x3f0] sm:$0xff] %v1805
    %1998 = vst [vmem:[#allocation2 + $0x3f8] sm:$0xff] %v1806
    %1999 = vst [vmem:[#allocation2 + $0x400] sm:$0xff] %v1807
    %2000 = vst [vmem:[#allocation2 + $0x408] sm:$0xff] %v1808
    %2001 = vst [vmem:[#allocation2 + $0x410] sm:$0xff] %v1809
    %2002 = vst [vmem:[#allocation2 + $0x418] sm:$0xff] %v1810
    %2003 = vst [vmem:[#allocation2 + $0x420] sm:$0xff] %v1811
    %2004 = vst [vmem:[#allocation2 + $0x428] sm:$0xff] %v1812
    %2005 = vst [vmem:[#allocation2 + $0x430] sm:$0xff] %v1813
    %2006 = vst [vmem:[#allocation2 + $0x438] sm:$0xff] %v1814
    %2007 = vst [vmem:[#allocation2 + $0x440] sm:$0xff] %v1815
    %2008 = vst [vmem:[#allocation2 + $0x448] sm:$0xff] %v1816
    %2009 = vst [vmem:[#allocation2 + $0x450] sm:$0xff] %v1817
    %2010 = vst [vmem:[#allocation2 + $0x458] sm:$0xff] %v1818
    %2011 = vst [vmem:[#allocation2 + $0x460] sm:$0xff] %v1819
    %2012 = vst [vmem:[#allocation2 + $0x468] sm:$0xff] %v1820
    %2013 = vst [vmem:[#allocation2 + $0x470] sm:$0xff] %v1821
    %2014 = vst [vmem:[#allocation2 + $0x478] sm:$0xff] %v1822
    %2015 = vst [vmem:[#allocation2 + $0x480] sm:$0xff] %v1823
    %2016 = vst [vmem:[#allocation2 + $0x488] sm:$0xff] %v1824
    %2017 = vst [vmem:[#allocation2 + $0x490] sm:$0xff] %v1825
    %2018 = vst [vmem:[#allocation2 + $0x498] sm:$0xff] %v1826
    %2019 = vst [vmem:[#allocation2 + $0x4a0] sm:$0xff] %v1827
    %2020 = vst [vmem:[#allocation2 + $0x4a8] sm:$0xff] %v1828
    %2021 = vst [vmem:[#allocation2 + $0x4b0] sm:$0xff] %v1829
    %2022 = vst [vmem:[#allocation2 + $0x4b8] sm:$0xff] %v1830
    %2023 = vst [vmem:[#allocation2 + $0x4c0] sm:$0xff] %v1831
    %2024 = vst [vmem:[#allocation2 + $0x4c8] sm:$0xff] %v1832
    %2025 = vst [vmem:[#allocation2 + $0x4d0] sm:$0xff] %v1833
    %2026 = vst [vmem:[#allocation2 + $0x4d8] sm:$0xff] %v1834
    %2027 = vst [vmem:[#allocation2 + $0x4e0] sm:$0xff] %v1835
    %2028 = vst [vmem:[#allocation2 + $0x4e8] sm:$0xff] %v1836
    %2029 = vst [vmem:[#allocation2 + $0x4f0] sm:$0xff] %v1837
    %2030 = vst [vmem:[#allocation2 + $0x4f8] sm:$0xff] %v1838
    %2031 = vst [vmem:[#allocation2 + $0x500] sm:$0xff] %v1839
    %2032 = vst [vmem:[#allocation2 + $0x508] sm:$0xff] %v1840
    %2033 = vst [vmem:[#allocation2 + $0x510] sm:$0xff] %v1841
    %2034 = vst [vmem:[#allocation2 + $0x518] sm:$0xff] %v1842
    %2035 = vst [vmem:[#allocation2 + $0x520] sm:$0xff] %v1843
    %2036 = vst [vmem:[#allocation2 + $0x528] sm:$0xff] %v1844
    %2037 = vst [vmem:[#allocation2 + $0x530] sm:$0xff] %v1845
    %2038 = vst [vmem:[#allocation2 + $0x538] sm:$0xff] %v1846
    %2039 = vst [vmem:[#allocation2 + $0x540] sm:$0xff] %v1847
    %2040 = vst [vmem:[#allocation2 + $0x548] sm:$0xff] %v1848
    %2041 = vst [vmem:[#allocation2 + $0x550] sm:$0xff] %v1849
    %2042 = vst [vmem:[#allocation2 + $0x558] sm:$0xff] %v1850
    %2043 = vst [vmem:[#allocation2 + $0x560] sm:$0xff] %v1851
    %2044 = vst [vmem:[#allocation2 + $0x568] sm:$0xff] %v1852
    %2045 = vst [vmem:[#allocation2 + $0x570] sm:$0xff] %v1853
    %2046 = vst [vmem:[#allocation2 + $0x578] sm:$0xff] %v1854
    %2047 = vst [vmem:[#allocation2 + $0x580] sm:$0xff] %v1855
    %2048 = vst [vmem:[#allocation2 + $0x588] sm:$0xff] %v1856
    %2049 = vst [vmem:[#allocation2 + $0x590] sm:$0xff] %v1857
    %2050 = vst [vmem:[#allocation2 + $0x598] sm:$0xff] %v1858
    %2051 = vst [vmem:[#allocation2 + $0x5a0] sm:$0xff] %v1859
    %2052 = vst [vmem:[#allocation2 + $0x5a8] sm:$0xff] %v1860
    %2053 = vst [vmem:[#allocation2 + $0x5b0] sm:$0xff] %v1861
    %2054 = vst [vmem:[#allocation2 + $0x5b8] sm:$0xff] %v1862
    %2055 = vst [vmem:[#allocation2 + $0x5c0] sm:$0xff] %v1863
    %2056 = vst [vmem:[#allocation2 + $0x5c8] sm:$0xff] %v1864
    %2057 = vst [vmem:[#allocation2 + $0x5d0] sm:$0xff] %v1865
    %2058 = vst [vmem:[#allocation2 + $0x5d8] sm:$0xff] %v1866
    %2059 = vst [vmem:[#allocation2 + $0x5e0] sm:$0xff] %v1867
    %2060 = vst [vmem:[#allocation2 + $0x5e8] sm:$0xff] %v1868
    %2061 = vst [vmem:[#allocation2 + $0x5f0] sm:$0xff] %v1869
    %2062 = vst [vmem:[#allocation2 + $0x5f8] sm:$0xff] %v1870
    // Predicated region
    $region22: #{tpu_custom_call.1} parent=1 // pred_check
      %p2063 = pneg %p40
    $region23: #{tpu_custom_call.1} parent=1 // pred_check_branch
      %2065 = sbr.rel (%p2063) target = $region25
    $region24: #{tpu_custom_call.1} parent=1 // pred_region
      %v2066 = vld [vmem:[#allocation2] sm:$0xff]
      %v2067 = vld [vmem:[#allocation2 + $0x8] sm:$0xff]
      %v2068 = vld [vmem:[#allocation2 + $0x10] sm:$0xff]
      %v2069 = vld [vmem:[#allocation2 + $0x18] sm:$0xff]
      %v2070 = vld [vmem:[#allocation2 + $0x20] sm:$0xff]
      %v2071 = vld [vmem:[#allocation2 + $0x28] sm:$0xff]
      %v2072 = vld [vmem:[#allocation2 + $0x30] sm:$0xff]
      %v2073 = vld [vmem:[#allocation2 + $0x38] sm:$0xff]
      %v2074 = vld [vmem:[#allocation2 + $0x40] sm:$0xff]
      %v2075 = vld [vmem:[#allocation2 + $0x48] sm:$0xff]
      %v2076 = vld [vmem:[#allocation2 + $0x50] sm:$0xff]
      %v2077 = vld [vmem:[#allocation2 + $0x58] sm:$0xff]
      %v2078 = vld [vmem:[#allocation2 + $0x60] sm:$0xff]
      %v2079 = vld [vmem:[#allocation2 + $0x68] sm:$0xff]
      %v2080 = vld [vmem:[#allocation2 + $0x70] sm:$0xff]
      %v2081 = vld [vmem:[#allocation2 + $0x78] sm:$0xff]
      %v2082 = vld [vmem:[#allocation2 + $0x80] sm:$0xff]
      %v2083 = vld [vmem:[#allocation2 + $0x88] sm:$0xff]
      %v2084 = vld [vmem:[#allocation2 + $0x90] sm:$0xff]
      %v2085 = vld [vmem:[#allocation2 + $0x98] sm:$0xff]
      %v2086 = vld [vmem:[#allocation2 + $0xa0] sm:$0xff]
      %v2087 = vld [vmem:[#allocation2 + $0xa8] sm:$0xff]
      %v2088 = vld [vmem:[#allocation2 + $0xb0] sm:$0xff]
      %v2089 = vld [vmem:[#allocation2 + $0xb8] sm:$0xff]
      %v2090 = vld [vmem:[#allocation2 + $0xc0] sm:$0xff]
      %v2091 = vld [vmem:[#allocation2 + $0xc8] sm:$0xff]
      %v2092 = vld [vmem:[#allocation2 + $0xd0] sm:$0xff]
      %v2093 = vld [vmem:[#allocation2 + $0xd8] sm:$0xff]
      %v2094 = vld [vmem:[#allocation2 + $0xe0] sm:$0xff]
      %v2095 = vld [vmem:[#allocation2 + $0xe8] sm:$0xff]
      %v2096 = vld [vmem:[#allocation2 + $0xf0] sm:$0xff]
      %v2097 = vld [vmem:[#allocation2 + $0xf8] sm:$0xff]
      %v2098 = vld [vmem:[#allocation2 + $0x100] sm:$0xff]
      %v2099 = vld [vmem:[#allocation2 + $0x108] sm:$0xff]
      %v2100 = vld [vmem:[#allocation2 + $0x110] sm:$0xff]
      %v2101 = vld [vmem:[#allocation2 + $0x118] sm:$0xff]
      %v2102 = vld [vmem:[#allocation2 + $0x120] sm:$0xff]
      %v2103 = vld [vmem:[#allocation2 + $0x128] sm:$0xff]
      %v2104 = vld [vmem:[#allocation2 + $0x130] sm:$0xff]
      %v2105 = vld [vmem:[#allocation2 + $0x138] sm:$0xff]
      %v2106 = vld [vmem:[#allocation2 + $0x140] sm:$0xff]
      %v2107 = vld [vmem:[#allocation2 + $0x148] sm:$0xff]
      %v2108 = vld [vmem:[#allocation2 + $0x150] sm:$0xff]
      %v2109 = vld [vmem:[#allocation2 + $0x158] sm:$0xff]
      %v2110 = vld [vmem:[#allocation2 + $0x160] sm:$0xff]
      %v2111 = vld [vmem:[#allocation2 + $0x168] sm:$0xff]
      %v2112 = vld [vmem:[#allocation2 + $0x170] sm:$0xff]
      %v2113 = vld [vmem:[#allocation2 + $0x178] sm:$0xff]
      %v2114 = vld [vmem:[#allocation2 + $0x180] sm:$0xff]
      %v2115 = vld [vmem:[#allocation2 + $0x188] sm:$0xff]
      %v2116 = vld [vmem:[#allocation2 + $0x190] sm:$0xff]
      %v2117 = vld [vmem:[#allocation2 + $0x198] sm:$0xff]
      %v2118 = vld [vmem:[#allocation2 + $0x1a0] sm:$0xff]
      %v2119 = vld [vmem:[#allocation2 + $0x1a8] sm:$0xff]
      %v2120 = vld [vmem:[#allocation2 + $0x1b0] sm:$0xff]
      %v2121 = vld [vmem:[#allocation2 + $0x1b8] sm:$0xff]
      %v2122 = vld [vmem:[#allocation2 + $0x1c0] sm:$0xff]
      %v2123 = vld [vmem:[#allocation2 + $0x1c8] sm:$0xff]
      %v2124 = vld [vmem:[#allocation2 + $0x1d0] sm:$0xff]
      %v2125 = vld [vmem:[#allocation2 + $0x1d8] sm:$0xff]
      %v2126 = vld [vmem:[#allocation2 + $0x1e0] sm:$0xff]
      %v2127 = vld [vmem:[#allocation2 + $0x1e8] sm:$0xff]
      %v2128 = vld [vmem:[#allocation2 + $0x1f0] sm:$0xff]
      %v2129 = vld [vmem:[#allocation2 + $0x1f8] sm:$0xff]
      %v2130 = vld [vmem:[#allocation2 + $0x200] sm:$0xff]
      %v2131 = vld [vmem:[#allocation2 + $0x208] sm:$0xff]
      %v2132 = vld [vmem:[#allocation2 + $0x210] sm:$0xff]
      %v2133 = vld [vmem:[#allocation2 + $0x218] sm:$0xff]
      %v2134 = vld [vmem:[#allocation2 + $0x220] sm:$0xff]
      %v2135 = vld [vmem:[#allocation2 + $0x228] sm:$0xff]
      %v2136 = vld [vmem:[#allocation2 + $0x230] sm:$0xff]
      %v2137 = vld [vmem:[#allocation2 + $0x238] sm:$0xff]
      %v2138 = vld [vmem:[#allocation2 + $0x240] sm:$0xff]
      %v2139 = vld [vmem:[#allocation2 + $0x248] sm:$0xff]
      %v2140 = vld [vmem:[#allocation2 + $0x250] sm:$0xff]
      %v2141 = vld [vmem:[#allocation2 + $0x258] sm:$0xff]
      %v2142 = vld [vmem:[#allocation2 + $0x260] sm:$0xff]
      %v2143 = vld [vmem:[#allocation2 + $0x268] sm:$0xff]
      %v2144 = vld [vmem:[#allocation2 + $0x270] sm:$0xff]
      %v2145 = vld [vmem:[#allocation2 + $0x278] sm:$0xff]
      %v2146 = vld [vmem:[#allocation2 + $0x280] sm:$0xff]
      %v2147 = vld [vmem:[#allocation2 + $0x288] sm:$0xff]
      %v2148 = vld [vmem:[#allocation2 + $0x290] sm:$0xff]
      %v2149 = vld [vmem:[#allocation2 + $0x298] sm:$0xff]
      %v2150 = vld [vmem:[#allocation2 + $0x2a0] sm:$0xff]
      %v2151 = vld [vmem:[#allocation2 + $0x2a8] sm:$0xff]
      %v2152 = vld [vmem:[#allocation2 + $0x2b0] sm:$0xff]
      %v2153 = vld [vmem:[#allocation2 + $0x2b8] sm:$0xff]
      %v2154 = vld [vmem:[#allocation2 + $0x2c0] sm:$0xff]
      %v2155 = vld [vmem:[#allocation2 + $0x2c8] sm:$0xff]
      %v2156 = vld [vmem:[#allocation2 + $0x2d0] sm:$0xff]
      %v2157 = vld [vmem:[#allocation2 + $0x2d8] sm:$0xff]
      %v2158 = vld [vmem:[#allocation2 + $0x2e0] sm:$0xff]
      %v2159 = vld [vmem:[#allocation2 + $0x2e8] sm:$0xff]
      %v2160 = vld [vmem:[#allocation2 + $0x2f0] sm:$0xff]
      %v2161 = vld [vmem:[#allocation2 + $0x2f8] sm:$0xff]
      %v2162 = vld [vmem:[#allocation2 + $0x300] sm:$0xff]
      %v2163 = vld [vmem:[#allocation2 + $0x308] sm:$0xff]
      %v2164 = vld [vmem:[#allocation2 + $0x310] sm:$0xff]
      %v2165 = vld [vmem:[#allocation2 + $0x318] sm:$0xff]
      %v2166 = vld [vmem:[#allocation2 + $0x320] sm:$0xff]
      %v2167 = vld [vmem:[#allocation2 + $0x328] sm:$0xff]
      %v2168 = vld [vmem:[#allocation2 + $0x330] sm:$0xff]
      %v2169 = vld [vmem:[#allocation2 + $0x338] sm:$0xff]
      %v2170 = vld [vmem:[#allocation2 + $0x340] sm:$0xff]
      %v2171 = vld [vmem:[#allocation2 + $0x348] sm:$0xff]
      %v2172 = vld [vmem:[#allocation2 + $0x350] sm:$0xff]
      %v2173 = vld [vmem:[#allocation2 + $0x358] sm:$0xff]
      %v2174 = vld [vmem:[#allocation2 + $0x360] sm:$0xff]
      %v2175 = vld [vmem:[#allocation2 + $0x368] sm:$0xff]
      %v2176 = vld [vmem:[#allocation2 + $0x370] sm:$0xff]
      %v2177 = vld [vmem:[#allocation2 + $0x378] sm:$0xff]
      %v2178 = vld [vmem:[#allocation2 + $0x380] sm:$0xff]
      %v2179 = vld [vmem:[#allocation2 + $0x388] sm:$0xff]
      %v2180 = vld [vmem:[#allocation2 + $0x390] sm:$0xff]
      %v2181 = vld [vmem:[#allocation2 + $0x398] sm:$0xff]
      %v2182 = vld [vmem:[#allocation2 + $0x3a0] sm:$0xff]
      %v2183 = vld [vmem:[#allocation2 + $0x3a8] sm:$0xff]
      %v2184 = vld [vmem:[#allocation2 + $0x3b0] sm:$0xff]
      %v2185 = vld [vmem:[#allocation2 + $0x3b8] sm:$0xff]
      %v2186 = vld [vmem:[#allocation2 + $0x3c0] sm:$0xff]
      %v2187 = vld [vmem:[#allocation2 + $0x3c8] sm:$0xff]
      %v2188 = vld [vmem:[#allocation2 + $0x3d0] sm:$0xff]
      %v2189 = vld [vmem:[#allocation2 + $0x3d8] sm:$0xff]
      %v2190 = vld [vmem:[#allocation2 + $0x3e0] sm:$0xff]
      %v2191 = vld [vmem:[#allocation2 + $0x3e8] sm:$0xff]
      %v2192 = vld [vmem:[#allocation2 + $0x3f0] sm:$0xff]
      %v2193 = vld [vmem:[#allocation2 + $0x3f8] sm:$0xff]
      %v2194 = vld [vmem:[#allocation2 + $0x400] sm:$0xff]
      %v2195 = vld [vmem:[#allocation2 + $0x408] sm:$0xff]
      %v2196 = vld [vmem:[#allocation2 + $0x410] sm:$0xff]
      %v2197 = vld [vmem:[#allocation2 + $0x418] sm:$0xff]
      %v2198 = vld [vmem:[#allocation2 + $0x420] sm:$0xff]
      %v2199 = vld [vmem:[#allocation2 + $0x428] sm:$0xff]
      %v2200 = vld [vmem:[#allocation2 + $0x430] sm:$0xff]
      %v2201 = vld [vmem:[#allocation2 + $0x438] sm:$0xff]
      %v2202 = vld [vmem:[#allocation2 + $0x440] sm:$0xff]
      %v2203 = vld [vmem:[#allocation2 + $0x448] sm:$0xff]
      %v2204 = vld [vmem:[#allocation2 + $0x450] sm:$0xff]
      %v2205 = vld [vmem:[#allocation2 + $0x458] sm:$0xff]
      %v2206 = vld [vmem:[#allocation2 + $0x460] sm:$0xff]
      %v2207 = vld [vmem:[#allocation2 + $0x468] sm:$0xff]
      %v2208 = vld [vmem:[#allocation2 + $0x470] sm:$0xff]
      %v2209 = vld [vmem:[#allocation2 + $0x478] sm:$0xff]
      %v2210 = vld [vmem:[#allocation2 + $0x480] sm:$0xff]
      %v2211 = vld [vmem:[#allocation2 + $0x488] sm:$0xff]
      %v2212 = vld [vmem:[#allocation2 + $0x490] sm:$0xff]
      %v2213 = vld [vmem:[#allocation2 + $0x498] sm:$0xff]
      %v2214 = vld [vmem:[#allocation2 + $0x4a0] sm:$0xff]
      %v2215 = vld [vmem:[#allocation2 + $0x4a8] sm:$0xff]
      %v2216 = vld [vmem:[#allocation2 + $0x4b0] sm:$0xff]
      %v2217 = vld [vmem:[#allocation2 + $0x4b8] sm:$0xff]
      %v2218 = vld [vmem:[#allocation2 + $0x4c0] sm:$0xff]
      %v2219 = vld [vmem:[#allocation2 + $0x4c8] sm:$0xff]
      %v2220 = vld [vmem:[#allocation2 + $0x4d0] sm:$0xff]
      %v2221 = vld [vmem:[#allocation2 + $0x4d8] sm:$0xff]
      %v2222 = vld [vmem:[#allocation2 + $0x4e0] sm:$0xff]
      %v2223 = vld [vmem:[#allocation2 + $0x4e8] sm:$0xff]
      %v2224 = vld [vmem:[#allocation2 + $0x4f0] sm:$0xff]
      %v2225 = vld [vmem:[#allocation2 + $0x4f8] sm:$0xff]
      %v2226 = vld [vmem:[#allocation2 + $0x500] sm:$0xff]
      %v2227 = vld [vmem:[#allocation2 + $0x508] sm:$0xff]
      %v2228 = vld [vmem:[#allocation2 + $0x510] sm:$0xff]
      %v2229 = vld [vmem:[#allocation2 + $0x518] sm:$0xff]
      %v2230 = vld [vmem:[#allocation2 + $0x520] sm:$0xff]
      %v2231 = vld [vmem:[#allocation2 + $0x528] sm:$0xff]
      %v2232 = vld [vmem:[#allocation2 + $0x530] sm:$0xff]
      %v2233 = vld [vmem:[#allocation2 + $0x538] sm:$0xff]
      %v2234 = vld [vmem:[#allocation2 + $0x540] sm:$0xff]
      %v2235 = vld [vmem:[#allocation2 + $0x548] sm:$0xff]
      %v2236 = vld [vmem:[#allocation2 + $0x550] sm:$0xff]
      %v2237 = vld [vmem:[#allocation2 + $0x558] sm:$0xff]
      %v2238 = vld [vmem:[#allocation2 + $0x560] sm:$0xff]
      %v2239 = vld [vmem:[#allocation2 + $0x568] sm:$0xff]
      %v2240 = vld [vmem:[#allocation2 + $0x570] sm:$0xff]
      %v2241 = vld [vmem:[#allocation2 + $0x578] sm:$0xff]
      %v2242 = vld [vmem:[#allocation2 + $0x580] sm:$0xff]
      %v2243 = vld [vmem:[#allocation2 + $0x588] sm:$0xff]
      %v2244 = vld [vmem:[#allocation2 + $0x590] sm:$0xff]
      %v2245 = vld [vmem:[#allocation2 + $0x598] sm:$0xff]
      %v2246 = vld [vmem:[#allocation2 + $0x5a0] sm:$0xff]
      %v2247 = vld [vmem:[#allocation2 + $0x5a8] sm:$0xff]
      %v2248 = vld [vmem:[#allocation2 + $0x5b0] sm:$0xff]
      %v2249 = vld [vmem:[#allocation2 + $0x5b8] sm:$0xff]
      %v2250 = vld [vmem:[#allocation2 + $0x5c0] sm:$0xff]
      %v2251 = vld [vmem:[#allocation2 + $0x5c8] sm:$0xff]
      %v2252 = vld [vmem:[#allocation2 + $0x5d0] sm:$0xff]
      %v2253 = vld [vmem:[#allocation2 + $0x5d8] sm:$0xff]
      %v2254 = vld [vmem:[#allocation2 + $0x5e0] sm:$0xff]
      %v2255 = vld [vmem:[#allocation2 + $0x5e8] sm:$0xff]
      %v2256 = vld [vmem:[#allocation2 + $0x5f0] sm:$0xff]
      %v2257 = vld [vmem:[#allocation2 + $0x5f8] sm:$0xff]
      %v2258 = vpack.c.bf16 %v2072, %v2066
      %v2259 = vpack.c.bf16 %v2073, %v2067
      %v2260 = vpack.c.bf16 %v2074, %v2068
      %v2261 = vpack.c.bf16 %v2075, %v2069
      %v2262 = vpack.c.bf16 %v2076, %v2070
      %v2263 = vpack.c.bf16 %v2077, %v2071
      %v2264 = vpack.c.bf16 %v2084, %v2078
      %v2265 = vpack.c.bf16 %v2085, %v2079
      %v2266 = vpack.c.bf16 %v2086, %v2080
      %v2267 = vpack.c.bf16 %v2087, %v2081
      %v2268 = vpack.c.bf16 %v2088, %v2082
      %v2269 = vpack.c.bf16 %v2089, %v2083
      %v2270 = vpack.c.bf16 %v2096, %v2090
      %v2271 = vpack.c.bf16 %v2097, %v2091
      %v2272 = vpack.c.bf16 %v2098, %v2092
      %v2273 = vpack.c.bf16 %v2099, %v2093
      %v2274 = vpack.c.bf16 %v2100, %v2094
      %v2275 = vpack.c.bf16 %v2101, %v2095
      %v2276 = vpack.c.bf16 %v2108, %v2102
      %v2277 = vpack.c.bf16 %v2109, %v2103
      %v2278 = vpack.c.bf16 %v2110, %v2104
      %v2279 = vpack.c.bf16 %v2111, %v2105
      %v2280 = vpack.c.bf16 %v2112, %v2106
      %v2281 = vpack.c.bf16 %v2113, %v2107
      %v2282 = vpack.c.bf16 %v2120, %v2114
      %v2283 = vpack.c.bf16 %v2121, %v2115
      %v2284 = vpack.c.bf16 %v2122, %v2116
      %v2285 = vpack.c.bf16 %v2123, %v2117
      %v2286 = vpack.c.bf16 %v2124, %v2118
      %v2287 = vpack.c.bf16 %v2125, %v2119
      %v2288 = vpack.c.bf16 %v2132, %v2126
      %v2289 = vpack.c.bf16 %v2133, %v2127
      %v2290 = vpack.c.bf16 %v2134, %v2128
      %v2291 = vpack.c.bf16 %v2135, %v2129
      %v2292 = vpack.c.bf16 %v2136, %v2130
      %v2293 = vpack.c.bf16 %v2137, %v2131
      %v2294 = vpack.c.bf16 %v2144, %v2138
      %v2295 = vpack.c.bf16 %v2145, %v2139
      %v2296 = vpack.c.bf16 %v2146, %v2140
      %v2297 = vpack.c.bf16 %v2147, %v2141
      %v2298 = vpack.c.bf16 %v2148, %v2142
      %v2299 = vpack.c.bf16 %v2149, %v2143
      %v2300 = vpack.c.bf16 %v2156, %v2150
      %v2301 = vpack.c.bf16 %v2157, %v2151
      %v2302 = vpack.c.bf16 %v2158, %v2152
      %v2303 = vpack.c.bf16 %v2159, %v2153
      %v2304 = vpack.c.bf16 %v2160, %v2154
      %v2305 = vpack.c.bf16 %v2161, %v2155
      %v2306 = vpack.c.bf16 %v2168, %v2162
      %v2307 = vpack.c.bf16 %v2169, %v2163
      %v2308 = vpack.c.bf16 %v2170, %v2164
      %v2309 = vpack.c.bf16 %v2171, %v2165
      %v2310 = vpack.c.bf16 %v2172, %v2166
      %v2311 = vpack.c.bf16 %v2173, %v2167
      %v2312 = vpack.c.bf16 %v2180, %v2174
      %v2313 = vpack.c.bf16 %v2181, %v2175
      %v2314 = vpack.c.bf16 %v2182, %v2176
      %v2315 = vpack.c.bf16 %v2183, %v2177
      %v2316 = vpack.c.bf16 %v2184, %v2178
      %v2317 = vpack.c.bf16 %v2185, %v2179
      %v2318 = vpack.c.bf16 %v2192, %v2186
      %v2319 = vpack.c.bf16 %v2193, %v2187
      %v2320 = vpack.c.bf16 %v2194, %v2188
      %v2321 = vpack.c.bf16 %v2195, %v2189
      %v2322 = vpack.c.bf16 %v2196, %v2190
      %v2323 = vpack.c.bf16 %v2197, %v2191
      %v2324 = vpack.c.bf16 %v2204, %v2198
      %v2325 = vpack.c.bf16 %v2205, %v2199
      %v2326 = vpack.c.bf16 %v2206, %v2200
      %v2327 = vpack.c.bf16 %v2207, %v2201
      %v2328 = vpack.c.bf16 %v2208, %v2202
      %v2329 = vpack.c.bf16 %v2209, %v2203
      %v2330 = vpack.c.bf16 %v2216, %v2210
      %v2331 = vpack.c.bf16 %v2217, %v2211
      %v2332 = vpack.c.bf16 %v2218, %v2212
      %v2333 = vpack.c.bf16 %v2219, %v2213
      %v2334 = vpack.c.bf16 %v2220, %v2214
      %v2335 = vpack.c.bf16 %v2221, %v2215
      %v2336 = vpack.c.bf16 %v2228, %v2222
      %v2337 = vpack.c.bf16 %v2229, %v2223
      %v2338 = vpack.c.bf16 %v2230, %v2224
      %v2339 = vpack.c.bf16 %v2231, %v2225
      %v2340 = vpack.c.bf16 %v2232, %v2226
      %v2341 = vpack.c.bf16 %v2233, %v2227
      %v2342 = vpack.c.bf16 %v2240, %v2234
      %v2343 = vpack.c.bf16 %v2241, %v2235
      %v2344 = vpack.c.bf16 %v2242, %v2236
      %v2345 = vpack.c.bf16 %v2243, %v2237
      %v2346 = vpack.c.bf16 %v2244, %v2238
      %v2347 = vpack.c.bf16 %v2245, %v2239
      %v2348 = vpack.c.bf16 %v2252, %v2246
      %v2349 = vpack.c.bf16 %v2253, %v2247
      %v2350 = vpack.c.bf16 %v2254, %v2248
      %v2351 = vpack.c.bf16 %v2255, %v2249
      %v2352 = vpack.c.bf16 %v2256, %v2250
      %v2353 = vpack.c.bf16 %v2257, %v2251
      %v2450 = vunpack.c.l.b16 %v2258
      %v2451 = vunpack.c.l.b16 %v2259
      %v2452 = vunpack.c.l.b16 %v2260
      %v2453 = vunpack.c.l.b16 %v2261
      %v2454 = vunpack.c.l.b16 %v2262
      %v2455 = vunpack.c.l.b16 %v2263
      %v2456 = vunpack.c.h.b16 %v2258
      %v2457 = vunpack.c.h.b16 %v2259
      %v2458 = vunpack.c.h.b16 %v2260
      %v2459 = vunpack.c.h.b16 %v2261
      %v2460 = vunpack.c.h.b16 %v2262
      %v2461 = vunpack.c.h.b16 %v2263
      %v2462 = vunpack.c.l.b16 %v2264
      %v2463 = vunpack.c.l.b16 %v2265
      %v2464 = vunpack.c.l.b16 %v2266
      %v2465 = vunpack.c.l.b16 %v2267
      %v2466 = vunpack.c.l.b16 %v2268
      %v2467 = vunpack.c.l.b16 %v2269
      %v2468 = vunpack.c.h.b16 %v2264
      %v2469 = vunpack.c.h.b16 %v2265
      %v2470 = vunpack.c.h.b16 %v2266
      %v2471 = vunpack.c.h.b16 %v2267
      %v2472 = vunpack.c.h.b16 %v2268
      %v2473 = vunpack.c.h.b16 %v2269
      %v2474 = vunpack.c.l.b16 %v2270
      %v2475 = vunpack.c.l.b16 %v2271
      %v2476 = vunpack.c.l.b16 %v2272
      %v2477 = vunpack.c.l.b16 %v2273
      %v2478 = vunpack.c.l.b16 %v2274
      %v2479 = vunpack.c.l.b16 %v2275
      %v2480 = vunpack.c.h.b16 %v2270
      %v2481 = vunpack.c.h.b16 %v2271
      %v2482 = vunpack.c.h.b16 %v2272
      %v2483 = vunpack.c.h.b16 %v2273
      %v2484 = vunpack.c.h.b16 %v2274
      %v2485 = vunpack.c.h.b16 %v2275
      %v2486 = vunpack.c.l.b16 %v2276
      %v2487 = vunpack.c.l.b16 %v2277
      %v2488 = vunpack.c.l.b16 %v2278
      %v2489 = vunpack.c.l.b16 %v2279
      %v2490 = vunpack.c.l.b16 %v2280
      %v2491 = vunpack.c.l.b16 %v2281
      %v2492 = vunpack.c.h.b16 %v2276
      %v2493 = vunpack.c.h.b16 %v2277
      %v2494 = vunpack.c.h.b16 %v2278
      %v2495 = vunpack.c.h.b16 %v2279
      %v2496 = vunpack.c.h.b16 %v2280
      %v2497 = vunpack.c.h.b16 %v2281
      %v2498 = vunpack.c.l.b16 %v2282
      %v2499 = vunpack.c.l.b16 %v2283
      %v2500 = vunpack.c.l.b16 %v2284
      %v2501 = vunpack.c.l.b16 %v2285
      %v2502 = vunpack.c.l.b16 %v2286
      %v2503 = vunpack.c.l.b16 %v2287
      %v2504 = vunpack.c.h.b16 %v2282
      %v2505 = vunpack.c.h.b16 %v2283
      %v2506 = vunpack.c.h.b16 %v2284
      %v2507 = vunpack.c.h.b16 %v2285
      %v2508 = vunpack.c.h.b16 %v2286
      %v2509 = vunpack.c.h.b16 %v2287
      %v2510 = vunpack.c.l.b16 %v2288
      %v2511 = vunpack.c.l.b16 %v2289
      %v2512 = vunpack.c.l.b16 %v2290
      %v2513 = vunpack.c.l.b16 %v2291
      %v2514 = vunpack.c.l.b16 %v2292
      %v2515 = vunpack.c.l.b16 %v2293
      %v2516 = vunpack.c.h.b16 %v2288
      %v2517 = vunpack.c.h.b16 %v2289
      %v2518 = vunpack.c.h.b16 %v2290
      %v2519 = vunpack.c.h.b16 %v2291
      %v2520 = vunpack.c.h.b16 %v2292
      %v2521 = vunpack.c.h.b16 %v2293
      %v2522 = vunpack.c.l.b16 %v2294
      %v2523 = vunpack.c.l.b16 %v2295
      %v2524 = vunpack.c.l.b16 %v2296
      %v2525 = vunpack.c.l.b16 %v2297
      %v2526 = vunpack.c.l.b16 %v2298
      %v2527 = vunpack.c.l.b16 %v2299
      %v2528 = vunpack.c.h.b16 %v2294
      %v2529 = vunpack.c.h.b16 %v2295
      %v2530 = vunpack.c.h.b16 %v2296
      %v2531 = vunpack.c.h.b16 %v2297
      %v2532 = vunpack.c.h.b16 %v2298
      %v2533 = vunpack.c.h.b16 %v2299
      %v2534 = vunpack.c.l.b16 %v2300
      %v2535 = vunpack.c.l.b16 %v2301
      %v2536 = vunpack.c.l.b16 %v2302
      %v2537 = vunpack.c.l.b16 %v2303
      %v2538 = vunpack.c.l.b16 %v2304
      %v2539 = vunpack.c.l.b16 %v2305
      %v2540 = vunpack.c.h.b16 %v2300
      %v2541 = vunpack.c.h.b16 %v2301
      %v2542 = vunpack.c.h.b16 %v2302
      %v2543 = vunpack.c.h.b16 %v2303
      %v2544 = vunpack.c.h.b16 %v2304
      %v2545 = vunpack.c.h.b16 %v2305
      %v2546 = vunpack.c.l.b16 %v2306
      %v2547 = vunpack.c.l.b16 %v2307
      %v2548 = vunpack.c.l.b16 %v2308
      %v2549 = vunpack.c.l.b16 %v2309
      %v2550 = vunpack.c.l.b16 %v2310
      %v2551 = vunpack.c.l.b16 %v2311
      %v2552 = vunpack.c.h.b16 %v2306
      %v2553 = vunpack.c.h.b16 %v2307
      %v2554 = vunpack.c.h.b16 %v2308
      %v2555 = vunpack.c.h.b16 %v2309
      %v2556 = vunpack.c.h.b16 %v2310
      %v2557 = vunpack.c.h.b16 %v2311
      %v2558 = vunpack.c.l.b16 %v2312
      %v2559 = vunpack.c.l.b16 %v2313
      %v2560 = vunpack.c.l.b16 %v2314
      %v2561 = vunpack.c.l.b16 %v2315
      %v2562 = vunpack.c.l.b16 %v2316
      %v2563 = vunpack.c.l.b16 %v2317
      %v2564 = vunpack.c.h.b16 %v2312
      %v2565 = vunpack.c.h.b16 %v2313
      %v2566 = vunpack.c.h.b16 %v2314
      %v2567 = vunpack.c.h.b16 %v2315
      %v2568 = vunpack.c.h.b16 %v2316
      %v2569 = vunpack.c.h.b16 %v2317
      %v2570 = vunpack.c.l.b16 %v2318
      %v2571 = vunpack.c.l.b16 %v2319
      %v2572 = vunpack.c.l.b16 %v2320
      %v2573 = vunpack.c.l.b16 %v2321
      %v2574 = vunpack.c.l.b16 %v2322
      %v2575 = vunpack.c.l.b16 %v2323
      %v2576 = vunpack.c.h.b16 %v2318
      %v2577 = vunpack.c.h.b16 %v2319
      %v2578 = vunpack.c.h.b16 %v2320
      %v2579 = vunpack.c.h.b16 %v2321
      %v2580 = vunpack.c.h.b16 %v2322
      %v2581 = vunpack.c.h.b16 %v2323
      %v2582 = vunpack.c.l.b16 %v2324
      %v2583 = vunpack.c.l.b16 %v2325
      %v2584 = vunpack.c.l.b16 %v2326
      %v2585 = vunpack.c.l.b16 %v2327
      %v2586 = vunpack.c.l.b16 %v2328
      %v2587 = vunpack.c.l.b16 %v2329
      %v2588 = vunpack.c.h.b16 %v2324
      %v2589 = vunpack.c.h.b16 %v2325
      %v2590 = vunpack.c.h.b16 %v2326
      %v2591 = vunpack.c.h.b16 %v2327
      %v2592 = vunpack.c.h.b16 %v2328
      %v2593 = vunpack.c.h.b16 %v2329
      %v2594 = vunpack.c.l.b16 %v2330
      %v2595 = vunpack.c.l.b16 %v2331
      %v2596 = vunpack.c.l.b16 %v2332
      %v2597 = vunpack.c.l.b16 %v2333
      %v2598 = vunpack.c.l.b16 %v2334
      %v2599 = vunpack.c.l.b16 %v2335
      %v2600 = vunpack.c.h.b16 %v2330
      %v2601 = vunpack.c.h.b16 %v2331
      %v2602 = vunpack.c.h.b16 %v2332
      %v2603 = vunpack.c.h.b16 %v2333
      %v2604 = vunpack.c.h.b16 %v2334
      %v2605 = vunpack.c.h.b16 %v2335
      %v2606 = vunpack.c.l.b16 %v2336
      %v2607 = vunpack.c.l.b16 %v2337
      %v2608 = vunpack.c.l.b16 %v2338
      %v2609 = vunpack.c.l.b16 %v2339
      %v2610 = vunpack.c.l.b16 %v2340
      %v2611 = vunpack.c.l.b16 %v2341
      %v2612 = vunpack.c.h.b16 %v2336
      %v2613 = vunpack.c.h.b16 %v2337
      %v2614 = vunpack.c.h.b16 %v2338
      %v2615 = vunpack.c.h.b16 %v2339
      %v2616 = vunpack.c.h.b16 %v2340
      %v2617 = vunpack.c.h.b16 %v2341
      %v2618 = vunpack.c.l.b16 %v2342
      %v2619 = vunpack.c.l.b16 %v2343
      %v2620 = vunpack.c.l.b16 %v2344
      %v2621 = vunpack.c.l.b16 %v2345
      %v2622 = vunpack.c.l.b16 %v2346
      %v2623 = vunpack.c.l.b16 %v2347
      %v2624 = vunpack.c.h.b16 %v2342
      %v2625 = vunpack.c.h.b16 %v2343
      %v2626 = vunpack.c.h.b16 %v2344
      %v2627 = vunpack.c.h.b16 %v2345
      %v2628 = vunpack.c.h.b16 %v2346
      %v2629 = vunpack.c.h.b16 %v2347
      %v2630 = vunpack.c.l.b16 %v2348
      %v2631 = vunpack.c.l.b16 %v2349
      %v2632 = vunpack.c.l.b16 %v2350
      %v2633 = vunpack.c.l.b16 %v2351
      %v2634 = vunpack.c.l.b16 %v2352
      %v2635 = vunpack.c.l.b16 %v2353
      %v2636 = vunpack.c.h.b16 %v2348
      %v2637 = vunpack.c.h.b16 %v2349
      %v2638 = vunpack.c.h.b16 %v2350
      %v2639 = vunpack.c.h.b16 %v2351
      %v2640 = vunpack.c.h.b16 %v2352
      %v2641 = vunpack.c.h.b16 %v2353
      %v2642 = vpack.c.b16 %v2451, %v2450
      %v2643 = vpack.c.b16 %v2453, %v2452
      %v2644 = vpack.c.b16 %v2455, %v2454
      %v2645 = vpack.c.b16 %v2457, %v2456
      %v2646 = vpack.c.b16 %v2459, %v2458
      %v2647 = vpack.c.b16 %v2461, %v2460
      %v2648 = vpack.c.b16 %v2463, %v2462
      %v2649 = vpack.c.b16 %v2465, %v2464
      %v2650 = vpack.c.b16 %v2467, %v2466
      %v2651 = vpack.c.b16 %v2469, %v2468
      %v2652 = vpack.c.b16 %v2471, %v2470
      %v2653 = vpack.c.b16 %v2473, %v2472
      %v2654 = vpack.c.b16 %v2475, %v2474
      %v2655 = vpack.c.b16 %v2477, %v2476
      %v2656 = vpack.c.b16 %v2479, %v2478
      %v2657 = vpack.c.b16 %v2481, %v2480
      %v2658 = vpack.c.b16 %v2483, %v2482
      %v2659 = vpack.c.b16 %v2485, %v2484
      %v2660 = vpack.c.b16 %v2487, %v2486
      %v2661 = vpack.c.b16 %v2489, %v2488
      %v2662 = vpack.c.b16 %v2491, %v2490
      %v2663 = vpack.c.b16 %v2493, %v2492
      %v2664 = vpack.c.b16 %v2495, %v2494
      %v2665 = vpack.c.b16 %v2497, %v2496
      %v2666 = vpack.c.b16 %v2499, %v2498
      %v2667 = vpack.c.b16 %v2501, %v2500
      %v2668 = vpack.c.b16 %v2503, %v2502
      %v2669 = vpack.c.b16 %v2505, %v2504
      %v2670 = vpack.c.b16 %v2507, %v2506
      %v2671 = vpack.c.b16 %v2509, %v2508
      %v2672 = vpack.c.b16 %v2511, %v2510
      %v2673 = vpack.c.b16 %v2513, %v2512
      %v2674 = vpack.c.b16 %v2515, %v2514
      %v2675 = vpack.c.b16 %v2517, %v2516
      %v2676 = vpack.c.b16 %v2519, %v2518
      %v2677 = vpack.c.b16 %v2521, %v2520
      %v2678 = vpack.c.b16 %v2523, %v2522
      %v2679 = vpack.c.b16 %v2525, %v2524
      %v2680 = vpack.c.b16 %v2527, %v2526
      %v2681 = vpack.c.b16 %v2529, %v2528
      %v2682 = vpack.c.b16 %v2531, %v2530
      %v2683 = vpack.c.b16 %v2533, %v2532
      %v2684 = vpack.c.b16 %v2535, %v2534
      %v2685 = vpack.c.b16 %v2537, %v2536
      %v2686 = vpack.c.b16 %v2539, %v2538
      %v2687 = vpack.c.b16 %v2541, %v2540
      %v2688 = vpack.c.b16 %v2543, %v2542
      %v2689 = vpack.c.b16 %v2545, %v2544
      %v2690 = vpack.c.b16 %v2547, %v2546
      %v2691 = vpack.c.b16 %v2549, %v2548
      %v2692 = vpack.c.b16 %v2551, %v2550
      %v2693 = vpack.c.b16 %v2553, %v2552
      %v2694 = vpack.c.b16 %v2555, %v2554
      %v2695 = vpack.c.b16 %v2557, %v2556
      %v2696 = vpack.c.b16 %v2559, %v2558
      %v2697 = vpack.c.b16 %v2561, %v2560
      %v2698 = vpack.c.b16 %v2563, %v2562
      %v2699 = vpack.c.b16 %v2565, %v2564
      %v2700 = vpack.c.b16 %v2567, %v2566
      %v2701 = vpack.c.b16 %v2569, %v2568
      %v2702 = vpack.c.b16 %v2571, %v2570
      %v2703 = vpack.c.b16 %v2573, %v2572
      %v2704 = vpack.c.b16 %v2575, %v2574
      %v2705 = vpack.c.b16 %v2577, %v2576
      %v2706 = vpack.c.b16 %v2579, %v2578
      %v2707 = vpack.c.b16 %v2581, %v2580
      %v2708 = vpack.c.b16 %v2583, %v2582
      %v2709 = vpack.c.b16 %v2585, %v2584
      %v2710 = vpack.c.b16 %v2587, %v2586
      %v2711 = vpack.c.b16 %v2589, %v2588
      %v2712 = vpack.c.b16 %v2591, %v2590
      %v2713 = vpack.c.b16 %v2593, %v2592
      %v2714 = vpack.c.b16 %v2595, %v2594
      %v2715 = vpack.c.b16 %v2597, %v2596
      %v2716 = vpack.c.b16 %v2599, %v2598
      %v2717 = vpack.c.b16 %v2601, %v2600
      %v2718 = vpack.c.b16 %v2603, %v2602
      %v2719 = vpack.c.b16 %v2605, %v2604
      %v2720 = vpack.c.b16 %v2607, %v2606
      %v2721 = vpack.c.b16 %v2609, %v2608
      %v2722 = vpack.c.b16 %v2611, %v2610
      %v2723 = vpack.c.b16 %v2613, %v2612
      %v2724 = vpack.c.b16 %v2615, %v2614
      %v2725 = vpack.c.b16 %v2617, %v2616
      %v2726 = vpack.c.b16 %v2619, %v2618
      %v2727 = vpack.c.b16 %v2621, %v2620
      %v2728 = vpack.c.b16 %v2623, %v2622
      %v2729 = vpack.c.b16 %v2625, %v2624
      %v2730 = vpack.c.b16 %v2627, %v2626
      %v2731 = vpack.c.b16 %v2629, %v2628
      %v2732 = vpack.c.b16 %v2631, %v2630
      %v2733 = vpack.c.b16 %v2633, %v2632
      %v2734 = vpack.c.b16 %v2635, %v2634
      %v2735 = vpack.c.b16 %v2637, %v2636
      %v2736 = vpack.c.b16 %v2639, %v2638
      %v2737 = vpack.c.b16 %v2641, %v2640
      %2834 = vst [vmem:[#allocation8] sm:$0xff] %v2642
      %2835 = vst [vmem:[#allocation8 + $0x8] sm:$0xff] %v2643
      %2836 = vst [vmem:[#allocation8 + $0x10] sm:$0xff] %v2644
      %2837 = vst [vmem:[#allocation8 + $0x18] sm:$0xff] %v2645
      %2838 = vst [vmem:[#allocation8 + $0x20] sm:$0xff] %v2646
      %2839 = vst [vmem:[#allocation8 + $0x28] sm:$0xff] %v2647
      %2840 = vst [vmem:[#allocation8 + $0x30] sm:$0xff] %v2648
      %2841 = vst [vmem:[#allocation8 + $0x38] sm:$0xff] %v2649
      %2842 = vst [vmem:[#allocation8 + $0x40] sm:$0xff] %v2650
      %2843 = vst [vmem:[#allocation8 + $0x48] sm:$0xff] %v2651
      %2844 = vst [vmem:[#allocation8 + $0x50] sm:$0xff] %v2652
      %2845 = vst [vmem:[#allocation8 + $0x58] sm:$0xff] %v2653
      %2846 = vst [vmem:[#allocation8 + $0x60] sm:$0xff] %v2654
      %2847 = vst [vmem:[#allocation8 + $0x68] sm:$0xff] %v2655
      %2848 = vst [vmem:[#allocation8 + $0x70] sm:$0xff] %v2656
      %2849 = vst [vmem:[#allocation8 + $0x78] sm:$0xff] %v2657
      %2850 = vst [vmem:[#allocation8 + $0x80] sm:$0xff] %v2658
      %2851 = vst [vmem:[#allocation8 + $0x88] sm:$0xff] %v2659
      %2852 = vst [vmem:[#allocation8 + $0x90] sm:$0xff] %v2660
      %2853 = vst [vmem:[#allocation8 + $0x98] sm:$0xff] %v2661
      %2854 = vst [vmem:[#allocation8 + $0xa0] sm:$0xff] %v2662
      %2855 = vst [vmem:[#allocation8 + $0xa8] sm:$0xff] %v2663
      %2856 = vst [vmem:[#allocation8 + $0xb0] sm:$0xff] %v2664
      %2857 = vst [vmem:[#allocation8 + $0xb8] sm:$0xff] %v2665
      %2858 = vst [vmem:[#allocation8 + $0xc0] sm:$0xff] %v2666
      %2859 = vst [vmem:[#allocation8 + $0xc8] sm:$0xff] %v2667
      %2860 = vst [vmem:[#allocation8 + $0xd0] sm:$0xff] %v2668
      %2861 = vst [vmem:[#allocation8 + $0xd8] sm:$0xff] %v2669
      %2862 = vst [vmem:[#allocation8 + $0xe0] sm:$0xff] %v2670
      %2863 = vst [vmem:[#allocation8 + $0xe8] sm:$0xff] %v2671
      %2864 = vst [vmem:[#allocation8 + $0xf0] sm:$0xff] %v2672
      %2865 = vst [vmem:[#allocation8 + $0xf8] sm:$0xff] %v2673
      %2866 = vst [vmem:[#allocation8 + $0x100] sm:$0xff] %v2674
      %2867 = vst [vmem:[#allocation8 + $0x108] sm:$0xff] %v2675
      %2868 = vst [vmem:[#allocation8 + $0x110] sm:$0xff] %v2676
      %2869 = vst [vmem:[#allocation8 + $0x118] sm:$0xff] %v2677
      %2870 = vst [vmem:[#allocation8 + $0x120] sm:$0xff] %v2678
      %2871 = vst [vmem:[#allocation8 + $0x128] sm:$0xff] %v2679
      %2872 = vst [vmem:[#allocation8 + $0x130] sm:$0xff] %v2680
      %2873 = vst [vmem:[#allocation8 + $0x138] sm:$0xff] %v2681
      %2874 = vst [vmem:[#allocation8 + $0x140] sm:$0xff] %v2682
      %2875 = vst [vmem:[#allocation8 + $0x148] sm:$0xff] %v2683
      %2876 = vst [vmem:[#allocation8 + $0x150] sm:$0xff] %v2684
      %2877 = vst [vmem:[#allocation8 + $0x158] sm:$0xff] %v2685
      %2878 = vst [vmem:[#allocation8 + $0x160] sm:$0xff] %v2686
      %2879 = vst [vmem:[#allocation8 + $0x168] sm:$0xff] %v2687
      %2880 = vst [vmem:[#allocation8 + $0x170] sm:$0xff] %v2688
      %2881 = vst [vmem:[#allocation8 + $0x178] sm:$0xff] %v2689
      %2882 = vst [vmem:[#allocation8 + $0x180] sm:$0xff] %v2690
      %2883 = vst [vmem:[#allocation8 + $0x188] sm:$0xff] %v2691
      %2884 = vst [vmem:[#allocation8 + $0x190] sm:$0xff] %v2692
      %2885 = vst [vmem:[#allocation8 + $0x198] sm:$0xff] %v2693
      %2886 = vst [vmem:[#allocation8 + $0x1a0] sm:$0xff] %v2694
      %2887 = vst [vmem:[#allocation8 + $0x1a8] sm:$0xff] %v2695
      %2888 = vst [vmem:[#allocation8 + $0x1b0] sm:$0xff] %v2696
      %2889 = vst [vmem:[#allocation8 + $0x1b8] sm:$0xff] %v2697
      %2890 = vst [vmem:[#allocation8 + $0x1c0] sm:$0xff] %v2698
      %2891 = vst [vmem:[#allocation8 + $0x1c8] sm:$0xff] %v2699
      %2892 = vst [vmem:[#allocation8 + $0x1d0] sm:$0xff] %v2700
      %2893 = vst [vmem:[#allocation8 + $0x1d8] sm:$0xff] %v2701
      %2894 = vst [vmem:[#allocation8 + $0x1e0] sm:$0xff] %v2702
      %2895 = vst [vmem:[#allocation8 + $0x1e8] sm:$0xff] %v2703
      %2896 = vst [vmem:[#allocation8 + $0x1f0] sm:$0xff] %v2704
      %2897 = vst [vmem:[#allocation8 + $0x1f8] sm:$0xff] %v2705
      %2898 = vst [vmem:[#allocation8 + $0x200] sm:$0xff] %v2706
      %2899 = vst [vmem:[#allocation8 + $0x208] sm:$0xff] %v2707
      %2900 = vst [vmem:[#allocation8 + $0x210] sm:$0xff] %v2708
      %2901 = vst [vmem:[#allocation8 + $0x218] sm:$0xff] %v2709
      %2902 = vst [vmem:[#allocation8 + $0x220] sm:$0xff] %v2710
      %2903 = vst [vmem:[#allocation8 + $0x228] sm:$0xff] %v2711
      %2904 = vst [vmem:[#allocation8 + $0x230] sm:$0xff] %v2712
      %2905 = vst [vmem:[#allocation8 + $0x238] sm:$0xff] %v2713
      %2906 = vst [vmem:[#allocation8 + $0x240] sm:$0xff] %v2714
      %2907 = vst [vmem:[#allocation8 + $0x248] sm:$0xff] %v2715
      %2908 = vst [vmem:[#allocation8 + $0x250] sm:$0xff] %v2716
      %2909 = vst [vmem:[#allocation8 + $0x258] sm:$0xff] %v2717
      %2910 = vst [vmem:[#allocation8 + $0x260] sm:$0xff] %v2718
      %2911 = vst [vmem:[#allocation8 + $0x268] sm:$0xff] %v2719
      %2912 = vst [vmem:[#allocation8 + $0x270] sm:$0xff] %v2720
      %2913 = vst [vmem:[#allocation8 + $0x278] sm:$0xff] %v2721
      %2914 = vst [vmem:[#allocation8 + $0x280] sm:$0xff] %v2722
      %2915 = vst [vmem:[#allocation8 + $0x288] sm:$0xff] %v2723
      %2916 = vst [vmem:[#allocation8 + $0x290] sm:$0xff] %v2724
      %2917 = vst [vmem:[#allocation8 + $0x298] sm:$0xff] %v2725
      %2918 = vst [vmem:[#allocation8 + $0x2a0] sm:$0xff] %v2726
      %2919 = vst [vmem:[#allocation8 + $0x2a8] sm:$0xff] %v2727
      %2920 = vst [vmem:[#allocation8 + $0x2b0] sm:$0xff] %v2728
      %2921 = vst [vmem:[#allocation8 + $0x2b8] sm:$0xff] %v2729
      %2922 = vst [vmem:[#allocation8 + $0x2c0] sm:$0xff] %v2730
      %2923 = vst [vmem:[#allocation8 + $0x2c8] sm:$0xff] %v2731
      %2924 = vst [vmem:[#allocation8 + $0x2d0] sm:$0xff] %v2732
      %2925 = vst [vmem:[#allocation8 + $0x2d8] sm:$0xff] %v2733
      %2926 = vst [vmem:[#allocation8 + $0x2e0] sm:$0xff] %v2734
      %2927 = vst [vmem:[#allocation8 + $0x2e8] sm:$0xff] %v2735
      %2928 = vst [vmem:[#allocation8 + $0x2f0] sm:$0xff] %v2736
      %2929 = vst [vmem:[#allocation8 + $0x2f8] sm:$0xff] %v2737
    $region25: #{tpu_custom_call.1} parent=1 // pred_fallthru
      _
    // Predicated region
    $region26: #{tpu_custom_call.1} parent=1 // pred_check
      _
    $region27: #{tpu_custom_call.1} parent=1 // pred_check_branch
      %2931 = sbr.rel (0) target = $region29
    $region28: #{tpu_custom_call.1} parent=1 // pred_region
      %s2933 = ssub.s32 12288, 12288
      %2934 = vsyncadd [#allocation5], %s2933
      %s2935 = sshll.u32 [#allocation8], 4
      %s2936 = int_to_ptr.vmem [resolvable:$true] %s2935
      %2941 = dma.vmem_to_hbm [thread:$0]  %s2936, 12288, %s2, [#allocation5], 384, 384, 24
    $region29: #{tpu_custom_call.1} parent=1 // pred_fallthru
      _
    // Predicated region
    $region30: #{tpu_custom_call.1} parent=1 // pred_check
      _
    $region31: #{tpu_custom_call.1} parent=1 // pred_check_branch
      %2943 = sbr.rel (0) target = $region33
    $region32: #{tpu_custom_call.1} parent=1 // pred_region
      %2944 = dma.done [#allocation5], 12288
    $region33: #{tpu_custom_call.1} parent=1 // pred_fallthru
      _
    %2945 = vsyncpa [#allocation4], 1
    %2946 = vsyncpa [#allocation7], 1
    %2947 = vsyncpa [#allocation5], 1

</llo_original>
